<compile_context>
chip_gen: v7x
topology: tpu7x:2x2x1
jax: 0.10.0
libtpu: 0.0.40
codegen_flags: <defaults>
</compile_context>

<pallas_src>
import functools

import jax
import jax.numpy as jnp
from jax.experimental import pallas as pl
from jax.experimental.pallas import tpu as pltpu

_BN_EPS = 1e-5


# ---------------- generation-aware VMEM budgets ----------------

def _vmem_capacity_bytes():
    try:
        info = pltpu.get_tpu_info()
        cap = int(getattr(info, "vmem_capacity_bytes", 0))
        if cap > 0:
            return cap
    except Exception:
        pass
    return 64 * 1024 * 1024  # conservative default (v7x per-core VMEM)


_VMEM_CAP = _vmem_capacity_bytes()
_VMEM_LIMIT = min(int(_VMEM_CAP * 3 // 4), 100 * 1024 * 1024)
_TILE_BUDGET = max(_VMEM_LIMIT - 4 * 1024 * 1024, _VMEM_LIMIT // 2)


def _params(sem):
    return pltpu.CompilerParams(dimension_semantics=sem,
                                vmem_limit_bytes=_VMEM_LIMIT)


def _largest_divisor_at_most(n, cap, align=1):
    cap = max(1, min(n, int(cap)))
    best = None
    for d in range(cap, 0, -1):
        if n % d == 0:
            if d % align == 0:
                return d
            if best is None:
                best = d
    return best if best is not None else n


# ---------------- MaxPool2d(2) ----------------

def _maxpool_kernel(x_ref, o_ref):
    x = x_ref[...]                                   # (tr, 2, Wo, 2, C)
    m = jnp.maximum(jnp.maximum(x[:, 0, :, 0, :], x[:, 0, :, 1, :]),
                    jnp.maximum(x[:, 1, :, 0, :], x[:, 1, :, 1, :]))
    o_ref[...] = m.astype(o_ref.dtype)


def maxpool2x2(x_nhwc, out_dtype=jnp.bfloat16):
    n, h, w, c = x_nhwc.shape
    ho, wo = h // 2, w // 2
    x_nhwc = x_nhwc[:, :2 * ho, :2 * wo, :]
    r = n * ho
    xr = x_nhwc.reshape(r, 2, wo, 2, c)              # pure reshape, no copies
    row_bytes = (2 * wo * 2 * c * x_nhwc.dtype.itemsize
                 + wo * c * jnp.dtype(out_dtype).itemsize) * 2  # double-buffered
    tr = _largest_divisor_at_most(r, max(1, _TILE_BUDGET // max(1, row_bytes)))
    out = pl.pallas_call(
        _maxpool_kernel,
        grid=(r // tr,),
        in_specs=[pl.BlockSpec((tr, 2, wo, 2, c), lambda i: (i, 0, 0, 0, 0))],
        out_specs=pl.BlockSpec((tr, wo, c), lambda i: (i, 0, 0)),
        out_shape=jax.ShapeDtypeStruct((r, wo, c), out_dtype),
        compiler_params=_params(("parallel",)),
    )(xr)
    return out.reshape(n, ho * wo, c)                # (N, H*W, C) for the conv


# ---------------- Conv3x3(pad=1) [+ fused prev-layer BN affine + ReLU] ----------------

def _conv_bn_stats_kernel(*refs, th, w_img, t_tiles, apply_act):
    if apply_act:
        x_ref, ss_ref, w_ref, y_ref, s_ref = refs
    else:
        x_ref, w_ref, y_ref, s_ref = refs
        ss_ref = None
    cin = x_ref.shape[-1]
    cout = y_ref.shape[-1]
    hw = x_ref.shape[1]
    h_img = hw // w_img

    x = x_ref[...].reshape(h_img, w_img, cin)        # whole image, VMEM-resident
    if apply_act:                                    # fused BN affine + ReLU of prev layer
        ss = ss_ref[...]                             # (2, Cin) f32: [scale; shift]
        scale = ss[0:1, :].reshape(1, 1, cin)
        shift = ss[1:2, :].reshape(1, 1, cin)
        x = jnp.maximum(x.astype(jnp.float32) * scale + shift, 0.0)
    x = x.astype(jnp.bfloat16)

    # zero halo (padding=1) built in VMEM -- no padded copy in HBM
    zrow = jnp.zeros((1, w_img, cin), jnp.bfloat16)
    xpad = jnp.concatenate([zrow, x, zrow], axis=0)
    zcol = jnp.zeros((h_img + 2, 1, cin), jnp.bfloat16)
    xpad = jnp.concatenate([zcol, xpad, zcol], axis=1)   # (H+2, W+2, Cin)

    if t_tiles == 1:
        win = xpad
    else:
        t = pl.program_id(1)
        win = jax.lax.dynamic_slice_in_dim(xpad, t * th, th + 2, axis=0)

    m = th * w_img
    wf = w_ref[...]                                  # (9*Cin, Cout) bf16
    if cin >= 128:
        # shift-and-accumulate: 9 accumulating K=Cin matmuls, no (M, 9*Cin) patch.
        acc = jnp.zeros((m, cout), jnp.float32)
        for dy in range(3):
            for dx in range(3):
                k = dy * 3 + dx
                tap = win[dy:dy + th, dx:dx + w_img, :].reshape(m, cin)
                acc = acc + jnp.dot(tap, wf[k * cin:(k + 1) * cin, :],
                                    preferred_element_type=jnp.float32)
    else:
        cols = [win[dy:dy + th, dx:dx + w_img, :].reshape(m, cin)
                for dy in range(3) for dx in range(3)]
        patches = jnp.concatenate(cols, axis=1)      # (M, 9*Cin) bf16
        acc = jnp.dot(patches, wf, preferred_element_type=jnp.float32)

    y_ref[...] = acc.reshape(1, 1, m, cout).astype(y_ref.dtype)   # bf16 intermediate
    s0 = jnp.sum(acc, axis=0, keepdims=True)
    s1 = jnp.sum(acc * acc, axis=0, keepdims=True)
    s_ref[...] = jnp.concatenate([s0, s1], axis=0).reshape(1, 1, 2, cout)


def _conv_tile_rows(h_img, w_img, cin, cout):
    img_in = h_img * w_img * cin * 2                       # bf16 resident image
    base = 2 * img_in + 2 * (9 * cin * cout * 2)           # double-buffered in + weights
    base += (h_img + 2) * (w_img + 2) * cin * 2            # in-kernel padded copy
    base += h_img * w_img * cin * 4                        # transient f32 affine temp
    for th in range(h_img, 0, -1):
        if h_img % th:
            continue
        m = th * w_img
        per = base + 2 * (m * cout * 2) + m * cout * 4
        if cin < 128:
            per += m * 9 * cin * 2                         # patch matrix
        if per <= _TILE_BUDGET:
            return th
    return 1


def conv3x3_bn_stats(x_flat, w_flat_bf16, w_img, ss_prev=None):
    """Conv3x3 pad=1 on (N, H*W, Cin); optionally fuses prev-layer BN affine+ReLU.

    Returns pre-BN conv output y (bf16, (N, H*W, Cout)) and per-tile BN partial
    sums [sum, sum(x^2)] of shape (N*T, 2, Cout)."""
    n, hw, cin = x_flat.shape
    h_img = hw // w_img
    cout = w_flat_bf16.shape[1]

    th = _conv_tile_rows(h_img, w_img, cin, cout)
    t_tiles = h_img // th
    m = th * w_img

    kernel = functools.partial(_conv_bn_stats_kernel, th=th, w_img=w_img,
                               t_tiles=t_tiles, apply_act=ss_prev is not None)

    in_specs = [pl.BlockSpec((1, hw, cin), lambda nb, tb: (nb, 0, 0))]
    args = [x_flat]
    if ss_prev is not None:
        in_specs.append(pl.BlockSpec((2, cin), lambda nb, tb: (0, 0)))
        args.append(ss_prev)
    in_specs.append(pl.BlockSpec((9 * cin, cout), lambda nb, tb: (0, 0)))
    args.append(w_flat_bf16)

    y, stats = pl.pallas_call(
        kernel,
        grid=(n, t_tiles),
        in_specs=in_specs,
        out_specs=[pl.BlockSpec((1, 1, m, cout), lambda nb, tb: (nb, tb, 0, 0)),
                   pl.BlockSpec((1, 1, 2, cout), lambda nb, tb: (nb, tb, 0, 0))],
        out_shape=[jax.ShapeDtypeStruct((n, t_tiles, m, cout), jnp.bfloat16),
                   jax.ShapeDtypeStruct((n, t_tiles, 2, cout), jnp.float32)],
        compiler_params=_params(("parallel", "arbitrary")),
    )(*args)
    return y.reshape(n, hw, cout), stats.reshape(n * t_tiles, 2, cout)


# ---------------- BatchNorm finalize (once) + affine/ReLU apply ----------------

def _bn_finalize_kernel(s_ref, g_ref, b_ref, o_ref, *, count):
    tot = jnp.sum(s_ref[...], axis=0)                      # (2, C)
    inv_n = 1.0 / count
    mean = tot[0:1, :] * inv_n
    var = jnp.maximum(tot[1:2, :] * inv_n - mean * mean, 0.0)
    scale = g_ref[...] * jax.lax.rsqrt(var + _BN_EPS)
    shift = b_ref[...] - mean * scale
    o_ref[...] = jnp.concatenate([scale, shift], axis=0)   # (2, C)


def bn_finalize(stats, gamma, beta, count):
    nt, _, c = stats.shape
    return pl.pallas_call(
        functools.partial(_bn_finalize_kernel, count=float(count)),
        grid=(1,),
        in_specs=[pl.BlockSpec((nt, 2, c), lambda i: (0, 0, 0)),
                  pl.BlockSpec((1, c), lambda i: (0, 0)),
                  pl.BlockSpec((1, c), lambda i: (0, 0))],
        out_specs=pl.BlockSpec((2, c), lambda i: (0, 0)),
        out_shape=jax.ShapeDtypeStruct((2, c), jnp.float32),
        compiler_params=_params(("arbitrary",)),
    )(stats, gamma, beta)


def _bn_relu_kernel(y_ref, ss_ref, o_ref):
    y = y_ref[...].astype(jnp.float32)
    ss = ss_ref[...]
    o_ref[...] = jnp.maximum(y * ss[0:1, :] + ss[1:2, :], 0.0).astype(o_ref.dtype)


def bn_relu_apply(y_flat, ss, n, h_img, w_img, out_dtype):
    """Final BN affine + ReLU on a lane-dense (N*H, W*C) view (pure reshapes)."""
    c = y_flat.shape[-1]
    rows, lanes = n * h_img, w_img * c
    y2d = y_flat.reshape(rows, lanes)
    ss_wide = jnp.tile(ss, (1, w_img))                     # (2, W*C), tiny
    row_bytes = lanes * (2 * 2 + 4 * 2)
    tr = _largest_divisor_at_most(rows, max(1, _TILE_BUDGET // max(1, row_bytes)),
                                  align=8)
    out = pl.pallas_call(
        _bn_relu_kernel,
        grid=(rows // tr,),
        in_specs=[pl.BlockSpec((tr, lanes), lambda i: (i, 0)),
                  pl.BlockSpec((2, lanes), lambda i: (0, 0))],
        out_specs=pl.BlockSpec((tr, lanes), lambda i: (i, 0)),
        out_shape=jax.ShapeDtypeStruct((rows, lanes), out_dtype),
        compiler_params=_params(("parallel",)),
    )(y2d, ss_wide)
    return out.reshape(n, h_img, w_img, c)


# ---------------- parameters (matching the nn.Module init) ----------------

def init_down_params(key, in_ch, out_ch):
    k1, k2 = jax.random.split(key)

    def xavier_conv(k, cin, cout):
        fan_in, fan_out = cin * 9, cout * 9
        bound = (6.0 / (fan_in + fan_out)) ** 0.5          # xavier_uniform_
        wgt = jax.random.uniform(k, (cout, cin, 3, 3), jnp.float32, -bound, bound)
        # tap-major flattened layout, cast once to bf16 for the MXU
        w_flat = jnp.transpose(wgt, (2, 3, 1, 0)).reshape(9 * cin, cout)
        w_flat = w_flat.astype(jnp.bfloat16)
        b = jnp.full((cout,), 0.05, jnp.float32)           # m.bias.data.fill_(0.05)
        return wgt, w_flat, b

    w1, w1_flat, b1 = xavier_conv(k1, in_ch, out_ch)
    w2, w2_flat, b2 = xavier_conv(k2, out_ch, out_ch)
    gamma = jnp.ones((1, out_ch), jnp.float32)             # BatchNorm2d defaults
    beta = jnp.zeros((1, out_ch), jnp.float32)
    # b1/b2 kept for the reference: a pre-BN constant bias is exactly cancelled
    # by the batch-mean subtraction, so the kernel path omits it.
    return dict(w1=w1, w1_flat=w1_flat, b1=b1,
                w2=w2, w2_flat=w2_flat, b2=b2,
                gamma1=gamma, beta1=beta, gamma2=gamma, beta2=beta)


def down_forward(x_nchw, params):
    x = jnp.transpose(x_nchw, (0, 2, 3, 1))                # NCHW -> NHWC
    n, h0, w0, _ = x.shape
    h, w = h0 // 2, w0 // 2

    p = maxpool2x2(x)                                      # (N, H*W, Cin) bf16
    y1, st1 = conv3x3_bn_stats(p, params["w1_flat"], w)
    ss1 = bn_finalize(st1, params["gamma1"], params["beta1"], n * h * w)
    # BN+ReLU of layer 1 is fused into layer 2's conv input path (no HBM round trip)
    y2, st2 = conv3x3_bn_stats(y1, params["w2_flat"], w, ss_prev=ss1)
    ss2 = bn_finalize(st2, params["gamma2"], params["beta2"], n * h * w)
    out = bn_relu_apply(y2, ss2, n, h, w, x_nchw.dtype)    # (N, H, W, Cout) f32
    return jnp.transpose(out, (0, 3, 1, 2))                # NHWC -> NCHW


# ---------------- pure-JAX f32 reference (sanity check only) ----------------

def _ref_forward(x_nchw, params):
    x = jax.lax.reduce_window(x_nchw, -jnp.inf, jax.lax.max,
                              (1, 1, 2, 2), (1, 1, 2, 2), "VALID")

    def block(x, wgt, b):
        y = jax.lax.conv_general_dilated(
            x, wgt, (1, 1), ((1, 1), (1, 1)),
            dimension_numbers=("NCHW", "OIHW", "NCHW"),
            precision=jax.lax.Precision.HIGHEST)
        y = y + b.reshape(1, -1, 1, 1)
        mean = jnp.mean(y, axis=(0, 2, 3), keepdims=True)
        var = jnp.mean((y - mean) ** 2, axis=(0, 2, 3), keepdims=True)
        y = (y - mean) * jax.lax.rsqrt(var + _BN_EPS)
        return jnp.maximum(y, 0.0)

    y = block(x, params["w1"], params["b1"])
    y = block(y, params["w2"], params["b2"])
    return y


if __name__ == "__main__":
    N, IN_CH, OUT_CH, H, W = 2, 4, 8, 16, 16
    key = jax.random.PRNGKey(0)
    kx, kp = jax.random.split(key)
    x = jax.random.normal(kx, (N, IN_CH, H, W), jnp.float32)
    params = init_down_params(kp, IN_CH, OUT_CH)

    out = jax.block_until_ready(jax.jit(down_forward)(x, params))
    assert out.shape == (N, OUT_CH, H // 2, W // 2), out.shape

    ref = _ref_forward(x, params)
    err = float(jnp.max(jnp.abs(out - ref)))
    # bf16 MXU operands / bf16 intermediates vs. an f32 HIGHEST-precision reference
    assert err < 0.25, f"mismatch vs reference: max abs err = {err}"

    # TODO(synk): BatchNorm running-stat buffer updates (training bookkeeping) are
    # not modeled; forward math uses batch statistics exactly as PyTorch training mode.
    print("KERNEL_OK")
</pallas_src>

<mosaic_0001>
module attributes {stable_mosaic.version = 11 : i64} {
  func.func @_maxpool_kernel(%arg0: i32, %arg1: memref<16x2x8x2x4xf32, #tpu.memory_space<vmem>>, %arg2: memref<16x8x4xbf16, #tpu.memory_space<vmem>>) attributes {dimension_semantics = [#tpu.dimension_semantics<parallel>], iteration_bounds = array<i64: 1>, scalar_prefetch = 0 : i64, scratch_operands = 0 : i64, tpu.core_type = #tpu.core_type<tc>, window_params = [{transform_indices = @transform_0, window_bounds = array<i64: 16, 2, 8, 2, 4>}, {transform_indices = @transform_1, window_bounds = array<i64: 16, 8, 4>}]} {
    %c0 = arith.constant 0 : index
    %c0_0 = arith.constant 0 : index
    %c0_1 = arith.constant 0 : index
    %c0_2 = arith.constant 0 : index
    %c0_3 = arith.constant 0 : index
    %0 = vector.load %arg1[%c0, %c0_0, %c0_1, %c0_2, %c0_3] : memref<16x2x8x2x4xf32, #tpu.memory_space<vmem>>, vector<16x2x8x2x4xf32>
    %1 = vector.extract_strided_slice %0 {offsets = [0, 0, 0, 0, 0], sizes = [16, 1, 8, 1, 4], strides = [1, 1, 1, 1, 1]} : vector<16x2x8x2x4xf32> to vector<16x1x8x1x4xf32>
    %2 = vector.shape_cast %1 : vector<16x1x8x1x4xf32> to vector<16x8x4xf32>
    %3 = vector.extract_strided_slice %0 {offsets = [0, 0, 0, 1, 0], sizes = [16, 1, 8, 1, 4], strides = [1, 1, 1, 1, 1]} : vector<16x2x8x2x4xf32> to vector<16x1x8x1x4xf32>
    %4 = vector.shape_cast %3 : vector<16x1x8x1x4xf32> to vector<16x8x4xf32>
    %5 = arith.maximumf %2, %4 : vector<16x8x4xf32>
    %6 = vector.extract_strided_slice %0 {offsets = [0, 1, 0, 0, 0], sizes = [16, 1, 8, 1, 4], strides = [1, 1, 1, 1, 1]} : vector<16x2x8x2x4xf32> to vector<16x1x8x1x4xf32>
    %7 = vector.shape_cast %6 : vector<16x1x8x1x4xf32> to vector<16x8x4xf32>
    %8 = vector.extract_strided_slice %0 {offsets = [0, 1, 0, 1, 0], sizes = [16, 1, 8, 1, 4], strides = [1, 1, 1, 1, 1]} : vector<16x2x8x2x4xf32> to vector<16x1x8x1x4xf32>
    %9 = vector.shape_cast %8 : vector<16x1x8x1x4xf32> to vector<16x8x4xf32>
    %10 = arith.maximumf %7, %9 : vector<16x8x4xf32>
    %11 = arith.maximumf %5, %10 : vector<16x8x4xf32>
    %12 = arith.truncf %11 : vector<16x8x4xf32> to vector<16x8x4xbf16>
    %c0_4 = arith.constant 0 : index
    %c0_5 = arith.constant 0 : index
    %c0_6 = arith.constant 0 : index
    %13 = vector.load %arg2[%c0_4, %c0_5, %c0_6] : memref<16x8x4xbf16, #tpu.memory_space<vmem>>, vector<16x8x4xbf16>
    tpu.vector_store %arg2[%c0_4, %c0_5, %c0_6], %12 {strides = array<i32>} : memref<16x8x4xbf16, #tpu.memory_space<vmem>>, vector<16x8x4xbf16>,
    return
  }
  func.func @transform_0(%arg0: i32) -> (i32, i32, i32, i32, i32) {
    %c0_i32 = arith.constant 0 : i32
    %c0_i32_0 = arith.constant 0 : i32
    %c0_i32_1 = arith.constant 0 : i32
    %c0_i32_2 = arith.constant 0 : i32
    %c0_i32_3 = arith.constant 0 : i32
    return %arg0, %c0_i32, %c0_i32_0, %c0_i32_1, %c0_i32_2 : i32, i32, i32, i32, i32
  }
  func.func @transform_1(%arg0: i32) -> (i32, i32, i32) {
    %c0_i32 = arith.constant 0 : i32
    %c0_i32_0 = arith.constant 0 : i32
    %c0_i32_1 = arith.constant 0 : i32
    return %arg0, %c0_i32, %c0_i32_0 : i32, i32, i32
  }
}

module attributes {stable_mosaic.version = 11 : i64} {
  func.func @_conv_bn_stats_kernel(%arg0: i32, %arg1: i32, %arg2: memref<1x64x4xbf16, #tpu.memory_space<vmem>>, %arg3: memref<36x8xbf16, #tpu.memory_space<vmem>>, %arg4: memref<1x1x64x8xbf16, #tpu.memory_space<vmem>>, %arg5: memref<1x1x2x8xf32, #tpu.memory_space<vmem>>) attributes {dimension_semantics = [#tpu.dimension_semantics<parallel>, #tpu.dimension_semantics<arbitrary>], iteration_bounds = array<i64: 2, 1>, scalar_prefetch = 0 : i64, scratch_operands = 0 : i64, tpu.core_type = #tpu.core_type<tc>, window_params = [{transform_indices = @transform_0, window_bounds = array<i64: 1, 64, 4>}, {pipeline_mode = #tpu.pipeline_mode<synchronous>, transform_indices = @transform_1, window_bounds = array<i64: 36, 8>}, {transform_indices = @transform_2, window_bounds = array<i64: 1, 1, 64, 8>}, {transform_indices = @transform_3, window_bounds = array<i64: 1, 1, 2, 8>}]} {
    %c0 = arith.constant 0 : index
    %c0_0 = arith.constant 0 : index
    %c0_1 = arith.constant 0 : index
    %0 = vector.load %arg2[%c0, %c0_0, %c0_1] : memref<1x64x4xbf16, #tpu.memory_space<vmem>>, vector<1x64x4xbf16>
    %1 = vector.shape_cast %0 : vector<1x64x4xbf16> to vector<8x8x4xbf16>
    %cst = arith.constant 0.000000e+00 : bf16
    %2 = vector.broadcast %cst : bf16 to vector<1x8x4xbf16>
    %3 = tpu.concatenate %2, %1, %2 in 0 : vector<1x8x4xbf16>, vector<8x8x4xbf16>, vector<1x8x4xbf16> -> vector<10x8x4xbf16>
    %cst_2 = arith.constant 0.000000e+00 : bf16
    %4 = vector.broadcast %cst_2 : bf16 to vector<10x1x4xbf16>
    %5 = tpu.concatenate %4, %3, %4 in 1 : vector<10x1x4xbf16>, vector<10x8x4xbf16>, vector<10x1x4xbf16> -> vector<10x10x4xbf16>
    %c0_3 = arith.constant 0 : index
    %c0_4 = arith.constant 0 : index
    %6 = vector.load %arg3[%c0_3, %c0_4] : memref<36x8xbf16, #tpu.memory_space<vmem>>, vector<36x8xbf16>
    %7 = vector.extract_strided_slice %5 {offsets = [0, 0, 0], sizes = [8, 8, 4], strides = [1, 1, 1]} : vector<10x10x4xbf16> to vector<8x8x4xbf16>
    %8 = vector.shape_cast %7 : vector<8x8x4xbf16> to vector<64x4xbf16>
    %9 = vector.extract_strided_slice %5 {offsets = [0, 1, 0], sizes = [8, 8, 4], strides = [1, 1, 1]} : vector<10x10x4xbf16> to vector<8x8x4xbf16>
    %10 = vector.shape_cast %9 : vector<8x8x4xbf16> to vector<64x4xbf16>
    %11 = vector.extract_strided_slice %5 {offsets = [0, 2, 0], sizes = [8, 8, 4], strides = [1, 1, 1]} : vector<10x10x4xbf16> to vector<8x8x4xbf16>
    %12 = vector.shape_cast %11 : vector<8x8x4xbf16> to vector<64x4xbf16>
    %13 = vector.extract_strided_slice %5 {offsets = [1, 0, 0], sizes = [8, 8, 4], strides = [1, 1, 1]} : vector<10x10x4xbf16> to vector<8x8x4xbf16>
    %14 = vector.shape_cast %13 : vector<8x8x4xbf16> to vector<64x4xbf16>
    %15 = vector.extract_strided_slice %5 {offsets = [1, 1, 0], sizes = [8, 8, 4], strides = [1, 1, 1]} : vector<10x10x4xbf16> to vector<8x8x4xbf16>
    %16 = vector.shape_cast %15 : vector<8x8x4xbf16> to vector<64x4xbf16>
    %17 = vector.extract_strided_slice %5 {offsets = [1, 2, 0], sizes = [8, 8, 4], strides = [1, 1, 1]} : vector<10x10x4xbf16> to vector<8x8x4xbf16>
    %18 = vector.shape_cast %17 : vector<8x8x4xbf16> to vector<64x4xbf16>
    %19 = vector.extract_strided_slice %5 {offsets = [2, 0, 0], sizes = [8, 8, 4], strides = [1, 1, 1]} : vector<10x10x4xbf16> to vector<8x8x4xbf16>
    %20 = vector.shape_cast %19 : vector<8x8x4xbf16> to vector<64x4xbf16>
    %21 = vector.extract_strided_slice %5 {offsets = [2, 1, 0], sizes = [8, 8, 4], strides = [1, 1, 1]} : vector<10x10x4xbf16> to vector<8x8x4xbf16>
    %22 = vector.shape_cast %21 : vector<8x8x4xbf16> to vector<64x4xbf16>
    %23 = vector.extract_strided_slice %5 {offsets = [2, 2, 0], sizes = [8, 8, 4], strides = [1, 1, 1]} : vector<10x10x4xbf16> to vector<8x8x4xbf16>
    %24 = vector.shape_cast %23 : vector<8x8x4xbf16> to vector<64x4xbf16>
    %25 = tpu.concatenate %8, %10, %12, %14, %16, %18, %20, %22, %24 in 1 : vector<64x4xbf16>, vector<64x4xbf16>, vector<64x4xbf16>, vector<64x4xbf16>, vector<64x4xbf16>, vector<64x4xbf16>, vector<64x4xbf16>, vector<64x4xbf16>, vector<64x4xbf16> -> vector<64x36xbf16>
    %cst_5 = arith.constant dense<0.000000e+00> : vector<64x8xf32>
    %26 = tpu.matmul %25, %6, %cst_5 {dimension_numbers = #tpu.dot_dimension_numbers<[1], [0], [0], [1], [0, 0, 1, 1], [], []>} : vector<64x36xbf16>, vector<36x8xbf16>, vector<64x8xf32> -> vector<64x8xf32>
    %27 = vector.shape_cast %26 : vector<64x8xf32> to vector<1x1x64x8xf32>
    %28 = arith.truncf %27 : vector<1x1x64x8xf32> to vector<1x1x64x8xbf16>
    %c0_6 = arith.constant 0 : index
    %c0_7 = arith.constant 0 : index
    %c0_8 = arith.constant 0 : index
    %c0_9 = arith.constant 0 : index
    %29 = vector.load %arg4[%c0_6, %c0_7, %c0_8, %c0_9] : memref<1x1x64x8xbf16, #tpu.memory_space<vmem>>, vector<1x1x64x8xbf16>
    tpu.vector_store %arg4[%c0_6, %c0_7, %c0_8, %c0_9], %28 {strides = array<i32>} : memref<1x1x64x8xbf16, #tpu.memory_space<vmem>>, vector<1x1x64x8xbf16>,
    %cst_10 = arith.constant dense<0.000000e+00> : vector<8xf32>
    %30 = vector.multi_reduction <add>, %26, %cst_10 [0] : vector<64x8xf32> to vector<8xf32>
    %31 = vector.shape_cast %30 : vector<8xf32> to vector<1x8xf32>
    %32 = arith.mulf %26, %26 : vector<64x8xf32>
    %cst_11 = arith.constant dense<0.000000e+00> : vector<8xf32>
    %33 = vector.multi_reduction <add>, %32, %cst_11 [0] : vector<64x8xf32> to vector<8xf32>
    %34 = vector.shape_cast %33 : vector<8xf32> to vector<1x8xf32>
    %35 = tpu.concatenate %31, %34 in 0 : vector<1x8xf32>, vector<1x8xf32> -> vector<2x8xf32>
    %36 = vector.shape_cast %35 : vector<2x8xf32> to vector<1x1x2x8xf32>
    %c0_12 = arith.constant 0 : index
    %c0_13 = arith.constant 0 : index
    %c0_14 = arith.constant 0 : index
    %c0_15 = arith.constant 0 : index
    %37 = vector.load %arg5[%c0_12, %c0_13, %c0_14, %c0_15] : memref<1x1x2x8xf32, #tpu.memory_space<vmem>>, vector<1x1x2x8xf32>
    tpu.vector_store %arg5[%c0_12, %c0_13, %c0_14, %c0_15], %36 {strides = array<i32>} : memref<1x1x2x8xf32, #tpu.memory_space<vmem>>, vector<1x1x2x8xf32>,
    return
  }
  func.func @transform_0(%arg0: i32, %arg1: i32) -> (i32, i32, i32) {
    %c0_i32 = arith.constant 0 : i32
    %c0_i32_0 = arith.constant 0 : i32
    %c0_i32_1 = arith.constant 0 : i32
    return %arg0, %c0_i32, %c0_i32_0 : i32, i32, i32
  }
  func.func @transform_1(%arg0: i32, %arg1: i32) -> (i32, i32) {
    %c0_i32 = arith.constant 0 : i32
    %c0_i32_0 = arith.constant 0 : i32
    %c0_i32_1 = arith.constant 0 : i32
    return %c0_i32, %c0_i32_0 : i32, i32
  }
  func.func @transform_2(%arg0: i32, %arg1: i32) -> (i32, i32, i32, i32) {
    %c0_i32 = arith.constant 0 : i32
    %c0_i32_0 = arith.constant 0 : i32
    %c0_i32_1 = arith.constant 0 : i32
    return %arg0, %arg1, %c0_i32, %c0_i32_0 : i32, i32, i32, i32
  }
  func.func @transform_3(%arg0: i32, %arg1: i32) -> (i32, i32, i32, i32) {
    %c0_i32 = arith.constant 0 : i32
    %c0_i32_0 = arith.constant 0 : i32
    %c0_i32_1 = arith.constant 0 : i32
    return %arg0, %arg1, %c0_i32, %c0_i32_0 : i32, i32, i32, i32
  }
}

module attributes {stable_mosaic.version = 11 : i64} {
  func.func @_bn_finalize_kernel(%arg0: i32, %arg1: memref<2x2x8xf32, #tpu.memory_space<vmem>>, %arg2: memref<1x8xf32, #tpu.memory_space<vmem>>, %arg3: memref<1x8xf32, #tpu.memory_space<vmem>>, %arg4: memref<2x8xf32, #tpu.memory_space<vmem>>) attributes {dimension_semantics = [#tpu.dimension_semantics<arbitrary>], iteration_bounds = array<i64: 1>, scalar_prefetch = 0 : i64, scratch_operands = 0 : i64, tpu.core_type = #tpu.core_type<tc>, window_params = [{pipeline_mode = #tpu.pipeline_mode<synchronous>, transform_indices = @transform_0, window_bounds = array<i64: 2, 2, 8>}, {pipeline_mode = #tpu.pipeline_mode<synchronous>, transform_indices = @transform_1, window_bounds = array<i64: 1, 8>}, {pipeline_mode = #tpu.pipeline_mode<synchronous>, transform_indices = @transform_2, window_bounds = array<i64: 1, 8>}, {pipeline_mode = #tpu.pipeline_mode<synchronous>, transform_indices = @transform_3, window_bounds = array<i64: 2, 8>}]} {
    %c0 = arith.constant 0 : index
    %c0_0 = arith.constant 0 : index
    %c0_1 = arith.constant 0 : index
    %0 = vector.load %arg1[%c0, %c0_0, %c0_1] : memref<2x2x8xf32, #tpu.memory_space<vmem>>, vector<2x2x8xf32>
    %cst = arith.constant dense<0.000000e+00> : vector<2x8xf32>
    %1 = vector.multi_reduction <add>, %0, %cst [0] : vector<2x2x8xf32> to vector<2x8xf32>
    %2 = vector.extract_strided_slice %1 {offsets = [0, 0], sizes = [1, 8], strides = [1, 1]} : vector<2x8xf32> to vector<1x8xf32>
    %cst_2 = arith.constant 7.812500e-03 : f32
    %3 = vector.broadcast %cst_2 : f32 to vector<1x8xf32>
    %4 = arith.mulf %2, %3 : vector<1x8xf32>
    %5 = vector.extract_strided_slice %1 {offsets = [1, 0], sizes = [1, 8], strides = [1, 1]} : vector<2x8xf32> to vector<1x8xf32>
    %cst_3 = arith.constant 7.812500e-03 : f32
    %6 = vector.broadcast %cst_3 : f32 to vector<1x8xf32>
    %7 = arith.mulf %5, %6 : vector<1x8xf32>
    %8 = arith.mulf %4, %4 : vector<1x8xf32>
    %9 = arith.subf %7, %8 : vector<1x8xf32>
    %cst_4 = arith.constant 0.000000e+00 : f32
    %10 = vector.broadcast %cst_4 : f32 to vector<1x8xf32>
    %11 = arith.maximumf %9, %10 : vector<1x8xf32>
    %c0_5 = arith.constant 0 : index
    %c0_6 = arith.constant 0 : index
    %12 = vector.load %arg2[%c0_5, %c0_6] : memref<1x8xf32, #tpu.memory_space<vmem>>, vector<1x8xf32>
    %cst_7 = arith.constant 9.99999974E-6 : f32
    %13 = vector.broadcast %cst_7 : f32 to vector<1x8xf32>
    %14 = arith.addf %11, %13 : vector<1x8xf32>
    %15 = math.rsqrt %14 : vector<1x8xf32>
    %16 = arith.mulf %12, %15 : vector<1x8xf32>
    %c0_8 = arith.constant 0 : index
    %c0_9 = arith.constant 0 : index
    %17 = vector.load %arg3[%c0_8, %c0_9] : memref<1x8xf32, #tpu.memory_space<vmem>>, vector<1x8xf32>
    %18 = arith.mulf %4, %16 : vector<1x8xf32>
    %19 = arith.subf %17, %18 : vector<1x8xf32>
    %20 = tpu.concatenate %16, %19 in 0 : vector<1x8xf32>, vector<1x8xf32> -> vector<2x8xf32>
    %c0_10 = arith.constant 0 : index
    %c0_11 = arith.constant 0 : index
    %21 = vector.load %arg4[%c0_10, %c0_11] : memref<2x8xf32, #tpu.memory_space<vmem>>, vector<2x8xf32>
    tpu.vector_store %arg4[%c0_10, %c0_11], %20 {strides = array<i32>} : memref<2x8xf32, #tpu.memory_space<vmem>>, vector<2x8xf32>,
    return
  }
  func.func @transform_0(%arg0: i32) -> (i32, i32, i32) {
    %c0_i32 = arith.constant 0 : i32
    %c0_i32_0 = arith.constant 0 : i32
    %c0_i32_1 = arith.constant 0 : i32
    %c0_i32_2 = arith.constant 0 : i32
    return %c0_i32, %c0_i32_0, %c0_i32_1 : i32, i32, i32
  }
  func.func @transform_1(%arg0: i32) -> (i32, i32) {
    %c0_i32 = arith.constant 0 : i32
    %c0_i32_0 = arith.constant 0 : i32
    %c0_i32_1 = arith.constant 0 : i32
    return %c0_i32, %c0_i32_0 : i32, i32
  }
  func.func @transform_2(%arg0: i32) -> (i32, i32) {
    %c0_i32 = arith.constant 0 : i32
    %c0_i32_0 = arith.constant 0 : i32
    %c0_i32_1 = arith.constant 0 : i32
    return %c0_i32, %c0_i32_0 : i32, i32
  }
  func.func @transform_3(%arg0: i32) -> (i32, i32) {
    %c0_i32 = arith.constant 0 : i32
    %c0_i32_0 = arith.constant 0 : i32
    %c0_i32_1 = arith.constant 0 : i32
    return %c0_i32, %c0_i32_0 : i32, i32
  }
}

module attributes {stable_mosaic.version = 11 : i64} {
  func.func @_conv_bn_stats_kernel(%arg0: i32, %arg1: i32, %arg2: memref<1x64x8xbf16, #tpu.memory_space<vmem>>, %arg3: memref<2x8xf32, #tpu.memory_space<vmem>>, %arg4: memref<72x8xbf16, #tpu.memory_space<vmem>>, %arg5: memref<1x1x64x8xbf16, #tpu.memory_space<vmem>>, %arg6: memref<1x1x2x8xf32, #tpu.memory_space<vmem>>) attributes {dimension_semantics = [#tpu.dimension_semantics<parallel>, #tpu.dimension_semantics<arbitrary>], iteration_bounds = array<i64: 2, 1>, scalar_prefetch = 0 : i64, scratch_operands = 0 : i64, tpu.core_type = #tpu.core_type<tc>, window_params = [{transform_indices = @transform_0, window_bounds = array<i64: 1, 64, 8>}, {pipeline_mode = #tpu.pipeline_mode<synchronous>, transform_indices = @transform_1, window_bounds = array<i64: 2, 8>}, {pipeline_mode = #tpu.pipeline_mode<synchronous>, transform_indices = @transform_2, window_bounds = array<i64: 72, 8>}, {transform_indices = @transform_3, window_bounds = array<i64: 1, 1, 64, 8>}, {transform_indices = @transform_4, window_bounds = array<i64: 1, 1, 2, 8>}]} {
    %c0 = arith.constant 0 : index
    %c0_0 = arith.constant 0 : index
    %c0_1 = arith.constant 0 : index
    %0 = vector.load %arg2[%c0, %c0_0, %c0_1] : memref<1x64x8xbf16, #tpu.memory_space<vmem>>, vector<1x64x8xbf16>
    %1 = vector.shape_cast %0 : vector<1x64x8xbf16> to vector<8x8x8xbf16>
    %c0_2 = arith.constant 0 : index
    %c0_3 = arith.constant 0 : index
    %2 = vector.load %arg3[%c0_2, %c0_3] : memref<2x8xf32, #tpu.memory_space<vmem>>, vector<2x8xf32>
    %3 = vector.extract_strided_slice %2 {offsets = [0, 0], sizes = [1, 8], strides = [1, 1]} : vector<2x8xf32> to vector<1x8xf32>
    %4 = vector.shape_cast %3 : vector<1x8xf32> to vector<1x1x8xf32>
    %5 = vector.extract_strided_slice %2 {offsets = [1, 0], sizes = [1, 8], strides = [1, 1]} : vector<2x8xf32> to vector<1x8xf32>
    %6 = vector.shape_cast %5 : vector<1x8xf32> to vector<1x1x8xf32>
    %7 = arith.extf %1 : vector<8x8x8xbf16> to vector<8x8x8xf32>
    %8 = vector.broadcast %4 : vector<1x1x8xf32> to vector<8x8x8xf32>
    %9 = arith.mulf %7, %8 : vector<8x8x8xf32>
    %10 = vector.broadcast %6 : vector<1x1x8xf32> to vector<8x8x8xf32>
    %11 = arith.addf %9, %10 : vector<8x8x8xf32>
    %cst = arith.constant 0.000000e+00 : f32
    %12 = vector.broadcast %cst : f32 to vector<8x8x8xf32>
    %13 = arith.maximumf %11, %12 : vector<8x8x8xf32>
    %14 = arith.truncf %13 : vector<8x8x8xf32> to vector<8x8x8xbf16>
    %cst_4 = arith.constant 0.000000e+00 : bf16
    %15 = vector.broadcast %cst_4 : bf16 to vector<1x8x8xbf16>
    %16 = tpu.concatenate %15, %14, %15 in 0 : vector<1x8x8xbf16>, vector<8x8x8xbf16>, vector<1x8x8xbf16> -> vector<10x8x8xbf16>
    %cst_5 = arith.constant 0.000000e+00 : bf16
    %17 = vector.broadcast %cst_5 : bf16 to vector<10x1x8xbf16>
    %18 = tpu.concatenate %17, %16, %17 in 1 : vector<10x1x8xbf16>, vector<10x8x8xbf16>, vector<10x1x8xbf16> -> vector<10x10x8xbf16>
    %c0_6 = arith.constant 0 : index
    %c0_7 = arith.constant 0 : index
    %19 = vector.load %arg4[%c0_6, %c0_7] : memref<72x8xbf16, #tpu.memory_space<vmem>>, vector<72x8xbf16>
    %20 = vector.extract_strided_slice %18 {offsets = [0, 0, 0], sizes = [8, 8, 8], strides = [1, 1, 1]} : vector<10x10x8xbf16> to vector<8x8x8xbf16>
    %21 = vector.shape_cast %20 : vector<8x8x8xbf16> to vector<64x8xbf16>
    %22 = vector.extract_strided_slice %18 {offsets = [0, 1, 0], sizes = [8, 8, 8], strides = [1, 1, 1]} : vector<10x10x8xbf16> to vector<8x8x8xbf16>
    %23 = vector.shape_cast %22 : vector<8x8x8xbf16> to vector<64x8xbf16>
    %24 = vector.extract_strided_slice %18 {offsets = [0, 2, 0], sizes = [8, 8, 8], strides = [1, 1, 1]} : vector<10x10x8xbf16> to vector<8x8x8xbf16>
    %25 = vector.shape_cast %24 : vector<8x8x8xbf16> to vector<64x8xbf16>
    %26 = vector.extract_strided_slice %18 {offsets = [1, 0, 0], sizes = [8, 8, 8], strides = [1, 1, 1]} : vector<10x10x8xbf16> to vector<8x8x8xbf16>
    %27 = vector.shape_cast %26 : vector<8x8x8xbf16> to vector<64x8xbf16>
    %28 = vector.extract_strided_slice %18 {offsets = [1, 1, 0], sizes = [8, 8, 8], strides = [1, 1, 1]} : vector<10x10x8xbf16> to vector<8x8x8xbf16>
    %29 = vector.shape_cast %28 : vector<8x8x8xbf16> to vector<64x8xbf16>
    %30 = vector.extract_strided_slice %18 {offsets = [1, 2, 0], sizes = [8, 8, 8], strides = [1, 1, 1]} : vector<10x10x8xbf16> to vector<8x8x8xbf16>
    %31 = vector.shape_cast %30 : vector<8x8x8xbf16> to vector<64x8xbf16>
    %32 = vector.extract_strided_slice %18 {offsets = [2, 0, 0], sizes = [8, 8, 8], strides = [1, 1, 1]} : vector<10x10x8xbf16> to vector<8x8x8xbf16>
    %33 = vector.shape_cast %32 : vector<8x8x8xbf16> to vector<64x8xbf16>
    %34 = vector.extract_strided_slice %18 {offsets = [2, 1, 0], sizes = [8, 8, 8], strides = [1, 1, 1]} : vector<10x10x8xbf16> to vector<8x8x8xbf16>
    %35 = vector.shape_cast %34 : vector<8x8x8xbf16> to vector<64x8xbf16>
    %36 = vector.extract_strided_slice %18 {offsets = [2, 2, 0], sizes = [8, 8, 8], strides = [1, 1, 1]} : vector<10x10x8xbf16> to vector<8x8x8xbf16>
    %37 = vector.shape_cast %36 : vector<8x8x8xbf16> to vector<64x8xbf16>
    %38 = tpu.concatenate %21, %23, %25, %27, %29, %31, %33, %35, %37 in 1 : vector<64x8xbf16>, vector<64x8xbf16>, vector<64x8xbf16>, vector<64x8xbf16>, vector<64x8xbf16>, vector<64x8xbf16>, vector<64x8xbf16>, vector<64x8xbf16>, vector<64x8xbf16> -> vector<64x72xbf16>
    %cst_8 = arith.constant dense<0.000000e+00> : vector<64x8xf32>
    %39 = tpu.matmul %38, %19, %cst_8 {dimension_numbers = #tpu.dot_dimension_numbers<[1], [0], [0], [1], [0, 0, 1, 1], [], []>} : vector<64x72xbf16>, vector<72x8xbf16>, vector<64x8xf32> -> vector<64x8xf32>
    %40 = vector.shape_cast %39 : vector<64x8xf32> to vector<1x1x64x8xf32>
    %41 = arith.truncf %40 : vector<1x1x64x8xf32> to vector<1x1x64x8xbf16>
    %c0_9 = arith.constant 0 : index
    %c0_10 = arith.constant 0 : index
    %c0_11 = arith.constant 0 : index
    %c0_12 = arith.constant 0 : index
    %42 = vector.load %arg5[%c0_9, %c0_10, %c0_11, %c0_12] : memref<1x1x64x8xbf16, #tpu.memory_space<vmem>>, vector<1x1x64x8xbf16>
    tpu.vector_store %arg5[%c0_9, %c0_10, %c0_11, %c0_12], %41 {strides = array<i32>} : memref<1x1x64x8xbf16, #tpu.memory_space<vmem>>, vector<1x1x64x8xbf16>,
    %cst_13 = arith.constant dense<0.000000e+00> : vector<8xf32>
    %43 = vector.multi_reduction <add>, %39, %cst_13 [0] : vector<64x8xf32> to vector<8xf32>
    %44 = vector.shape_cast %43 : vector<8xf32> to vector<1x8xf32>
    %45 = arith.mulf %39, %39 : vector<64x8xf32>
    %cst_14 = arith.constant dense<0.000000e+00> : vector<8xf32>
    %46 = vector.multi_reduction <add>, %45, %cst_14 [0] : vector<64x8xf32> to vector<8xf32>
    %47 = vector.shape_cast %46 : vector<8xf32> to vector<1x8xf32>
    %48 = tpu.concatenate %44, %47 in 0 : vector<1x8xf32>, vector<1x8xf32> -> vector<2x8xf32>
    %49 = vector.shape_cast %48 : vector<2x8xf32> to vector<1x1x2x8xf32>
    %c0_15 = arith.constant 0 : index
    %c0_16 = arith.constant 0 : index
    %c0_17 = arith.constant 0 : index
    %c0_18 = arith.constant 0 : index
    %50 = vector.load %arg6[%c0_15, %c0_16, %c0_17, %c0_18] : memref<1x1x2x8xf32, #tpu.memory_space<vmem>>, vector<1x1x2x8xf32>
    tpu.vector_store %arg6[%c0_15, %c0_16, %c0_17, %c0_18], %49 {strides = array<i32>} : memref<1x1x2x8xf32, #tpu.memory_space<vmem>>, vector<1x1x2x8xf32>,
    return
  }
  func.func @transform_0(%arg0: i32, %arg1: i32) -> (i32, i32, i32) {
    %c0_i32 = arith.constant 0 : i32
    %c0_i32_0 = arith.constant 0 : i32
    %c0_i32_1 = arith.constant 0 : i32
    return %arg0, %c0_i32, %c0_i32_0 : i32, i32, i32
  }
  func.func @transform_1(%arg0: i32, %arg1: i32) -> (i32, i32) {
    %c0_i32 = arith.constant 0 : i32
    %c0_i32_0 = arith.constant 0 : i32
    %c0_i32_1 = arith.constant 0 : i32
    return %c0_i32, %c0_i32_0 : i32, i32
  }
  func.func @transform_2(%arg0: i32, %arg1: i32) -> (i32, i32) {
    %c0_i32 = arith.constant 0 : i32
    %c0_i32_0 = arith.constant 0 : i32
    %c0_i32_1 = arith.constant 0 : i32
    return %c0_i32, %c0_i32_0 : i32, i32
  }
  func.func @transform_3(%arg0: i32, %arg1: i32) -> (i32, i32, i32, i32) {
    %c0_i32 = arith.constant 0 : i32
    %c0_i32_0 = arith.constant 0 : i32
    %c0_i32_1 = arith.constant 0 : i32
    return %arg0, %arg1, %c0_i32, %c0_i32_0 : i32, i32, i32, i32
  }
  func.func @transform_4(%arg0: i32, %arg1: i32) -> (i32, i32, i32, i32) {
    %c0_i32 = arith.constant 0 : i32
    %c0_i32_0 = arith.constant 0 : i32
    %c0_i32_1 = arith.constant 0 : i32
    return %arg0, %arg1, %c0_i32, %c0_i32_0 : i32, i32, i32, i32
  }
}

module attributes {stable_mosaic.version = 11 : i64} {
  func.func @_bn_relu_kernel(%arg0: i32, %arg1: memref<16x64xbf16, #tpu.memory_space<vmem>>, %arg2: memref<2x64xf32, #tpu.memory_space<vmem>>, %arg3: memref<16x64xf32, #tpu.memory_space<vmem>>) attributes {dimension_semantics = [#tpu.dimension_semantics<parallel>], iteration_bounds = array<i64: 1>, scalar_prefetch = 0 : i64, scratch_operands = 0 : i64, tpu.core_type = #tpu.core_type<tc>, window_params = [{transform_indices = @transform_0, window_bounds = array<i64: 16, 64>}, {pipeline_mode = #tpu.pipeline_mode<synchronous>, transform_indices = @transform_1, window_bounds = array<i64: 2, 64>}, {transform_indices = @transform_2, window_bounds = array<i64: 16, 64>}]} {
    %c0 = arith.constant 0 : index
    %c0_0 = arith.constant 0 : index
    %0 = vector.load %arg1[%c0, %c0_0] : memref<16x64xbf16, #tpu.memory_space<vmem>>, vector<16x64xbf16>
    %1 = arith.extf %0 : vector<16x64xbf16> to vector<16x64xf32>
    %c0_1 = arith.constant 0 : index
    %c0_2 = arith.constant 0 : index
    %2 = vector.load %arg2[%c0_1, %c0_2] : memref<2x64xf32, #tpu.memory_space<vmem>>, vector<2x64xf32>
    %3 = vector.extract_strided_slice %2 {offsets = [0, 0], sizes = [1, 64], strides = [1, 1]} : vector<2x64xf32> to vector<1x64xf32>
    %4 = vector.broadcast %3 : vector<1x64xf32> to vector<16x64xf32>
    %5 = arith.mulf %1, %4 : vector<16x64xf32>
    %6 = vector.extract_strided_slice %2 {offsets = [1, 0], sizes = [1, 64], strides = [1, 1]} : vector<2x64xf32> to vector<1x64xf32>
    %7 = vector.broadcast %6 : vector<1x64xf32> to vector<16x64xf32>
    %8 = arith.addf %5, %7 : vector<16x64xf32>
    %cst = arith.constant 0.000000e+00 : f32
    %9 = vector.broadcast %cst : f32 to vector<16x64xf32>
    %10 = arith.maximumf %8, %9 : vector<16x64xf32>
    %c0_3 = arith.constant 0 : index
    %c0_4 = arith.constant 0 : index
    %11 = vector.load %arg3[%c0_3, %c0_4] : memref<16x64xf32, #tpu.memory_space<vmem>>, vector<16x64xf32>
    tpu.vector_store %arg3[%c0_3, %c0_4], %10 {strides = array<i32>} : memref<16x64xf32, #tpu.memory_space<vmem>>, vector<16x64xf32>,
    return
  }
  func.func @transform_0(%arg0: i32) -> (i32, i32) {
    %c0_i32 = arith.constant 0 : i32
    %c0_i32_0 = arith.constant 0 : i32
    return %arg0, %c0_i32 : i32, i32
  }
  func.func @transform_1(%arg0: i32) -> (i32, i32) {
    %c0_i32 = arith.constant 0 : i32
    %c0_i32_0 = arith.constant 0 : i32
    %c0_i32_1 = arith.constant 0 : i32
    return %c0_i32, %c0_i32_0 : i32, i32
  }
  func.func @transform_2(%arg0: i32) -> (i32, i32) {
    %c0_i32 = arith.constant 0 : i32
    %c0_i32_0 = arith.constant 0 : i32
    return %arg0, %c0_i32 : i32, i32
  }
}

</mosaic_0001>

<llo_original>
// kernel: down_forward.8
$region0: #{down_forward.8}
  #allocation0 [shape = 'u32[]', space=smem, size = 0x4, offset = 0x4, fixed_abs, tag = 'smem constant byte address 0x4 - core index']
  #allocation1 [shape = 'u32[144,128]{1,0:T(1,128)}', space=vmem, size = 0x12000, scoped, tag = 'internal scratch']
  %s0 = inlined_call_operand.vmem [shape: f32[2,2,8], index: 0, kind: input, shape index: {}]
  %s1 = inlined_call_operand.vmem [shape: f32[1,8], index: 1, kind: input, shape index: {}]
  %s2 = inlined_call_operand.vmem [shape: f32[1,8], index: 2, kind: input, shape index: {}]
  %s3 = inlined_call_operand.vmem [shape: f32[2,8], index: 3, kind: output, shape index: {}]
  %s4 = sld [smem:[#allocation0]]
  $region22: #{down_forward.8} parent=0
    _
  %s6 = ssub.s32 1, %s4
  %s7 = scalar_select 0, %s6, %s4
  // Predicated region
  $region2: #{down_forward.8} parent=0 // pred_check
    _
  $region3: #{down_forward.8} parent=0 // pred_check_branch
    %9 = sbr.rel (0) target = $region5
  $region4: #{down_forward.8} parent=0 // pred_region
    _
  $region5: #{down_forward.8} parent=0 // pred_fallthru
    _
  // Predicated region
  $region6: #{down_forward.8} parent=0 // pred_check
    _
  $region7: #{down_forward.8} parent=0 // pred_check_branch
    %11 = sbr.rel (0) target = $region9
  $region8: #{down_forward.8} parent=0 // pred_region
    _
  $region9: #{down_forward.8} parent=0 // pred_fallthru
    _
  // Predicated region
  $region10: #{down_forward.8} parent=0 // pred_check
    _
  $region11: #{down_forward.8} parent=0 // pred_check_branch
    %13 = sbr.rel (0) target = $region13
  $region12: #{down_forward.8} parent=0 // pred_region
    _
  $region13: #{down_forward.8} parent=0 // pred_fallthru
    _
  %v14 = vld [vmem:[%s0] sm:$0x3]
  %v15 = vld [vmem:[%s0 + $0x2] sm:$0x3]
  %vm16 = vcmask 58368
  %v17 = vsel %vm16, %v14, 0.0
  %v18 = vsel %vm16, %v15, 0.0
  %v19 = vadd.f32 %v17, %v18
  %v20 = vmul.f32 %v19, 0.0078125
  %v21 = vmul.f32 %v20, %v20
  %v23 = vrot.slane %v21, 7
  %v25 = vsub.f32 %v20, %v23
  %v26 = vmax.f32 %v25, 0.0
  %v27 = vld [vmem:[%s1] sm:$0x1]
  %v28 = vadd.f32 %v26, 1e-05
  %v29 = vrsqrt.pop %v28
  %v32 = vunpack.c.l.s4 1966171168
  %v33 = vunpack.c.0.s8 %v32
  %v34 = vlaneseq
  %v35 = vshrl.u32 %v34, 7
  %v36 = vsub.s32 %v33, %v35
  %v37 = vrot.slane %v29, %v36
  %v38 = vcombine.high %v37, %v37
  %v40 = vunpack.c.l.s4 1966171168
  %v41 = vunpack.c.0.s8 %v40
  %v42 = vlaneseq
  %v43 = vshrl.u32 %v42, 7
  %v44 = vsub.s32 %v41, %v43
  %v45 = vrot.slane %v38, %v44
  %v47 = vmul.f32 %v27, %v45
  %v48 = vld [vmem:[%s2] sm:$0x1]
  %v49 = vmul.f32 %v20, %v47
  %v50 = vsub.f32 %v48, %v49
  %v52 = vlaneseq
  %v53 = vshrl.u32 %v52, 7
  %v54 = vsub.s32 0, %v53
  %v55 = vrot.slane %v50, %v54
  %vm57 = vcmask 1040384
  %v58 = vsel %vm57, %v47, %v55
  %59 = vst.msk [vmem:[%s3] sm:$0x3] %vm16, %v58
  // Predicated region
  $region14: #{down_forward.8} parent=0 // pred_check
    _
  $region15: #{down_forward.8} parent=0 // pred_check_branch
    %61 = sbr.rel (0) target = $region17
  $region16: #{down_forward.8} parent=0 // pred_region
    _
  $region17: #{down_forward.8} parent=0 // pred_fallthru
    _
  // Predicated region
  $region18: #{down_forward.8} parent=0 // pred_check
    _
  $region19: #{down_forward.8} parent=0 // pred_check_branch
    %63 = sbr.rel (0) target = $region21
  $region20: #{down_forward.8} parent=0 // pred_region
    _
  $region21: #{down_forward.8} parent=0 // pred_fallthru
    _

// kernel: down_forward.7
$region0: #{down_forward.7}
  #allocation0 [shape = 'u32[]', space=smem, size = 0x4, offset = 0x4, fixed_abs, tag = 'smem constant byte address 0x4 - core index']
  #allocation1 [shape = 'u32[144,128]{1,0:T(1,128)}', space=vmem, size = 0x12000, scoped, tag = 'internal scratch']
  %s0 = inlined_call_operand.vmem [shape: bf16[2,64,4], index: 0, kind: input, shape index: {}]
  %s1 = inlined_call_operand.vmem [shape: bf16[36,8], index: 1, kind: input, shape index: {}]
  %s2 = inlined_call_operand.vmem [shape: bf16[2,1,64,8], index: 2, kind: output, shape index: {0}]
  %s3 = inlined_call_operand.vmem [shape: f32[2,1,2,8], index: 3, kind: output, shape index: {1}]
  %4 = xla_tuple %s2, %s3
  %s5 = sld [smem:[#allocation0]]
  $region49: #{down_forward.7} parent=0
    _
  %s7 = ssub.s32 1, %s5
  %s8 = scalar_select 0, %s7, %s5
  loop: start=0, step=1, limit=4
  $region2: #{down_forward.7} parent=0 // loop_pre_header
    _
  $region3: #{down_forward.7} parent=0 // loop_header
    %s10 = sphi 0, %s14
    %p11 = scmp.ge.s32.totalorder %s10, 4
    %s17 = sphi 0, %s29
    %s18 = sphi 0, %s25
    %s19 = sphi 0, %s17
    %s20 = sphi 0, %s18
    %s21 = sphi 0, %s19
    %s22 = sphi 0, %s20
    %s32 = sphi 0, %s34
    %s35 = sphi 0, %s32
    %s36 = sphi 0, %s35
    %s52 = sphi 0, %s36
    %s56 = sphi 0, %s56
    %s58 = sphi 0, %s56
    %s59 = sphi 0, %s58
    %s73 = sphi 0, %s59
    %s81 = sphi 0, %s83
    %s84 = sphi 0, %s81
    %s85 = sphi 0, %s84
    %s101 = sphi 0, %s85
    %s109 = sphi 0, %s111
    %s112 = sphi 0, %s109
    %s113 = sphi 0, %s112
    %s129 = sphi 0, %s113
  $region4: #{down_forward.7} parent=0 // loop_header_branch
    %13 = sbr.rel (%p11) target = $region8
  $region5: #{down_forward.7} parent=0 // loop_body
    %s15 = ssub.s32 %s10, 1
    %s16 = ssub.s32 %s10, 2
    %s23 = sadd.s32 1, %s18
    %p24 = scmp.ge.s32.totalorder %s23, 1
    %s25 = scalar_select %p24, 0, %s23
    %s26 = sadd.s32 1, %s17
    %s27 = scalar_select %p24, %s26, %s17
    %p28 = scmp.ge.s32.totalorder %s27, 2
    %s29 = scalar_select %p28, 0, %s27
    %s30 = ssub.s32 %s17, %s29
    %p31 = scmp.eq.s32.totalorder %s30, 0
    %s33 = sadd.s32 %s32, 1
    %s34 = scalar_select %p31, %s32, %s33
    %p37 = pneg %p31
    %p38 = scmp.eq.s32.totalorder %s10, 1
    %p39 = por %p37, %p38
    %p40 = scmp.ne.s32.totalorder %s32, %s35
    %p41 = scmp.eq.s32.totalorder %s10, 0
    %p42 = por %p40, %p41
    %p43 = scmp.ne.s32.totalorder %s32, %s35
    %p44 = scmp.eq.s32.totalorder %s15, 1
    %p45 = por %p43, %p44
    %p46 = scmp.ne.s32.totalorder %s35, %s36
    %p47 = scmp.eq.s32.totalorder %s15, 0
    %p48 = por %p46, %p47
    %p49 = scmp.ne.s32.totalorder %s35, %s36
    %p50 = scmp.eq.s32.totalorder %s16, 1
    %p51 = por %p49, %p50
    %p53 = scmp.ne.s32.totalorder %s36, %s52
    %p54 = scmp.eq.s32.totalorder %s16, 0
    %p55 = por %p53, %p54
    %s57 = sadd.s32 %s56, 1
    %p60 = scmp.eq.s32.totalorder %s10, 1
    %p61 = scmp.ne.s32.totalorder %s56, %s58
    %p62 = scmp.eq.s32.totalorder %s10, 0
    %p63 = por %p61, %p62
    %p64 = scmp.ne.s32.totalorder %s56, %s58
    %p65 = scmp.eq.s32.totalorder %s15, 1
    %p66 = por %p64, %p65
    %p67 = scmp.ne.s32.totalorder %s58, %s59
    %p68 = scmp.eq.s32.totalorder %s15, 0
    %p69 = por %p67, %p68
    %p70 = scmp.ne.s32.totalorder %s58, %s59
    %p71 = scmp.eq.s32.totalorder %s16, 1
    %p72 = por %p70, %p71
    %p74 = scmp.ne.s32.totalorder %s59, %s73
    %p75 = scmp.eq.s32.totalorder %s16, 0
    %p76 = por %p74, %p75
    %s77 = ssub.s32 %s17, %s29
    %s78 = ssub.s32 %s18, %s25
    %s79 = sor.u32 %s77, %s78
    %p80 = scmp.eq.s32.totalorder %s79, 0
    %s82 = sadd.s32 %s81, 1
    %s83 = scalar_select %p80, %s81, %s82
    %p86 = pneg %p80
    %p87 = scmp.eq.s32.totalorder %s10, 1
    %p88 = por %p86, %p87
    %p89 = scmp.ne.s32.totalorder %s81, %s84
    %p90 = scmp.eq.s32.totalorder %s10, 0
    %p91 = por %p89, %p90
    %p92 = scmp.ne.s32.totalorder %s81, %s84
    %p93 = scmp.eq.s32.totalorder %s15, 1
    %p94 = por %p92, %p93
    %p95 = scmp.ne.s32.totalorder %s84, %s85
    %p96 = scmp.eq.s32.totalorder %s15, 0
    %p97 = por %p95, %p96
    %p98 = scmp.ne.s32.totalorder %s84, %s85
    %p99 = scmp.eq.s32.totalorder %s16, 1
    %p100 = por %p98, %p99
    %p102 = scmp.ne.s32.totalorder %s85, %s101
    %p103 = scmp.eq.s32.totalorder %s16, 0
    %p104 = por %p102, %p103
    %s105 = ssub.s32 %s17, %s29
    %s106 = ssub.s32 %s18, %s25
    %s107 = sor.u32 %s105, %s106
    %p108 = scmp.eq.s32.totalorder %s107, 0
    %s110 = sadd.s32 %s109, 1
    %s111 = scalar_select %p108, %s109, %s110
    %p114 = pneg %p108
    %p115 = scmp.eq.s32.totalorder %s10, 1
    %p116 = por %p114, %p115
    %p117 = scmp.ne.s32.totalorder %s109, %s112
    %p118 = scmp.eq.s32.totalorder %s10, 0
    %p119 = por %p117, %p118
    %p120 = scmp.ne.s32.totalorder %s109, %s112
    %p121 = scmp.eq.s32.totalorder %s15, 1
    %p122 = por %p120, %p121
    %p123 = scmp.ne.s32.totalorder %s112, %s113
    %p124 = scmp.eq.s32.totalorder %s15, 0
    %p125 = por %p123, %p124
    %p126 = scmp.ne.s32.totalorder %s112, %s113
    %p127 = scmp.eq.s32.totalorder %s16, 1
    %p128 = por %p126, %p127
    %p130 = scmp.ne.s32.totalorder %s113, %s129
    %p131 = scmp.eq.s32.totalorder %s16, 0
    %p132 = por %p130, %p131
    %p133 = scmp.le.s32.totalorder 1, %s10
    %p134 = scmp.lt.s32.totalorder %s10, 3
    %p135 = pnand %p133, %p134
    %p136 = pneg %p135
    // Predicated region
    $region9: #{down_forward.7} parent=5 // pred_check
      _
    $region10: #{down_forward.7} parent=5 // pred_check_branch
      %138 = sbr.rel (%p135) target = $region12
    $region11: #{down_forward.7} parent=5 // pred_region
      %s139 = ssub.s32 %s10, 1
      // Predicated region
      $region13: #{down_forward.7} parent=11 // pred_check
        %p140 = pneg %p69
      $region14: #{down_forward.7} parent=11 // pred_check_branch
        %142 = sbr.rel (%p140) target = $region16
      $region15: #{down_forward.7} parent=11 // pred_region
        _
      $region16: #{down_forward.7} parent=11 // pred_fallthru
        _
    $region12: #{down_forward.7} parent=5 // pred_fallthru
      _
    %p143 = scmp.lt.s32.totalorder %s10, 2
    // Predicated region
    $region17: #{down_forward.7} parent=5 // pred_check
      %p144 = pneg %p143
    $region18: #{down_forward.7} parent=5 // pred_check_branch
      %146 = sbr.rel (%p144) target = $region20
    $region19: #{down_forward.7} parent=5 // pred_region
      // Predicated region
      $region21: #{down_forward.7} parent=19 // pred_check
        %p147 = pneg %p42
      $region22: #{down_forward.7} parent=19 // pred_check_branch
        %149 = sbr.rel (%p147) target = $region24
      $region23: #{down_forward.7} parent=19 // pred_region
        %p150 = scmp.lt.s32.totalorder %s17, 1
        %s151 = scalar_select %p150, %s17, 1
        %s152 = smul.addr %s151, 8
        %s153 = smul.addr %s152, 4
        %s154 = scalar_lea.vmem %s0, %s153
      $region24: #{down_forward.7} parent=19 // pred_fallthru
        _
    $region20: #{down_forward.7} parent=5 // pred_fallthru
      _
    %p155 = scmp.le.s32.totalorder 1, %s10
    %p156 = scmp.lt.s32.totalorder %s10, 3
    %p157 = pnand %p155, %p156
    %p158 = pneg %p157
    // Predicated region
    $region25: #{down_forward.7} parent=5 // pred_check
      _
    $region26: #{down_forward.7} parent=5 // pred_check_branch
      %160 = sbr.rel (%p157) target = $region28
    $region27: #{down_forward.7} parent=5 // pred_region
      %s161 = ssub.s32 %s10, 1
      %p162 = scmp.lt.s32.totalorder %s19, 1
      %s163 = scalar_select %p162, %s19, 1
      %s164 = smul.addr %s163, 8
      %s165 = smul.addr %s164, 4
      %s166 = scalar_lea.vmem %s0, %s165
      %p167 = pneg %p48
      %p168 = pneg %p45
      %p169 = pneg %p69
      %p170 = pneg %p66
      %p171 = pneg %p97
      %p172 = pneg %p94
      %p173 = scmp.lt.s32.totalorder %s19, 1
      %s174 = scalar_select %p173, %s19, 1
      %p175 = scmp.lt.s32.totalorder %s20, 0
      %s176 = scalar_select %p175, %s20, 0
      %s177 = smul.addr %s176, 8
      %s178 = smul.addr %s174, 8
      %s179 = sadd.s32 %s177, %s178
      %s180 = smul.addr %s179, 4
      %s181 = scalar_lea.vmem %s2, %s180
      %p182 = pneg %p125
      %p183 = pneg %p122
      %p184 = scmp.lt.s32.totalorder %s19, 1
      %s185 = scalar_select %p184, %s19, 1
      %p186 = scmp.lt.s32.totalorder %s20, 0
      %s187 = scalar_select %p186, %s20, 0
      %s188 = sadd.s32 %s187, %s185
      %s189 = smul.addr %s188, 2
      %s190 = scalar_lea.vmem %s3, %s189
      %p191 = scmp.lt.s32.totalorder %s19, 1
      %s192 = scalar_select %p191, %s19, 1
      %s193 = smul.addr %s192, 8
      %s194 = smul.addr %s193, 4
      %s195 = scalar_lea.vmem %s0, %s194
      %p196 = scmp.lt.s32.totalorder %s19, 1
      %s197 = scalar_select %p196, %s19, 1
      %p198 = scmp.lt.s32.totalorder %s20, 0
      %s199 = scalar_select %p198, %s20, 0
      %s200 = smul.addr %s199, 8
      %s201 = smul.addr %s197, 8
      %s202 = sadd.s32 %s200, %s201
      %s203 = smul.addr %s202, 4
      %s204 = scalar_lea.vmem %s2, %s203
      %p205 = scmp.lt.s32.totalorder %s19, 1
      %s206 = scalar_select %p205, %s19, 1
      %p207 = scmp.lt.s32.totalorder %s20, 0
      %s208 = scalar_select %p207, %s20, 0
      %s209 = sadd.s32 %s208, %s206
      %s210 = smul.addr %s209, 2
      %s211 = scalar_lea.vmem %s3, %s210
      %v213 = vld [vmem:[%s195] sm:$0xf]
      %v214 = vld [vmem:[%s195 + $0x4] sm:$0xf]
      %v215 = vld [vmem:[%s195 + $0x8] sm:$0xf]
      %v216 = vld [vmem:[%s195 + $0xc] sm:$0xf]
      %v217 = vld [vmem:[%s195 + $0x10] sm:$0xf]
      %v218 = vld [vmem:[%s195 + $0x14] sm:$0xf]
      %v219 = vld [vmem:[%s195 + $0x18] sm:$0xf]
      %v220 = vld [vmem:[%s195 + $0x1c] sm:$0xf]
      %v222 = vshrl.u32 0, 16
      %v224 = vrot.slane %v222, 7
      %v225 = vshll.u32 0, 16
      %v227 = vor.u32 %v224, %v225
      %v229 = vshrl.u32 %v213, 16
      %v231 = vrot.slane %v229, 7
      %v232 = vshll.u32 %v213, 16
      %v234 = vor.u32 %v231, %v232
      %v236 = vshrl.u32 %v214, 16
      %v238 = vrot.slane %v236, 7
      %v239 = vshll.u32 %v214, 16
      %v241 = vor.u32 %v238, %v239
      %v243 = vshrl.u32 %v215, 16
      %v245 = vrot.slane %v243, 7
      %v246 = vshll.u32 %v215, 16
      %v248 = vor.u32 %v245, %v246
      %v250 = vshrl.u32 %v216, 16
      %v252 = vrot.slane %v250, 7
      %v253 = vshll.u32 %v216, 16
      %v255 = vor.u32 %v252, %v253
      %v257 = vshrl.u32 %v217, 16
      %v259 = vrot.slane %v257, 7
      %v260 = vshll.u32 %v217, 16
      %v262 = vor.u32 %v259, %v260
      %v264 = vshrl.u32 %v218, 16
      %v266 = vrot.slane %v264, 7
      %v267 = vshll.u32 %v218, 16
      %v269 = vor.u32 %v266, %v267
      %v271 = vshrl.u32 %v219, 16
      %v273 = vrot.slane %v271, 7
      %v274 = vshll.u32 %v219, 16
      %v276 = vor.u32 %v273, %v274
      %v278 = vshrl.u32 %v220, 16
      %v280 = vrot.slane %v278, 7
      %v281 = vshll.u32 %v220, 16
      %v283 = vor.u32 %v280, %v281
      %vm293 = vcmask 1040384
      %vm294 = vsmask.f32 256
      %vm295 = vmand %vm293, %vm294
      %v296 = vsel %vm295, 0, %v227
      %v297 = vsel %vm295, 0, %v234
      %v298 = vsel %vm295, 0, %v241
      %v299 = vsel %vm295, 0, %v248
      %v300 = vsel %vm295, 0, %v255
      %v301 = vsel %vm295, 0, %v262
      %v302 = vsel %vm295, 0, %v269
      %v303 = vsel %vm295, 0, %v276
      %v304 = vsel %vm295, 0, %v283
      %vm305 = vcmask 1044480
      %vm306 = vsmask.f32 4352
      %vm307 = vmand %vm305, %vm306
      %v308 = vsel %vm307, %v296, 0
      %v309 = vsel %vm307, %v297, 0
      %v310 = vsel %vm307, %v298, 0
      %v311 = vsel %vm307, %v299, 0
      %v312 = vsel %vm307, %v300, 0
      %v313 = vsel %vm307, %v301, 0
      %v314 = vsel %vm307, %v302, 0
      %v315 = vsel %vm307, %v303, 0
      %v316 = vsel %vm307, %v304, 0
      %v317 = vld [vmem:[%s1] sm:$0xf]
      %v318 = vld [vmem:[%s1 + $0x4] sm:$0xf]
      %v319 = vld [vmem:[%s1 + $0x8] sm:$0xf]
      %v320 = vld [vmem:[%s1 + $0xc] sm:$0xf]
      %v321 = vld [vmem:[%s1 + $0x10] sm:$0x3]
      %v330 = vunpack.c.l.b16 %v308
      %v331 = vunpack.c.h.b16 %v308
      %v332 = vunpack.c.l.b16 %v309
      %v333 = vunpack.c.h.b16 %v309
      %v334 = vunpack.c.l.b16 %v310
      %v335 = vunpack.c.h.b16 %v310
      %v336 = vunpack.c.l.b16 %v311
      %v337 = vunpack.c.h.b16 %v311
      %v338 = vunpack.c.l.b16 %v312
      %v339 = vunpack.c.h.b16 %v312
      %v340 = vunpack.c.l.b16 %v313
      %v341 = vunpack.c.h.b16 %v313
      %v342 = vunpack.c.l.b16 %v314
      %v343 = vunpack.c.h.b16 %v314
      %v344 = vunpack.c.l.b16 %v315
      %v345 = vunpack.c.h.b16 %v315
      %v346 = vpack.c.b16 %v330, %v330
      %v347 = vpack.c.b16 %v331, %v331
      %v348 = vpack.c.b16 %v332, %v332
      %v349 = vpack.c.b16 %v333, %v333
      %v350 = vpack.c.b16 %v334, %v334
      %v351 = vpack.c.b16 %v335, %v335
      %v352 = vpack.c.b16 %v336, %v336
      %v353 = vpack.c.b16 %v337, %v337
      %v354 = vpack.c.b16 %v338, %v338
      %v355 = vpack.c.b16 %v339, %v339
      %v356 = vpack.c.b16 %v340, %v340
      %v357 = vpack.c.b16 %v341, %v341
      %v358 = vpack.c.b16 %v342, %v342
      %v359 = vpack.c.b16 %v343, %v343
      %v360 = vpack.c.b16 %v344, %v344
      %v361 = vpack.c.b16 %v345, %v345
      %vm362 = vsmask.f32 3328
      %vm363 = vsmask.f32 7440
      %vm364 = vmor %vm362, %vm363
      %v366 = vshrl.u32 %v346, 16
      %v368 = vrot.slane %v366, 4
      %v369 = vshll.u32 %v346, 16
      %v371 = vrot.slane %v369, 5
      %v372 = vor.u32 %v368, %v371
      %v373 = vrot.slane %v372, 4
      %v375 = vshll.u32 %v347, 16
      %v377 = vrot.slane %v375, 5
      %v378 = vsel %vm364, %v373, %v377
      %v380 = vshrl.u32 %v348, 16
      %v382 = vrot.slane %v380, 4
      %v383 = vshll.u32 %v348, 16
      %v385 = vrot.slane %v383, 5
      %v386 = vor.u32 %v382, %v385
      %v387 = vrot.slane %v386, 4
      %v389 = vshll.u32 %v349, 16
      %v391 = vrot.slane %v389, 5
      %v392 = vsel %vm364, %v387, %v391
      %v394 = vshrl.u32 %v350, 16
      %v396 = vrot.slane %v394, 4
      %v397 = vshll.u32 %v350, 16
      %v399 = vrot.slane %v397, 5
      %v400 = vor.u32 %v396, %v399
      %v401 = vrot.slane %v400, 4
      %v403 = vshll.u32 %v351, 16
      %v405 = vrot.slane %v403, 5
      %v406 = vsel %vm364, %v401, %v405
      %v408 = vshrl.u32 %v352, 16
      %v410 = vrot.slane %v408, 4
      %v411 = vshll.u32 %v352, 16
      %v413 = vrot.slane %v411, 5
      %v414 = vor.u32 %v410, %v413
      %v415 = vrot.slane %v414, 4
      %v417 = vshll.u32 %v353, 16
      %v419 = vrot.slane %v417, 5
      %v420 = vsel %vm364, %v415, %v419
      %v422 = vshrl.u32 %v354, 16
      %v424 = vrot.slane %v422, 4
      %v425 = vshll.u32 %v354, 16
      %v427 = vrot.slane %v425, 5
      %v428 = vor.u32 %v424, %v427
      %v429 = vrot.slane %v428, 4
      %v431 = vshll.u32 %v355, 16
      %v433 = vrot.slane %v431, 5
      %v434 = vsel %vm364, %v429, %v433
      %v436 = vshrl.u32 %v356, 16
      %v438 = vrot.slane %v436, 4
      %v439 = vshll.u32 %v356, 16
      %v441 = vrot.slane %v439, 5
      %v442 = vor.u32 %v438, %v441
      %v443 = vrot.slane %v442, 4
      %v445 = vshll.u32 %v357, 16
      %v447 = vrot.slane %v445, 5
      %v448 = vsel %vm364, %v443, %v447
      %v450 = vshrl.u32 %v358, 16
      %v452 = vrot.slane %v450, 4
      %v453 = vshll.u32 %v358, 16
      %v455 = vrot.slane %v453, 5
      %v456 = vor.u32 %v452, %v455
      %v457 = vrot.slane %v456, 4
      %v459 = vshll.u32 %v359, 16
      %v461 = vrot.slane %v459, 5
      %v462 = vsel %vm364, %v457, %v461
      %v464 = vshrl.u32 %v360, 16
      %v466 = vrot.slane %v464, 4
      %v467 = vshll.u32 %v360, 16
      %v469 = vrot.slane %v467, 5
      %v470 = vor.u32 %v466, %v469
      %v471 = vrot.slane %v470, 4
      %v473 = vshll.u32 %v361, 16
      %v475 = vrot.slane %v473, 5
      %v476 = vsel %vm364, %v471, %v475
      %vm477 = vcmask 1042432
      %vm478 = vcmask 1046532
      %vm479 = vmor %vm477, %vm478
      %v480 = vrot.slane %v346, 5
      %v481 = vrot.slane %v480, 4
      %v482 = vrot.slane %v347, 5
      %v483 = vsel %vm479, %v481, %v482
      %v484 = vrot.slane %v348, 5
      %v485 = vrot.slane %v484, 4
      %v486 = vrot.slane %v349, 5
      %v487 = vsel %vm479, %v485, %v486
      %v488 = vrot.slane %v350, 5
      %v489 = vrot.slane %v488, 4
      %v490 = vrot.slane %v351, 5
      %v491 = vsel %vm479, %v489, %v490
      %v492 = vrot.slane %v352, 5
      %v493 = vrot.slane %v492, 4
      %v494 = vrot.slane %v353, 5
      %v495 = vsel %vm479, %v493, %v494
      %v496 = vrot.slane %v354, 5
      %v497 = vrot.slane %v496, 4
      %v498 = vrot.slane %v355, 5
      %v499 = vsel %vm479, %v497, %v498
      %v500 = vrot.slane %v356, 5
      %v501 = vrot.slane %v500, 4
      %v502 = vrot.slane %v357, 5
      %v503 = vsel %vm479, %v501, %v502
      %v504 = vrot.slane %v358, 5
      %v505 = vrot.slane %v504, 4
      %v506 = vrot.slane %v359, 5
      %v507 = vsel %vm479, %v505, %v506
      %v508 = vrot.slane %v360, 5
      %v509 = vrot.slane %v508, 4
      %v510 = vrot.slane %v361, 5
      %v511 = vsel %vm479, %v509, %v510
      %v513 = vunpack.c.l.b16 %v316
      %v514 = vunpack.c.h.b16 %v316
      %v515 = vpack.c.b16 %v513, %v513
      %v516 = vpack.c.b16 %v514, %v514
      %v518 = vshrl.u32 %v515, 16
      %v520 = vrot.slane %v518, 4
      %v521 = vshll.u32 %v515, 16
      %v523 = vrot.slane %v521, 5
      %v524 = vor.u32 %v520, %v523
      %v525 = vrot.slane %v524, 4
      %v527 = vshll.u32 %v516, 16
      %v529 = vrot.slane %v527, 5
      %v530 = vsel %vm364, %v525, %v529
      %v531 = vrot.slane %v515, 5
      %v532 = vrot.slane %v531, 4
      %v533 = vrot.slane %v516, 5
      %v534 = vsel %vm479, %v532, %v533
      %v535 = vpack.c.b16 %v332, %v330
      %v536 = vpack.c.b16 %v336, %v334
      %v537 = vpack.c.b16 %v340, %v338
      %v538 = vpack.c.b16 %v344, %v342
      %v539 = vunpack.c.l.b16 %v378
      %v540 = vunpack.c.l.b16 %v392
      %v541 = vunpack.c.l.b16 %v406
      %v542 = vunpack.c.l.b16 %v420
      %v543 = vunpack.c.l.b16 %v434
      %v544 = vunpack.c.l.b16 %v448
      %v545 = vunpack.c.l.b16 %v462
      %v546 = vunpack.c.l.b16 %v476
      %v547 = vpack.c.b16 %v540, %v539
      %v548 = vpack.c.b16 %v542, %v541
      %v549 = vpack.c.b16 %v544, %v543
      %v550 = vpack.c.b16 %v546, %v545
      %551 = vrot.lane.b32.xlu0 %v547, 4
      %v552 = vpop.permute.xlu0 %551
      %553 = vrot.lane.b32.xlu0 %v548, 4
      %v554 = vpop.permute.xlu0 %553
      %555 = vrot.lane.b32.xlu0 %v549, 4
      %v556 = vpop.permute.xlu0 %555
      %557 = vrot.lane.b32.xlu0 %v550, 4
      %v558 = vpop.permute.xlu0 %557
      %v559 = vunpack.c.l.b16 %v483
      %v560 = vunpack.c.l.b16 %v487
      %v561 = vunpack.c.l.b16 %v491
      %v562 = vunpack.c.l.b16 %v495
      %v563 = vunpack.c.l.b16 %v499
      %v564 = vunpack.c.l.b16 %v503
      %v565 = vunpack.c.l.b16 %v507
      %v566 = vunpack.c.l.b16 %v511
      %v567 = vpack.c.b16 %v560, %v559
      %v568 = vpack.c.b16 %v562, %v561
      %v569 = vpack.c.b16 %v564, %v563
      %v570 = vpack.c.b16 %v566, %v565
      %571 = vrot.lane.b32.xlu0 %v567, 8
      %v572 = vpop.permute.xlu0 %571
      %573 = vrot.lane.b32.xlu0 %v568, 8
      %v574 = vpop.permute.xlu0 %573
      %575 = vrot.lane.b32.xlu0 %v569, 8
      %v576 = vpop.permute.xlu0 %575
      %577 = vrot.lane.b32.xlu0 %v570, 8
      %v578 = vpop.permute.xlu0 %577
      %v579 = vpack.c.b16 %v334, %v332
      %v580 = vpack.c.b16 %v338, %v336
      %v581 = vpack.c.b16 %v342, %v340
      %v582 = vpack.c.b16 %v513, %v344
      %583 = vrot.lane.b32.xlu0 %v579, 12
      %v584 = vpop.permute.xlu0 %583
      %585 = vrot.lane.b32.xlu0 %v580, 12
      %v586 = vpop.permute.xlu0 %585
      %587 = vrot.lane.b32.xlu0 %v581, 12
      %v588 = vpop.permute.xlu0 %587
      %589 = vrot.lane.b32.xlu0 %v582, 12
      %v590 = vpop.permute.xlu0 %589
      %v591 = vunpack.c.l.b16 %v530
      %v592 = vpack.c.b16 %v541, %v540
      %v593 = vpack.c.b16 %v543, %v542
      %v594 = vpack.c.b16 %v545, %v544
      %v595 = vpack.c.b16 %v591, %v546
      %596 = vrot.lane.b32.xlu0 %v592, 16
      %v597 = vpop.permute.xlu0 %596
      %598 = vrot.lane.b32.xlu0 %v593, 16
      %v599 = vpop.permute.xlu0 %598
      %600 = vrot.lane.b32.xlu0 %v594, 16
      %v601 = vpop.permute.xlu0 %600
      %602 = vrot.lane.b32.xlu0 %v595, 16
      %v603 = vpop.permute.xlu0 %602
      %v604 = vunpack.c.l.b16 %v534
      %v605 = vpack.c.b16 %v561, %v560
      %v606 = vpack.c.b16 %v563, %v562
      %v607 = vpack.c.b16 %v565, %v564
      %v608 = vpack.c.b16 %v604, %v566
      %609 = vrot.lane.b32.xlu0 %v605, 20
      %v610 = vpop.permute.xlu0 %609
      %611 = vrot.lane.b32.xlu0 %v606, 20
      %v612 = vpop.permute.xlu0 %611
      %613 = vrot.lane.b32.xlu0 %v607, 20
      %v614 = vpop.permute.xlu0 %613
      %615 = vrot.lane.b32.xlu0 %v608, 20
      %v616 = vpop.permute.xlu0 %615
      %v617 = vpack.c.b16 %v330, %v513
      %618 = vrot.lane.b32.xlu0 %v536, 24
      %v619 = vpop.permute.xlu0 %618
      %620 = vrot.lane.b32.xlu0 %v537, 24
      %v621 = vpop.permute.xlu0 %620
      %622 = vrot.lane.b32.xlu0 %v538, 24
      %v623 = vpop.permute.xlu0 %622
      %624 = vrot.lane.b32.xlu0 %v617, 24
      %v625 = vpop.permute.xlu0 %624
      %v626 = vpack.c.b16 %v539, %v591
      %627 = vrot.lane.b32.xlu0 %v548, 28
      %v628 = vpop.permute.xlu0 %627
      %629 = vrot.lane.b32.xlu0 %v549, 28
      %v630 = vpop.permute.xlu0 %629
      %631 = vrot.lane.b32.xlu0 %v550, 28
      %v632 = vpop.permute.xlu0 %631
      %633 = vrot.lane.b32.xlu0 %v626, 28
      %v634 = vpop.permute.xlu0 %633
      %v635 = vpack.c.b16 %v559, %v604
      %636 = vrot.lane.b32.xlu0 %v568, 32
      %v637 = vpop.permute.xlu0 %636
      %638 = vrot.lane.b32.xlu0 %v569, 32
      %v639 = vpop.permute.xlu0 %638
      %640 = vrot.lane.b32.xlu0 %v570, 32
      %v641 = vpop.permute.xlu0 %640
      %642 = vrot.lane.b32.xlu0 %v635, 32
      %v643 = vpop.permute.xlu0 %642
      %vm644 = vcmask 31744
      %v647 = vsel %vm644, %v535, %v552
      %v650 = vsel %vm644, %v536, %v554
      %v653 = vsel %vm644, %v537, %v556
      %v656 = vsel %vm644, %v538, %v558
      %vm657 = vcmask 64512
      %v659 = vsel %vm657, %v647, %v572
      %v661 = vsel %vm657, %v650, %v574
      %v663 = vsel %vm657, %v653, %v576
      %v665 = vsel %vm657, %v656, %v578
      %vm666 = vcmask 97280
      %v668 = vsel %vm666, %v659, %v584
      %v670 = vsel %vm666, %v661, %v586
      %v672 = vsel %vm666, %v663, %v588
      %v674 = vsel %vm666, %v665, %v590
      %vm675 = vcmask 130048
      %v677 = vsel %vm675, %v668, %v597
      %v679 = vsel %vm675, %v670, %v599
      %v681 = vsel %vm675, %v672, %v601
      %v683 = vsel %vm675, %v674, %v603
      %vm684 = vcmask 162816
      %v686 = vsel %vm684, %v677, %v610
      %v688 = vsel %vm684, %v679, %v612
      %v690 = vsel %vm684, %v681, %v614
      %v692 = vsel %vm684, %v683, %v616
      %vm693 = vcmask 195584
      %v695 = vsel %vm693, %v686, %v619
      %v697 = vsel %vm693, %v688, %v621
      %v699 = vsel %vm693, %v690, %v623
      %v701 = vsel %vm693, %v692, %v625
      %vm702 = vcmask 228352
      %v704 = vsel %vm702, %v695, %v628
      %v706 = vsel %vm702, %v697, %v630
      %v708 = vsel %vm702, %v699, %v632
      %v710 = vsel %vm702, %v701, %v634
      %vm711 = vcmask 261120
      %v713 = vsel %vm711, %v704, %v637
      %v715 = vsel %vm711, %v706, %v639
      %v717 = vsel %vm711, %v708, %v641
      %v719 = vsel %vm711, %v710, %v643
      %v725 = vunpack.c.l.b16 %v317
      %v726 = vunpack.c.l.b16 %v318
      %v727 = vunpack.c.l.b16 %v319
      %v728 = vunpack.c.l.b16 %v320
      %v729 = vunpack.c.l.b16 %v321
      %v730 = vpack.c.b16 %v726, %v725
      %v731 = vpack.c.b16 %v728, %v727
      %v732 = vpack.c.b16 %v729, %v729
      %vm735 = vcmask 293888
      %v736 = vsel %vm735, %v713, 0
      %v738 = vsel %vm735, %v715, 0
      %v740 = vsel %vm735, %v717, 0
      %v742 = vsel %vm735, %v719, 0
      %vm744 = vcmask 1041408
      %v746 = vsel %vm744, %v732, 0
      %748 = vmatprep.subr.bf16.mxu0 0
      %749 = vmatpush1.bf16.msra.mxu0 %v730
      %750 = vmatprep.subr.bf16.mxu0 0
      %751 = vmatpush1.bf16.msra.mxu0 %v731
      %752 = vmatprep.subr.bf16.mxu0 0
      %753 = vmatpush1.bf16.msra.mxu0 %v746
      %754 = vmatprep.subr.bf16.mxu0 0
      %755 = vmatpush1.bf16.msra.mxu0 0
      %756 = vmatprep.subr.bf16.mxu0 0
      %757 = vmatpush1.bf16.msra.mxu0 0
      %758 = vmatprep.subr.bf16.mxu0 0
      %759 = vmatpush1.bf16.msra.mxu0 0
      %760 = vmatprep.subr.bf16.mxu0 0
      %761 = vmatpush1.bf16.msra.mxu0 0
      %762 = vmatprep.subr.bf16.mxu0 0
      %763 = vmatpush1.bf16.msra.mxu0 0
      %764 = vmatprep.subr.bf16.mxu0 0
      %765 = vmatpush1.bf16.msra.mxu0 0
      %766 = vmatprep.subr.bf16.mxu0 0
      %767 = vmatpush1.bf16.msra.mxu0 0
      %768 = vmatprep.subr.bf16.mxu0 0
      %769 = vmatpush1.bf16.msra.mxu0 0
      %770 = vmatprep.subr.bf16.mxu0 0
      %771 = vmatpush1.bf16.msra.mxu0 0
      %772 = vmatprep.subr.bf16.mxu0 0
      %773 = vmatpush1.bf16.msra.mxu0 0
      %774 = vmatprep.subr.bf16.mxu0 0
      %775 = vmatpush1.bf16.msra.mxu0 0
      %776 = vmatprep.subr.bf16.mxu0 0
      %777 = vmatpush1.bf16.msra.mxu0 0
      %778 = vmatprep.subr.bf16.mxu0 0
      %779 = vmatpush1.bf16.msra.mxu0 0
      %780 = vmatprep.mubr.bf16.mxu0 0
      %781 = vmatmul.mubr.bf16.gmra.mrb[0].mxu0 %v736
      %v782 = vpop.f32.mrb[0].mxu0
      %v783 = vadd.f32 0.0, %v782
      %v784 = vpop.f32.mrb[0].mxu0
      %v785 = vpop.f32.mrb[0].mxu0
      %v786 = vadd.f32 0.0, %v785
      %v787 = vpop.f32.mrb[0].mxu0
      %788 = vmatprep.mubr.bf16.mxu0 0
      %789 = vmatmul.mubr.bf16.gmra.mrb[0].mxu0 %v738
      %v790 = vpop.f32.mrb[0].mxu0
      %v791 = vadd.f32 0.0, %v790
      %v792 = vpop.f32.mrb[0].mxu0
      %v793 = vpop.f32.mrb[0].mxu0
      %v794 = vadd.f32 0.0, %v793
      %v795 = vpop.f32.mrb[0].mxu0
      %796 = vmatprep.mubr.bf16.mxu0 0
      %797 = vmatmul.mubr.bf16.gmra.mrb[0].mxu0 %v740
      %v798 = vpop.f32.mrb[0].mxu0
      %v799 = vadd.f32 0.0, %v798
      %v800 = vpop.f32.mrb[0].mxu0
      %v801 = vpop.f32.mrb[0].mxu0
      %v802 = vadd.f32 0.0, %v801
      %v803 = vpop.f32.mrb[0].mxu0
      %804 = vmatprep.mubr.bf16.mxu0 0
      %805 = vmatmul.mubr.bf16.gmra.mrb[0].mxu0 %v742
      %v806 = vpop.f32.mrb[0].mxu0
      %v807 = vadd.f32 0.0, %v806
      %v808 = vpop.f32.mrb[0].mxu0
      %v809 = vpop.f32.mrb[0].mxu0
      %v810 = vadd.f32 0.0, %v809
      %v811 = vpop.f32.mrb[0].mxu0
      %812 = vdwg.mxu0
      %v813 = vpack.c.bf16 %v786, %v783
      %v814 = vpack.c.bf16 %v794, %v791
      %v815 = vpack.c.bf16 %v802, %v799
      %v816 = vpack.c.bf16 %v810, %v807
      %v821 = vunpack.c.l.b16 %v813
      %v822 = vunpack.c.h.b16 %v813
      %v823 = vunpack.c.l.b16 %v814
      %v824 = vunpack.c.h.b16 %v814
      %v825 = vunpack.c.l.b16 %v815
      %v826 = vunpack.c.h.b16 %v815
      %v827 = vunpack.c.l.b16 %v816
      %v828 = vunpack.c.h.b16 %v816
      %v829 = vpack.c.b16 %v821, %v821
      %v830 = vpack.c.b16 %v822, %v822
      %v831 = vpack.c.b16 %v823, %v823
      %v832 = vpack.c.b16 %v824, %v824
      %v833 = vpack.c.b16 %v825, %v825
      %v834 = vpack.c.b16 %v826, %v826
      %v835 = vpack.c.b16 %v827, %v827
      %v836 = vpack.c.b16 %v828, %v828
      %vm845 = vcmask 60416
      %846 = vst.msk [vmem:[%s204] sm:$0xf] %vm845, %v829
      %847 = vst.msk [vmem:[%s204 + $0x4] sm:$0xf] %vm845, %v830
      %848 = vst.msk [vmem:[%s204 + $0x8] sm:$0xf] %vm845, %v831
      %849 = vst.msk [vmem:[%s204 + $0xc] sm:$0xf] %vm845, %v832
      %850 = vst.msk [vmem:[%s204 + $0x10] sm:$0xf] %vm845, %v833
      %851 = vst.msk [vmem:[%s204 + $0x14] sm:$0xf] %vm845, %v834
      %852 = vst.msk [vmem:[%s204 + $0x18] sm:$0xf] %vm845, %v835
      %853 = vst.msk [vmem:[%s204 + $0x1c] sm:$0xf] %vm845, %v836
      %v854 = vsel %vm657, %v783, 0.0
      %v855 = vsel %vm657, %v786, 0.0
      %v856 = vadd.f32 %v854, %v855
      %v857 = vsel %vm657, %v791, 0.0
      %v858 = vadd.f32 %v856, %v857
      %v859 = vsel %vm657, %v794, 0.0
      %v860 = vadd.f32 %v858, %v859
      %v861 = vsel %vm657, %v799, 0.0
      %v862 = vadd.f32 %v860, %v861
      %v863 = vsel %vm657, %v802, 0.0
      %v864 = vadd.f32 %v862, %v863
      %v865 = vsel %vm657, %v807, 0.0
      %v866 = vadd.f32 %v864, %v865
      %v867 = vsel %vm657, %v810, 0.0
      %v868 = vadd.f32 %v866, %v867
      %v869 = vrot.slane %v868, 4
      %v870 = vadd.f32 %v868, %v869
      %v871 = vrot.slane %v870, 2
      %v872 = vadd.f32 %v870, %v871
      %v873 = vrot.slane %v872, 1
      %v874 = vadd.f32 %v872, %v873
      %v875 = vmul.f32 %v783, %v783
      %v876 = vmul.f32 %v786, %v786
      %v877 = vmul.f32 %v791, %v791
      %v878 = vmul.f32 %v794, %v794
      %v879 = vmul.f32 %v799, %v799
      %v880 = vmul.f32 %v802, %v802
      %v881 = vmul.f32 %v807, %v807
      %v882 = vmul.f32 %v810, %v810
      %v883 = vsel %vm657, %v875, 0.0
      %v884 = vsel %vm657, %v876, 0.0
      %v885 = vadd.f32 %v883, %v884
      %v886 = vsel %vm657, %v877, 0.0
      %v887 = vadd.f32 %v885, %v886
      %v888 = vsel %vm657, %v878, 0.0
      %v889 = vadd.f32 %v887, %v888
      %v890 = vsel %vm657, %v879, 0.0
      %v891 = vadd.f32 %v889, %v890
      %v892 = vsel %vm657, %v880, 0.0
      %v893 = vadd.f32 %v891, %v892
      %v894 = vsel %vm657, %v881, 0.0
      %v895 = vadd.f32 %v893, %v894
      %v896 = vsel %vm657, %v882, 0.0
      %v897 = vadd.f32 %v895, %v896
      %v898 = vrot.slane %v897, 4
      %v899 = vadd.f32 %v897, %v898
      %v900 = vrot.slane %v899, 2
      %v901 = vadd.f32 %v899, %v900
      %v902 = vrot.slane %v901, 1
      %v903 = vadd.f32 %v901, %v902
      %vm904 = vcmask 1040384
      %v905 = vsel %vm904, %v874, %v903
      %vm906 = vcmask 58368
      %907 = vst.msk [vmem:[%s211] sm:$0x3] %vm906, %v905
      %p908 = scmp.lt.s32.totalorder %s19, 1
      %s909 = scalar_select %p908, %s19, 1
      %p910 = scmp.lt.s32.totalorder %s20, 0
      %s911 = scalar_select %p910, %s20, 0
      %s912 = smul.addr %s911, 8
      %s913 = smul.addr %s909, 8
      %s914 = sadd.s32 %s912, %s913
      %s915 = smul.addr %s914, 4
      %s916 = scalar_lea.vmem %s2, %s915
      %p917 = scmp.lt.s32.totalorder %s19, 1
      %s918 = scalar_select %p917, %s19, 1
      %p919 = scmp.lt.s32.totalorder %s20, 0
      %s920 = scalar_select %p919, %s20, 0
      %s921 = sadd.s32 %s920, %s918
      %s922 = smul.addr %s921, 2
      %s923 = scalar_lea.vmem %s3, %s922
      // Predicated region
      $region29: #{down_forward.7} parent=27 // pred_check
        %p924 = pneg %p94
      $region30: #{down_forward.7} parent=27 // pred_check_branch
        %926 = sbr.rel (%p924) target = $region32
      $region31: #{down_forward.7} parent=27 // pred_region
        _
      $region32: #{down_forward.7} parent=27 // pred_fallthru
        _
      // Predicated region
      $region33: #{down_forward.7} parent=27 // pred_check
        %p927 = pneg %p122
      $region34: #{down_forward.7} parent=27 // pred_check_branch
        %929 = sbr.rel (%p927) target = $region36
      $region35: #{down_forward.7} parent=27 // pred_region
        _
      $region36: #{down_forward.7} parent=27 // pred_fallthru
        _
    $region28: #{down_forward.7} parent=5 // pred_fallthru
      _
    %p930 = scmp.le.s32.totalorder 2, %s10
    // Predicated region
    $region37: #{down_forward.7} parent=5 // pred_check
      %p931 = pneg %p930
    $region38: #{down_forward.7} parent=5 // pred_check_branch
      %933 = sbr.rel (%p931) target = $region40
    $region39: #{down_forward.7} parent=5 // pred_region
      %s934 = ssub.s32 %s10, 2
      // Predicated region
      $region41: #{down_forward.7} parent=39 // pred_check
        %p935 = pneg %p100
      $region42: #{down_forward.7} parent=39 // pred_check_branch
        %937 = sbr.rel (%p935) target = $region44
      $region43: #{down_forward.7} parent=39 // pred_region
        %p938 = scmp.lt.s32.totalorder %s21, 1
        %s939 = scalar_select %p938, %s21, 1
        %p940 = scmp.lt.s32.totalorder %s22, 0
        %s941 = scalar_select %p940, %s22, 0
        %s942 = smul.addr %s941, 8
        %s943 = smul.addr %s939, 8
        %s944 = sadd.s32 %s942, %s943
        %s945 = smul.addr %s944, 4
        %s946 = scalar_lea.vmem %s2, %s945
      $region44: #{down_forward.7} parent=39 // pred_fallthru
        _
      // Predicated region
      $region45: #{down_forward.7} parent=39 // pred_check
        %p947 = pneg %p128
      $region46: #{down_forward.7} parent=39 // pred_check_branch
        %949 = sbr.rel (%p947) target = $region48
      $region47: #{down_forward.7} parent=39 // pred_region
        %p950 = scmp.lt.s32.totalorder %s21, 1
        %s951 = scalar_select %p950, %s21, 1
        %p952 = scmp.lt.s32.totalorder %s22, 0
        %s953 = scalar_select %p952, %s22, 0
        %s954 = sadd.s32 %s953, %s951
        %s955 = smul.addr %s954, 2
        %s956 = scalar_lea.vmem %s3, %s955
      $region48: #{down_forward.7} parent=39 // pred_fallthru
        _
    $region40: #{down_forward.7} parent=5 // pred_fallthru
      _
  $region6: #{down_forward.7} parent=0 // loop_footer
    %s14 = sadd.s32 1, %s10
  $region7: #{down_forward.7} parent=0 // loop_footer_branch
    %9 = sbr.rel target = $region3
  $region8: #{down_forward.7} parent=0 // loop_exit
    _

// kernel: tile.9
$region0: #{tile.9}
  %s0 = inlined_call_operand.vmem [shape: f32[2,8,8], index: 0, kind: input, shape index: {}]
  %s1 = inlined_call_operand.vmem [shape: f32[2,64], index: 1, kind: output, shape index: {}]
  $region1: #{tile.9} parent=0
    #allocation0 [shape = 'u8[4096]{0}', space=vmem, size = 0x1000, scoped, tag = 'scoped mem for output reshape']
    %s2 = smov 3
    %v3 = vld [vmem:[%s0] ss:$8 sm:%s2]
    %vm4 = vcmask 64512
    %5 = vst.msk [vmem:[#allocation0] sm:$0x3] %vm4, %v3
    %s6 = scalar_lea.vmem %s0, 7
    %s7 = smov 3
    %v8 = vld [vmem:[%s6] ss:$8 sm:%s7]
    %9 = vrot.lane.b32.xlu0 %v8, 56
    %v10 = vpop.permute.xlu0 %9
    %vm11 = vcmask 523712
    %12 = vst.msk [vmem:[#allocation0] sm:$0x3] %vm11, %v10
    %s13 = scalar_lea.vmem %s0, 6
    %s14 = smov 3
    %v15 = vld [vmem:[%s13] ss:$8 sm:%s14]
    %16 = vrot.lane.b32.xlu0 %v15, 48
    %v17 = vpop.permute.xlu0 %16
    %vm18 = vcmask 458112
    %19 = vst.msk [vmem:[#allocation0] sm:$0x3] %vm18, %v17
    %s20 = scalar_lea.vmem %s0, 5
    %s21 = smov 3
    %v22 = vld [vmem:[%s20] ss:$8 sm:%s21]
    %23 = vrot.lane.b32.xlu0 %v22, 40
    %v24 = vpop.permute.xlu0 %23
    %vm25 = vcmask 392512
    %26 = vst.msk [vmem:[#allocation0] sm:$0x3] %vm25, %v24
    %s27 = scalar_lea.vmem %s0, 4
    %s28 = smov 3
    %v29 = vld [vmem:[%s27] ss:$8 sm:%s28]
    %30 = vrot.lane.b32.xlu0 %v29, 32
    %v31 = vpop.permute.xlu0 %30
    %vm32 = vcmask 326912
    %33 = vst.msk [vmem:[#allocation0] sm:$0x3] %vm32, %v31
    %s34 = scalar_lea.vmem %s0, 3
    %s35 = smov 3
    %v36 = vld [vmem:[%s34] ss:$8 sm:%s35]
    %37 = vrot.lane.b32.xlu0 %v36, 24
    %v38 = vpop.permute.xlu0 %37
    %vm39 = vcmask 261312
    %40 = vst.msk [vmem:[#allocation0] sm:$0x3] %vm39, %v38
    %s41 = scalar_lea.vmem %s0, 2
    %s42 = smov 3
    %v43 = vld [vmem:[%s41] ss:$8 sm:%s42]
    %44 = vrot.lane.b32.xlu0 %v43, 16
    %v45 = vpop.permute.xlu0 %44
    %vm46 = vcmask 195712
    %47 = vst.msk [vmem:[#allocation0] sm:$0x3] %vm46, %v45
    %s48 = scalar_lea.vmem %s0, 1
    %s49 = smov 3
    %v50 = vld [vmem:[%s48] ss:$8 sm:%s49]
    %51 = vrot.lane.b32.xlu0 %v50, 8
    %v52 = vpop.permute.xlu0 %51
    %vm53 = vcmask 130112
    %54 = vst.msk [vmem:[#allocation0] sm:$0x3] %vm53, %v52
    %s56 = sshllo.u32 0, 2
    %v58 = vld [vmem:[#allocation0] sm:%s56]
    %s59 = sshllo.u32 0, 2
    %60 = vst [vmem:[%s1] sm:%s59] %v58

// kernel: down_forward.9
$region0: #{down_forward.9}
  #allocation0 [shape = 'u32[]', space=smem, size = 0x4, offset = 0x4, fixed_abs, tag = 'smem constant byte address 0x4 - core index']
  #allocation1 [shape = 'u32[144,128]{1,0:T(1,128)}', space=vmem, size = 0x12000, scoped, tag = 'internal scratch']
  %s0 = inlined_call_operand.vmem [shape: bf16[2,64,8], index: 0, kind: input, shape index: {}]
  %s1 = inlined_call_operand.vmem [shape: f32[2,8], index: 1, kind: input, shape index: {}]
  %s2 = inlined_call_operand.vmem [shape: bf16[72,8], index: 2, kind: input, shape index: {}]
  %s3 = inlined_call_operand.vmem [shape: bf16[2,1,64,8], index: 3, kind: output, shape index: {0}]
  %s4 = inlined_call_operand.vmem [shape: f32[2,1,2,8], index: 4, kind: output, shape index: {1}]
  %5 = xla_tuple %s3, %s4
  %s6 = sld [smem:[#allocation0]]
  $region53: #{down_forward.9} parent=0
    _
  %s8 = ssub.s32 1, %s6
  %s9 = scalar_select 0, %s8, %s6
  loop: start=0, step=1, limit=4
  $region2: #{down_forward.9} parent=0 // loop_pre_header
    _
  $region3: #{down_forward.9} parent=0 // loop_header
    %s11 = sphi 0, %s15
    %p12 = scmp.ge.s32.totalorder %s11, 4
    %s18 = sphi 0, %s30
    %s19 = sphi 0, %s26
    %s20 = sphi 0, %s18
    %s21 = sphi 0, %s19
    %s22 = sphi 0, %s20
    %s23 = sphi 0, %s21
    %s33 = sphi 0, %s35
    %s36 = sphi 0, %s33
    %s37 = sphi 0, %s36
    %s53 = sphi 0, %s37
    %s57 = sphi 0, %s57
    %s59 = sphi 0, %s57
    %s60 = sphi 0, %s59
    %s74 = sphi 0, %s60
    %s78 = sphi 0, %s78
    %s80 = sphi 0, %s78
    %s81 = sphi 0, %s80
    %s95 = sphi 0, %s81
    %s103 = sphi 0, %s105
    %s106 = sphi 0, %s103
    %s107 = sphi 0, %s106
    %s123 = sphi 0, %s107
    %s131 = sphi 0, %s133
    %s134 = sphi 0, %s131
    %s135 = sphi 0, %s134
    %s151 = sphi 0, %s135
  $region4: #{down_forward.9} parent=0 // loop_header_branch
    %14 = sbr.rel (%p12) target = $region8
  $region5: #{down_forward.9} parent=0 // loop_body
    %s16 = ssub.s32 %s11, 1
    %s17 = ssub.s32 %s11, 2
    %s24 = sadd.s32 1, %s19
    %p25 = scmp.ge.s32.totalorder %s24, 1
    %s26 = scalar_select %p25, 0, %s24
    %s27 = sadd.s32 1, %s18
    %s28 = scalar_select %p25, %s27, %s18
    %p29 = scmp.ge.s32.totalorder %s28, 2
    %s30 = scalar_select %p29, 0, %s28
    %s31 = ssub.s32 %s18, %s30
    %p32 = scmp.eq.s32.totalorder %s31, 0
    %s34 = sadd.s32 %s33, 1
    %s35 = scalar_select %p32, %s33, %s34
    %p38 = pneg %p32
    %p39 = scmp.eq.s32.totalorder %s11, 1
    %p40 = por %p38, %p39
    %p41 = scmp.ne.s32.totalorder %s33, %s36
    %p42 = scmp.eq.s32.totalorder %s11, 0
    %p43 = por %p41, %p42
    %p44 = scmp.ne.s32.totalorder %s33, %s36
    %p45 = scmp.eq.s32.totalorder %s16, 1
    %p46 = por %p44, %p45
    %p47 = scmp.ne.s32.totalorder %s36, %s37
    %p48 = scmp.eq.s32.totalorder %s16, 0
    %p49 = por %p47, %p48
    %p50 = scmp.ne.s32.totalorder %s36, %s37
    %p51 = scmp.eq.s32.totalorder %s17, 1
    %p52 = por %p50, %p51
    %p54 = scmp.ne.s32.totalorder %s37, %s53
    %p55 = scmp.eq.s32.totalorder %s17, 0
    %p56 = por %p54, %p55
    %s58 = sadd.s32 %s57, 1
    %p61 = scmp.eq.s32.totalorder %s11, 1
    %p62 = scmp.ne.s32.totalorder %s57, %s59
    %p63 = scmp.eq.s32.totalorder %s11, 0
    %p64 = por %p62, %p63
    %p65 = scmp.ne.s32.totalorder %s57, %s59
    %p66 = scmp.eq.s32.totalorder %s16, 1
    %p67 = por %p65, %p66
    %p68 = scmp.ne.s32.totalorder %s59, %s60
    %p69 = scmp.eq.s32.totalorder %s16, 0
    %p70 = por %p68, %p69
    %p71 = scmp.ne.s32.totalorder %s59, %s60
    %p72 = scmp.eq.s32.totalorder %s17, 1
    %p73 = por %p71, %p72
    %p75 = scmp.ne.s32.totalorder %s60, %s74
    %p76 = scmp.eq.s32.totalorder %s17, 0
    %p77 = por %p75, %p76
    %s79 = sadd.s32 %s78, 1
    %p82 = scmp.eq.s32.totalorder %s11, 1
    %p83 = scmp.ne.s32.totalorder %s78, %s80
    %p84 = scmp.eq.s32.totalorder %s11, 0
    %p85 = por %p83, %p84
    %p86 = scmp.ne.s32.totalorder %s78, %s80
    %p87 = scmp.eq.s32.totalorder %s16, 1
    %p88 = por %p86, %p87
    %p89 = scmp.ne.s32.totalorder %s80, %s81
    %p90 = scmp.eq.s32.totalorder %s16, 0
    %p91 = por %p89, %p90
    %p92 = scmp.ne.s32.totalorder %s80, %s81
    %p93 = scmp.eq.s32.totalorder %s17, 1
    %p94 = por %p92, %p93
    %p96 = scmp.ne.s32.totalorder %s81, %s95
    %p97 = scmp.eq.s32.totalorder %s17, 0
    %p98 = por %p96, %p97
    %s99 = ssub.s32 %s18, %s30
    %s100 = ssub.s32 %s19, %s26
    %s101 = sor.u32 %s99, %s100
    %p102 = scmp.eq.s32.totalorder %s101, 0
    %s104 = sadd.s32 %s103, 1
    %s105 = scalar_select %p102, %s103, %s104
    %p108 = pneg %p102
    %p109 = scmp.eq.s32.totalorder %s11, 1
    %p110 = por %p108, %p109
    %p111 = scmp.ne.s32.totalorder %s103, %s106
    %p112 = scmp.eq.s32.totalorder %s11, 0
    %p113 = por %p111, %p112
    %p114 = scmp.ne.s32.totalorder %s103, %s106
    %p115 = scmp.eq.s32.totalorder %s16, 1
    %p116 = por %p114, %p115
    %p117 = scmp.ne.s32.totalorder %s106, %s107
    %p118 = scmp.eq.s32.totalorder %s16, 0
    %p119 = por %p117, %p118
    %p120 = scmp.ne.s32.totalorder %s106, %s107
    %p121 = scmp.eq.s32.totalorder %s17, 1
    %p122 = por %p120, %p121
    %p124 = scmp.ne.s32.totalorder %s107, %s123
    %p125 = scmp.eq.s32.totalorder %s17, 0
    %p126 = por %p124, %p125
    %s127 = ssub.s32 %s18, %s30
    %s128 = ssub.s32 %s19, %s26
    %s129 = sor.u32 %s127, %s128
    %p130 = scmp.eq.s32.totalorder %s129, 0
    %s132 = sadd.s32 %s131, 1
    %s133 = scalar_select %p130, %s131, %s132
    %p136 = pneg %p130
    %p137 = scmp.eq.s32.totalorder %s11, 1
    %p138 = por %p136, %p137
    %p139 = scmp.ne.s32.totalorder %s131, %s134
    %p140 = scmp.eq.s32.totalorder %s11, 0
    %p141 = por %p139, %p140
    %p142 = scmp.ne.s32.totalorder %s131, %s134
    %p143 = scmp.eq.s32.totalorder %s16, 1
    %p144 = por %p142, %p143
    %p145 = scmp.ne.s32.totalorder %s134, %s135
    %p146 = scmp.eq.s32.totalorder %s16, 0
    %p147 = por %p145, %p146
    %p148 = scmp.ne.s32.totalorder %s134, %s135
    %p149 = scmp.eq.s32.totalorder %s17, 1
    %p150 = por %p148, %p149
    %p152 = scmp.ne.s32.totalorder %s135, %s151
    %p153 = scmp.eq.s32.totalorder %s17, 0
    %p154 = por %p152, %p153
    %p155 = scmp.le.s32.totalorder 1, %s11
    %p156 = scmp.lt.s32.totalorder %s11, 3
    %p157 = pnand %p155, %p156
    %p158 = pneg %p157
    // Predicated region
    $region9: #{down_forward.9} parent=5 // pred_check
      _
    $region10: #{down_forward.9} parent=5 // pred_check_branch
      %160 = sbr.rel (%p157) target = $region12
    $region11: #{down_forward.9} parent=5 // pred_region
      %s161 = ssub.s32 %s11, 1
      // Predicated region
      $region13: #{down_forward.9} parent=11 // pred_check
        %p162 = pneg %p70
      $region14: #{down_forward.9} parent=11 // pred_check_branch
        %164 = sbr.rel (%p162) target = $region16
      $region15: #{down_forward.9} parent=11 // pred_region
        _
      $region16: #{down_forward.9} parent=11 // pred_fallthru
        _
      // Predicated region
      $region17: #{down_forward.9} parent=11 // pred_check
        %p165 = pneg %p91
      $region18: #{down_forward.9} parent=11 // pred_check_branch
        %167 = sbr.rel (%p165) target = $region20
      $region19: #{down_forward.9} parent=11 // pred_region
        _
      $region20: #{down_forward.9} parent=11 // pred_fallthru
        _
    $region12: #{down_forward.9} parent=5 // pred_fallthru
      _
    %p168 = scmp.lt.s32.totalorder %s11, 2
    // Predicated region
    $region21: #{down_forward.9} parent=5 // pred_check
      %p169 = pneg %p168
    $region22: #{down_forward.9} parent=5 // pred_check_branch
      %171 = sbr.rel (%p169) target = $region24
    $region23: #{down_forward.9} parent=5 // pred_region
      // Predicated region
      $region25: #{down_forward.9} parent=23 // pred_check
        %p172 = pneg %p43
      $region26: #{down_forward.9} parent=23 // pred_check_branch
        %174 = sbr.rel (%p172) target = $region28
      $region27: #{down_forward.9} parent=23 // pred_region
        %p175 = scmp.lt.s32.totalorder %s18, 1
        %s176 = scalar_select %p175, %s18, 1
        %s177 = smul.addr %s176, 8
        %s178 = smul.addr %s177, 4
        %s179 = scalar_lea.vmem %s0, %s178
      $region28: #{down_forward.9} parent=23 // pred_fallthru
        _
    $region24: #{down_forward.9} parent=5 // pred_fallthru
      _
    %p180 = scmp.le.s32.totalorder 1, %s11
    %p181 = scmp.lt.s32.totalorder %s11, 3
    %p182 = pnand %p180, %p181
    %p183 = pneg %p182
    // Predicated region
    $region29: #{down_forward.9} parent=5 // pred_check
      _
    $region30: #{down_forward.9} parent=5 // pred_check_branch
      %185 = sbr.rel (%p182) target = $region32
    $region31: #{down_forward.9} parent=5 // pred_region
      %s186 = ssub.s32 %s11, 1
      %p187 = scmp.lt.s32.totalorder %s20, 1
      %s188 = scalar_select %p187, %s20, 1
      %s189 = smul.addr %s188, 8
      %s190 = smul.addr %s189, 4
      %s191 = scalar_lea.vmem %s0, %s190
      %p192 = pneg %p49
      %p193 = pneg %p46
      %p194 = pneg %p70
      %p195 = pneg %p67
      %p196 = pneg %p91
      %p197 = pneg %p88
      %p198 = pneg %p119
      %p199 = pneg %p116
      %p200 = scmp.lt.s32.totalorder %s20, 1
      %s201 = scalar_select %p200, %s20, 1
      %p202 = scmp.lt.s32.totalorder %s21, 0
      %s203 = scalar_select %p202, %s21, 0
      %s204 = smul.addr %s203, 8
      %s205 = smul.addr %s201, 8
      %s206 = sadd.s32 %s204, %s205
      %s207 = smul.addr %s206, 4
      %s208 = scalar_lea.vmem %s3, %s207
      %p209 = pneg %p147
      %p210 = pneg %p144
      %p211 = scmp.lt.s32.totalorder %s20, 1
      %s212 = scalar_select %p211, %s20, 1
      %p213 = scmp.lt.s32.totalorder %s21, 0
      %s214 = scalar_select %p213, %s21, 0
      %s215 = sadd.s32 %s214, %s212
      %s216 = smul.addr %s215, 2
      %s217 = scalar_lea.vmem %s4, %s216
      %p218 = scmp.lt.s32.totalorder %s20, 1
      %s219 = scalar_select %p218, %s20, 1
      %s220 = smul.addr %s219, 8
      %s221 = smul.addr %s220, 4
      %s222 = scalar_lea.vmem %s0, %s221
      %p223 = scmp.lt.s32.totalorder %s20, 1
      %s224 = scalar_select %p223, %s20, 1
      %p225 = scmp.lt.s32.totalorder %s21, 0
      %s226 = scalar_select %p225, %s21, 0
      %s227 = smul.addr %s226, 8
      %s228 = smul.addr %s224, 8
      %s229 = sadd.s32 %s227, %s228
      %s230 = smul.addr %s229, 4
      %s231 = scalar_lea.vmem %s3, %s230
      %p232 = scmp.lt.s32.totalorder %s20, 1
      %s233 = scalar_select %p232, %s20, 1
      %p234 = scmp.lt.s32.totalorder %s21, 0
      %s235 = scalar_select %p234, %s21, 0
      %s236 = sadd.s32 %s235, %s233
      %s237 = smul.addr %s236, 2
      %s238 = scalar_lea.vmem %s4, %s237
      %v240 = vld [vmem:[%s222] sm:$0xf]
      %v241 = vld [vmem:[%s222 + $0x4] sm:$0xf]
      %v242 = vld [vmem:[%s222 + $0x8] sm:$0xf]
      %v243 = vld [vmem:[%s222 + $0xc] sm:$0xf]
      %v244 = vld [vmem:[%s222 + $0x10] sm:$0xf]
      %v245 = vld [vmem:[%s222 + $0x14] sm:$0xf]
      %v246 = vld [vmem:[%s222 + $0x18] sm:$0xf]
      %v247 = vld [vmem:[%s222 + $0x1c] sm:$0xf]
      %v248 = vld [vmem:[%s1] sm:$0x3]
      %v249 = vunpack.c.l.bf16 %v240
      %v250 = vunpack.c.l.bf16 %v241
      %v251 = vunpack.c.l.bf16 %v242
      %v252 = vunpack.c.l.bf16 %v243
      %v253 = vunpack.c.l.bf16 %v244
      %v254 = vunpack.c.l.bf16 %v245
      %v255 = vunpack.c.l.bf16 %v246
      %v256 = vunpack.c.l.bf16 %v247
      %v257 = vlaneseq
      %v258 = vshrl.u32 %v257, 7
      %v259 = vsub.s32 0, %v258
      %v260 = vrot.slane %v248, %v259
      %v261 = vmul.f32 %v249, %v260
      %v262 = vmul.f32 %v250, %v260
      %v263 = vmul.f32 %v251, %v260
      %v264 = vmul.f32 %v252, %v260
      %v265 = vmul.f32 %v253, %v260
      %v266 = vmul.f32 %v254, %v260
      %v267 = vmul.f32 %v255, %v260
      %v268 = vmul.f32 %v256, %v260
      %v269 = vlaneseq
      %v270 = vshrl.u32 %v269, 7
      %v271 = vsub.s32 1, %v270
      %v272 = vrot.slane %v248, %v271
      %v273 = vadd.f32 %v261, %v272
      %v274 = vadd.f32 %v262, %v272
      %v275 = vadd.f32 %v263, %v272
      %v276 = vadd.f32 %v264, %v272
      %v277 = vadd.f32 %v265, %v272
      %v278 = vadd.f32 %v266, %v272
      %v279 = vadd.f32 %v267, %v272
      %v280 = vadd.f32 %v268, %v272
      %v281 = vmax.f32 %v273, 0.0
      %v282 = vmax.f32 %v274, 0.0
      %v283 = vmax.f32 %v275, 0.0
      %v284 = vmax.f32 %v276, 0.0
      %v285 = vmax.f32 %v277, 0.0
      %v286 = vmax.f32 %v278, 0.0
      %v287 = vmax.f32 %v279, 0.0
      %v288 = vmax.f32 %v280, 0.0
      %v289 = vpack.c.bf16 %v281, %v281
      %v290 = vpack.c.bf16 %v282, %v282
      %v291 = vpack.c.bf16 %v283, %v283
      %v292 = vpack.c.bf16 %v284, %v284
      %v293 = vpack.c.bf16 %v285, %v285
      %v294 = vpack.c.bf16 %v286, %v286
      %v295 = vpack.c.bf16 %v287, %v287
      %v296 = vpack.c.bf16 %v288, %v288
      %v298 = vshrl.u32 0, 16
      %v300 = vrot.slane %v298, 7
      %v301 = vshll.u32 0, 16
      %v303 = vor.u32 %v300, %v301
      %v305 = vshrl.u32 %v289, 16
      %v307 = vrot.slane %v305, 7
      %v308 = vshll.u32 %v289, 16
      %v310 = vor.u32 %v307, %v308
      %v312 = vshrl.u32 %v290, 16
      %v314 = vrot.slane %v312, 7
      %v315 = vshll.u32 %v290, 16
      %v317 = vor.u32 %v314, %v315
      %v319 = vshrl.u32 %v291, 16
      %v321 = vrot.slane %v319, 7
      %v322 = vshll.u32 %v291, 16
      %v324 = vor.u32 %v321, %v322
      %v326 = vshrl.u32 %v292, 16
      %v328 = vrot.slane %v326, 7
      %v329 = vshll.u32 %v292, 16
      %v331 = vor.u32 %v328, %v329
      %v333 = vshrl.u32 %v293, 16
      %v335 = vrot.slane %v333, 7
      %v336 = vshll.u32 %v293, 16
      %v338 = vor.u32 %v335, %v336
      %v340 = vshrl.u32 %v294, 16
      %v342 = vrot.slane %v340, 7
      %v343 = vshll.u32 %v294, 16
      %v345 = vor.u32 %v342, %v343
      %v347 = vshrl.u32 %v295, 16
      %v349 = vrot.slane %v347, 7
      %v350 = vshll.u32 %v295, 16
      %v352 = vor.u32 %v349, %v350
      %v354 = vshrl.u32 %v296, 16
      %v356 = vrot.slane %v354, 7
      %v357 = vshll.u32 %v296, 16
      %v359 = vor.u32 %v356, %v357
      %vm369 = vcmask 1040384
      %vm370 = vsmask.f32 256
      %vm371 = vmand %vm369, %vm370
      %v372 = vsel %vm371, 0, %v303
      %v373 = vsel %vm371, 0, %v310
      %v374 = vsel %vm371, 0, %v317
      %v375 = vsel %vm371, 0, %v324
      %v376 = vsel %vm371, 0, %v331
      %v377 = vsel %vm371, 0, %v338
      %v378 = vsel %vm371, 0, %v345
      %v379 = vsel %vm371, 0, %v352
      %v380 = vsel %vm371, 0, %v359
      %vm381 = vcmask 1044480
      %vm382 = vsmask.f32 4352
      %vm383 = vmand %vm381, %vm382
      %v384 = vsel %vm383, %v372, 0
      %v385 = vsel %vm383, %v373, 0
      %v386 = vsel %vm383, %v374, 0
      %v387 = vsel %vm383, %v375, 0
      %v388 = vsel %vm383, %v376, 0
      %v389 = vsel %vm383, %v377, 0
      %v390 = vsel %vm383, %v378, 0
      %v391 = vsel %vm383, %v379, 0
      %v392 = vsel %vm383, %v380, 0
      %v393 = vld [vmem:[%s2] sm:$0xf]
      %v394 = vld [vmem:[%s2 + $0x4] sm:$0xf]
      %v395 = vld [vmem:[%s2 + $0x8] sm:$0xf]
      %v396 = vld [vmem:[%s2 + $0xc] sm:$0xf]
      %v397 = vld [vmem:[%s2 + $0x10] sm:$0xf]
      %v398 = vld [vmem:[%s2 + $0x14] sm:$0xf]
      %v399 = vld [vmem:[%s2 + $0x18] sm:$0xf]
      %v400 = vld [vmem:[%s2 + $0x1c] sm:$0xf]
      %v401 = vld [vmem:[%s2 + $0x20] sm:$0xf]
      %v410 = vunpack.c.l.b16 %v384
      %v411 = vunpack.c.h.b16 %v384
      %v412 = vunpack.c.l.b16 %v385
      %v413 = vunpack.c.h.b16 %v385
      %v414 = vunpack.c.l.b16 %v386
      %v415 = vunpack.c.h.b16 %v386
      %v416 = vunpack.c.l.b16 %v387
      %v417 = vunpack.c.h.b16 %v387
      %v418 = vunpack.c.l.b16 %v388
      %v419 = vunpack.c.h.b16 %v388
      %v420 = vunpack.c.l.b16 %v389
      %v421 = vunpack.c.h.b16 %v389
      %v422 = vunpack.c.l.b16 %v390
      %v423 = vunpack.c.h.b16 %v390
      %v424 = vunpack.c.l.b16 %v391
      %v425 = vunpack.c.h.b16 %v391
      %v426 = vpack.c.b16 %v410, %v410
      %v427 = vpack.c.b16 %v411, %v411
      %v428 = vpack.c.b16 %v412, %v412
      %v429 = vpack.c.b16 %v413, %v413
      %v430 = vpack.c.b16 %v414, %v414
      %v431 = vpack.c.b16 %v415, %v415
      %v432 = vpack.c.b16 %v416, %v416
      %v433 = vpack.c.b16 %v417, %v417
      %v434 = vpack.c.b16 %v418, %v418
      %v435 = vpack.c.b16 %v419, %v419
      %v436 = vpack.c.b16 %v420, %v420
      %v437 = vpack.c.b16 %v421, %v421
      %v438 = vpack.c.b16 %v422, %v422
      %v439 = vpack.c.b16 %v423, %v423
      %v440 = vpack.c.b16 %v424, %v424
      %v441 = vpack.c.b16 %v425, %v425
      %vm442 = vsmask.f32 3328
      %vm443 = vsmask.f32 7440
      %vm444 = vmor %vm442, %vm443
      %v446 = vshrl.u32 %v426, 16
      %v448 = vrot.slane %v446, 4
      %v449 = vshll.u32 %v426, 16
      %v451 = vrot.slane %v449, 5
      %v452 = vor.u32 %v448, %v451
      %v453 = vrot.slane %v452, 4
      %v455 = vshll.u32 %v427, 16
      %v457 = vrot.slane %v455, 5
      %v458 = vsel %vm444, %v453, %v457
      %v460 = vshrl.u32 %v428, 16
      %v462 = vrot.slane %v460, 4
      %v463 = vshll.u32 %v428, 16
      %v465 = vrot.slane %v463, 5
      %v466 = vor.u32 %v462, %v465
      %v467 = vrot.slane %v466, 4
      %v469 = vshll.u32 %v429, 16
      %v471 = vrot.slane %v469, 5
      %v472 = vsel %vm444, %v467, %v471
      %v474 = vshrl.u32 %v430, 16
      %v476 = vrot.slane %v474, 4
      %v477 = vshll.u32 %v430, 16
      %v479 = vrot.slane %v477, 5
      %v480 = vor.u32 %v476, %v479
      %v481 = vrot.slane %v480, 4
      %v483 = vshll.u32 %v431, 16
      %v485 = vrot.slane %v483, 5
      %v486 = vsel %vm444, %v481, %v485
      %v488 = vshrl.u32 %v432, 16
      %v490 = vrot.slane %v488, 4
      %v491 = vshll.u32 %v432, 16
      %v493 = vrot.slane %v491, 5
      %v494 = vor.u32 %v490, %v493
      %v495 = vrot.slane %v494, 4
      %v497 = vshll.u32 %v433, 16
      %v499 = vrot.slane %v497, 5
      %v500 = vsel %vm444, %v495, %v499
      %v502 = vshrl.u32 %v434, 16
      %v504 = vrot.slane %v502, 4
      %v505 = vshll.u32 %v434, 16
      %v507 = vrot.slane %v505, 5
      %v508 = vor.u32 %v504, %v507
      %v509 = vrot.slane %v508, 4
      %v511 = vshll.u32 %v435, 16
      %v513 = vrot.slane %v511, 5
      %v514 = vsel %vm444, %v509, %v513
      %v516 = vshrl.u32 %v436, 16
      %v518 = vrot.slane %v516, 4
      %v519 = vshll.u32 %v436, 16
      %v521 = vrot.slane %v519, 5
      %v522 = vor.u32 %v518, %v521
      %v523 = vrot.slane %v522, 4
      %v525 = vshll.u32 %v437, 16
      %v527 = vrot.slane %v525, 5
      %v528 = vsel %vm444, %v523, %v527
      %v530 = vshrl.u32 %v438, 16
      %v532 = vrot.slane %v530, 4
      %v533 = vshll.u32 %v438, 16
      %v535 = vrot.slane %v533, 5
      %v536 = vor.u32 %v532, %v535
      %v537 = vrot.slane %v536, 4
      %v539 = vshll.u32 %v439, 16
      %v541 = vrot.slane %v539, 5
      %v542 = vsel %vm444, %v537, %v541
      %v544 = vshrl.u32 %v440, 16
      %v546 = vrot.slane %v544, 4
      %v547 = vshll.u32 %v440, 16
      %v549 = vrot.slane %v547, 5
      %v550 = vor.u32 %v546, %v549
      %v551 = vrot.slane %v550, 4
      %v553 = vshll.u32 %v441, 16
      %v555 = vrot.slane %v553, 5
      %v556 = vsel %vm444, %v551, %v555
      %vm557 = vcmask 1042432
      %vm558 = vcmask 1046532
      %vm559 = vmor %vm557, %vm558
      %v560 = vrot.slane %v426, 5
      %v561 = vrot.slane %v560, 4
      %v562 = vrot.slane %v427, 5
      %v563 = vsel %vm559, %v561, %v562
      %v564 = vrot.slane %v428, 5
      %v565 = vrot.slane %v564, 4
      %v566 = vrot.slane %v429, 5
      %v567 = vsel %vm559, %v565, %v566
      %v568 = vrot.slane %v430, 5
      %v569 = vrot.slane %v568, 4
      %v570 = vrot.slane %v431, 5
      %v571 = vsel %vm559, %v569, %v570
      %v572 = vrot.slane %v432, 5
      %v573 = vrot.slane %v572, 4
      %v574 = vrot.slane %v433, 5
      %v575 = vsel %vm559, %v573, %v574
      %v576 = vrot.slane %v434, 5
      %v577 = vrot.slane %v576, 4
      %v578 = vrot.slane %v435, 5
      %v579 = vsel %vm559, %v577, %v578
      %v580 = vrot.slane %v436, 5
      %v581 = vrot.slane %v580, 4
      %v582 = vrot.slane %v437, 5
      %v583 = vsel %vm559, %v581, %v582
      %v584 = vrot.slane %v438, 5
      %v585 = vrot.slane %v584, 4
      %v586 = vrot.slane %v439, 5
      %v587 = vsel %vm559, %v585, %v586
      %v588 = vrot.slane %v440, 5
      %v589 = vrot.slane %v588, 4
      %v590 = vrot.slane %v441, 5
      %v591 = vsel %vm559, %v589, %v590
      %v593 = vunpack.c.l.b16 %v392
      %v594 = vunpack.c.h.b16 %v392
      %v595 = vpack.c.b16 %v593, %v593
      %v596 = vpack.c.b16 %v594, %v594
      %v598 = vshrl.u32 %v595, 16
      %v600 = vrot.slane %v598, 4
      %v601 = vshll.u32 %v595, 16
      %v603 = vrot.slane %v601, 5
      %v604 = vor.u32 %v600, %v603
      %v605 = vrot.slane %v604, 4
      %v607 = vshll.u32 %v596, 16
      %v609 = vrot.slane %v607, 5
      %v610 = vsel %vm444, %v605, %v609
      %v611 = vrot.slane %v595, 5
      %v612 = vrot.slane %v611, 4
      %v613 = vrot.slane %v596, 5
      %v614 = vsel %vm559, %v612, %v613
      %v615 = vpack.c.b16 %v412, %v410
      %v616 = vpack.c.b16 %v416, %v414
      %v617 = vpack.c.b16 %v420, %v418
      %v618 = vpack.c.b16 %v424, %v422
      %v619 = vunpack.c.l.b16 %v458
      %v620 = vunpack.c.l.b16 %v472
      %v621 = vunpack.c.l.b16 %v486
      %v622 = vunpack.c.l.b16 %v500
      %v623 = vunpack.c.l.b16 %v514
      %v624 = vunpack.c.l.b16 %v528
      %v625 = vunpack.c.l.b16 %v542
      %v626 = vunpack.c.l.b16 %v556
      %v627 = vpack.c.b16 %v620, %v619
      %v628 = vpack.c.b16 %v622, %v621
      %v629 = vpack.c.b16 %v624, %v623
      %v630 = vpack.c.b16 %v626, %v625
      %631 = vrot.lane.b32.xlu0 %v627, 8
      %v632 = vpop.permute.xlu0 %631
      %633 = vrot.lane.b32.xlu0 %v628, 8
      %v634 = vpop.permute.xlu0 %633
      %635 = vrot.lane.b32.xlu0 %v629, 8
      %v636 = vpop.permute.xlu0 %635
      %637 = vrot.lane.b32.xlu0 %v630, 8
      %v638 = vpop.permute.xlu0 %637
      %v639 = vunpack.c.l.b16 %v563
      %v640 = vunpack.c.l.b16 %v567
      %v641 = vunpack.c.l.b16 %v571
      %v642 = vunpack.c.l.b16 %v575
      %v643 = vunpack.c.l.b16 %v579
      %v644 = vunpack.c.l.b16 %v583
      %v645 = vunpack.c.l.b16 %v587
      %v646 = vunpack.c.l.b16 %v591
      %v647 = vpack.c.b16 %v640, %v639
      %v648 = vpack.c.b16 %v642, %v641
      %v649 = vpack.c.b16 %v644, %v643
      %v650 = vpack.c.b16 %v646, %v645
      %651 = vrot.lane.b32.xlu0 %v647, 16
      %v652 = vpop.permute.xlu0 %651
      %653 = vrot.lane.b32.xlu0 %v648, 16
      %v654 = vpop.permute.xlu0 %653
      %655 = vrot.lane.b32.xlu0 %v649, 16
      %v656 = vpop.permute.xlu0 %655
      %657 = vrot.lane.b32.xlu0 %v650, 16
      %v658 = vpop.permute.xlu0 %657
      %v659 = vpack.c.b16 %v414, %v412
      %v660 = vpack.c.b16 %v418, %v416
      %v661 = vpack.c.b16 %v422, %v420
      %v662 = vpack.c.b16 %v593, %v424
      %663 = vrot.lane.b32.xlu0 %v659, 24
      %v664 = vpop.permute.xlu0 %663
      %665 = vrot.lane.b32.xlu0 %v660, 24
      %v666 = vpop.permute.xlu0 %665
      %667 = vrot.lane.b32.xlu0 %v661, 24
      %v668 = vpop.permute.xlu0 %667
      %669 = vrot.lane.b32.xlu0 %v662, 24
      %v670 = vpop.permute.xlu0 %669
      %v671 = vunpack.c.l.b16 %v610
      %v672 = vpack.c.b16 %v621, %v620
      %v673 = vpack.c.b16 %v623, %v622
      %v674 = vpack.c.b16 %v625, %v624
      %v675 = vpack.c.b16 %v671, %v626
      %676 = vrot.lane.b32.xlu0 %v672, 32
      %v677 = vpop.permute.xlu0 %676
      %678 = vrot.lane.b32.xlu0 %v673, 32
      %v679 = vpop.permute.xlu0 %678
      %680 = vrot.lane.b32.xlu0 %v674, 32
      %v681 = vpop.permute.xlu0 %680
      %682 = vrot.lane.b32.xlu0 %v675, 32
      %v683 = vpop.permute.xlu0 %682
      %v684 = vunpack.c.l.b16 %v614
      %v685 = vpack.c.b16 %v641, %v640
      %v686 = vpack.c.b16 %v643, %v642
      %v687 = vpack.c.b16 %v645, %v644
      %v688 = vpack.c.b16 %v684, %v646
      %689 = vrot.lane.b32.xlu0 %v685, 40
      %v690 = vpop.permute.xlu0 %689
      %691 = vrot.lane.b32.xlu0 %v686, 40
      %v692 = vpop.permute.xlu0 %691
      %693 = vrot.lane.b32.xlu0 %v687, 40
      %v694 = vpop.permute.xlu0 %693
      %695 = vrot.lane.b32.xlu0 %v688, 40
      %v696 = vpop.permute.xlu0 %695
      %v697 = vpack.c.b16 %v410, %v593
      %698 = vrot.lane.b32.xlu0 %v616, 48
      %v699 = vpop.permute.xlu0 %698
      %700 = vrot.lane.b32.xlu0 %v617, 48
      %v701 = vpop.permute.xlu0 %700
      %702 = vrot.lane.b32.xlu0 %v618, 48
      %v703 = vpop.permute.xlu0 %702
      %704 = vrot.lane.b32.xlu0 %v697, 48
      %v705 = vpop.permute.xlu0 %704
      %v706 = vpack.c.b16 %v619, %v671
      %707 = vrot.lane.b32.xlu0 %v628, 56
      %v708 = vpop.permute.xlu0 %707
      %709 = vrot.lane.b32.xlu0 %v629, 56
      %v710 = vpop.permute.xlu0 %709
      %711 = vrot.lane.b32.xlu0 %v630, 56
      %v712 = vpop.permute.xlu0 %711
      %713 = vrot.lane.b32.xlu0 %v706, 56
      %v714 = vpop.permute.xlu0 %713
      %v715 = vpack.c.b16 %v639, %v684
      %716 = vrot.lane.b32.xlu0 %v648, 64
      %v717 = vpop.permute.xlu0 %716
      %718 = vrot.lane.b32.xlu0 %v649, 64
      %v719 = vpop.permute.xlu0 %718
      %720 = vrot.lane.b32.xlu0 %v650, 64
      %v721 = vpop.permute.xlu0 %720
      %722 = vrot.lane.b32.xlu0 %v715, 64
      %v723 = vpop.permute.xlu0 %722
      %vm724 = vcmask 64512
      %v727 = vsel %vm724, %v615, %v632
      %v730 = vsel %vm724, %v616, %v634
      %v733 = vsel %vm724, %v617, %v636
      %v736 = vsel %vm724, %v618, %v638
      %vm737 = vcmask 130048
      %v739 = vsel %vm737, %v727, %v652
      %v741 = vsel %vm737, %v730, %v654
      %v743 = vsel %vm737, %v733, %v656
      %v745 = vsel %vm737, %v736, %v658
      %vm746 = vcmask 195584
      %v748 = vsel %vm746, %v739, %v664
      %v750 = vsel %vm746, %v741, %v666
      %v752 = vsel %vm746, %v743, %v668
      %v754 = vsel %vm746, %v745, %v670
      %vm755 = vcmask 261120
      %v757 = vsel %vm755, %v748, %v677
      %v759 = vsel %vm755, %v750, %v679
      %v761 = vsel %vm755, %v752, %v681
      %v763 = vsel %vm755, %v754, %v683
      %vm764 = vcmask 326656
      %v766 = vsel %vm764, %v757, %v690
      %v768 = vsel %vm764, %v759, %v692
      %v770 = vsel %vm764, %v761, %v694
      %v772 = vsel %vm764, %v763, %v696
      %vm773 = vcmask 392192
      %v775 = vsel %vm773, %v766, %v699
      %v777 = vsel %vm773, %v768, %v701
      %v779 = vsel %vm773, %v770, %v703
      %v781 = vsel %vm773, %v772, %v705
      %vm782 = vcmask 457728
      %v784 = vsel %vm782, %v775, %v708
      %v786 = vsel %vm782, %v777, %v710
      %v788 = vsel %vm782, %v779, %v712
      %v790 = vsel %vm782, %v781, %v714
      %vm791 = vcmask 523264
      %v793 = vsel %vm791, %v784, %v717
      %v795 = vsel %vm791, %v786, %v719
      %v797 = vsel %vm791, %v788, %v721
      %v799 = vsel %vm791, %v790, %v723
      %v809 = vunpack.c.l.b16 %v393
      %v810 = vunpack.c.l.b16 %v394
      %v811 = vunpack.c.l.b16 %v395
      %v812 = vunpack.c.l.b16 %v396
      %v813 = vunpack.c.l.b16 %v397
      %v814 = vunpack.c.l.b16 %v398
      %v815 = vunpack.c.l.b16 %v399
      %v816 = vunpack.c.l.b16 %v400
      %v817 = vunpack.c.l.b16 %v401
      %v818 = vpack.c.b16 %v810, %v809
      %v819 = vpack.c.b16 %v812, %v811
      %v820 = vpack.c.b16 %v814, %v813
      %v821 = vpack.c.b16 %v816, %v815
      %v822 = vpack.c.b16 %v817, %v817
      %vm827 = vcmask 588800
      %v828 = vsel %vm827, %v793, 0
      %v830 = vsel %vm827, %v795, 0
      %v832 = vsel %vm827, %v797, 0
      %v834 = vsel %vm827, %v799, 0
      %vm836 = vcmask 1043456
      %v838 = vsel %vm836, %v822, 0
      %840 = vmatprep.subr.bf16.mxu0 0
      %841 = vmatpush1.bf16.msra.mxu0 %v818
      %842 = vmatprep.subr.bf16.mxu0 0
      %843 = vmatpush1.bf16.msra.mxu0 %v819
      %844 = vmatprep.subr.bf16.mxu0 0
      %845 = vmatpush1.bf16.msra.mxu0 %v820
      %846 = vmatprep.subr.bf16.mxu0 0
      %847 = vmatpush1.bf16.msra.mxu0 %v821
      %848 = vmatprep.subr.bf16.mxu0 0
      %849 = vmatpush1.bf16.msra.mxu0 %v838
      %850 = vmatprep.subr.bf16.mxu0 0
      %851 = vmatpush1.bf16.msra.mxu0 0
      %852 = vmatprep.subr.bf16.mxu0 0
      %853 = vmatpush1.bf16.msra.mxu0 0
      %854 = vmatprep.subr.bf16.mxu0 0
      %855 = vmatpush1.bf16.msra.mxu0 0
      %856 = vmatprep.subr.bf16.mxu0 0
      %857 = vmatpush1.bf16.msra.mxu0 0
      %858 = vmatprep.subr.bf16.mxu0 0
      %859 = vmatpush1.bf16.msra.mxu0 0
      %860 = vmatprep.subr.bf16.mxu0 0
      %861 = vmatpush1.bf16.msra.mxu0 0
      %862 = vmatprep.subr.bf16.mxu0 0
      %863 = vmatpush1.bf16.msra.mxu0 0
      %864 = vmatprep.subr.bf16.mxu0 0
      %865 = vmatpush1.bf16.msra.mxu0 0
      %866 = vmatprep.subr.bf16.mxu0 0
      %867 = vmatpush1.bf16.msra.mxu0 0
      %868 = vmatprep.subr.bf16.mxu0 0
      %869 = vmatpush1.bf16.msra.mxu0 0
      %870 = vmatprep.subr.bf16.mxu0 0
      %871 = vmatpush1.bf16.msra.mxu0 0
      %872 = vmatprep.mubr.bf16.mxu0 0
      %873 = vmatmul.mubr.bf16.gmra.mrb[0].mxu0 %v828
      %v874 = vpop.f32.mrb[0].mxu0
      %v875 = vadd.f32 0.0, %v874
      %v876 = vpop.f32.mrb[0].mxu0
      %v877 = vpop.f32.mrb[0].mxu0
      %v878 = vadd.f32 0.0, %v877
      %v879 = vpop.f32.mrb[0].mxu0
      %880 = vmatprep.mubr.bf16.mxu0 0
      %881 = vmatmul.mubr.bf16.gmra.mrb[0].mxu0 %v830
      %v882 = vpop.f32.mrb[0].mxu0
      %v883 = vadd.f32 0.0, %v882
      %v884 = vpop.f32.mrb[0].mxu0
      %v885 = vpop.f32.mrb[0].mxu0
      %v886 = vadd.f32 0.0, %v885
      %v887 = vpop.f32.mrb[0].mxu0
      %888 = vmatprep.mubr.bf16.mxu0 0
      %889 = vmatmul.mubr.bf16.gmra.mrb[0].mxu0 %v832
      %v890 = vpop.f32.mrb[0].mxu0
      %v891 = vadd.f32 0.0, %v890
      %v892 = vpop.f32.mrb[0].mxu0
      %v893 = vpop.f32.mrb[0].mxu0
      %v894 = vadd.f32 0.0, %v893
      %v895 = vpop.f32.mrb[0].mxu0
      %896 = vmatprep.mubr.bf16.mxu0 0
      %897 = vmatmul.mubr.bf16.gmra.mrb[0].mxu0 %v834
      %v898 = vpop.f32.mrb[0].mxu0
      %v899 = vadd.f32 0.0, %v898
      %v900 = vpop.f32.mrb[0].mxu0
      %v901 = vpop.f32.mrb[0].mxu0
      %v902 = vadd.f32 0.0, %v901
      %v903 = vpop.f32.mrb[0].mxu0
      %904 = vdwg.mxu0
      %v905 = vpack.c.bf16 %v878, %v875
      %v906 = vpack.c.bf16 %v886, %v883
      %v907 = vpack.c.bf16 %v894, %v891
      %v908 = vpack.c.bf16 %v902, %v899
      %v913 = vunpack.c.l.b16 %v905
      %v914 = vunpack.c.h.b16 %v905
      %v915 = vunpack.c.l.b16 %v906
      %v916 = vunpack.c.h.b16 %v906
      %v917 = vunpack.c.l.b16 %v907
      %v918 = vunpack.c.h.b16 %v907
      %v919 = vunpack.c.l.b16 %v908
      %v920 = vunpack.c.h.b16 %v908
      %v921 = vpack.c.b16 %v913, %v913
      %v922 = vpack.c.b16 %v914, %v914
      %v923 = vpack.c.b16 %v915, %v915
      %v924 = vpack.c.b16 %v916, %v916
      %v925 = vpack.c.b16 %v917, %v917
      %v926 = vpack.c.b16 %v918, %v918
      %v927 = vpack.c.b16 %v919, %v919
      %v928 = vpack.c.b16 %v920, %v920
      %vm937 = vcmask 60416
      %938 = vst.msk [vmem:[%s231] sm:$0xf] %vm937, %v921
      %939 = vst.msk [vmem:[%s231 + $0x4] sm:$0xf] %vm937, %v922
      %940 = vst.msk [vmem:[%s231 + $0x8] sm:$0xf] %vm937, %v923
      %941 = vst.msk [vmem:[%s231 + $0xc] sm:$0xf] %vm937, %v924
      %942 = vst.msk [vmem:[%s231 + $0x10] sm:$0xf] %vm937, %v925
      %943 = vst.msk [vmem:[%s231 + $0x14] sm:$0xf] %vm937, %v926
      %944 = vst.msk [vmem:[%s231 + $0x18] sm:$0xf] %vm937, %v927
      %945 = vst.msk [vmem:[%s231 + $0x1c] sm:$0xf] %vm937, %v928
      %v946 = vsel %vm724, %v875, 0.0
      %v947 = vsel %vm724, %v878, 0.0
      %v948 = vadd.f32 %v946, %v947
      %v949 = vsel %vm724, %v883, 0.0
      %v950 = vadd.f32 %v948, %v949
      %v951 = vsel %vm724, %v886, 0.0
      %v952 = vadd.f32 %v950, %v951
      %v953 = vsel %vm724, %v891, 0.0
      %v954 = vadd.f32 %v952, %v953
      %v955 = vsel %vm724, %v894, 0.0
      %v956 = vadd.f32 %v954, %v955
      %v957 = vsel %vm724, %v899, 0.0
      %v958 = vadd.f32 %v956, %v957
      %v959 = vsel %vm724, %v902, 0.0
      %v960 = vadd.f32 %v958, %v959
      %v961 = vrot.slane %v960, 4
      %v962 = vadd.f32 %v960, %v961
      %v963 = vrot.slane %v962, 2
      %v964 = vadd.f32 %v962, %v963
      %v965 = vrot.slane %v964, 1
      %v966 = vadd.f32 %v964, %v965
      %v967 = vmul.f32 %v875, %v875
      %v968 = vmul.f32 %v878, %v878
      %v969 = vmul.f32 %v883, %v883
      %v970 = vmul.f32 %v886, %v886
      %v971 = vmul.f32 %v891, %v891
      %v972 = vmul.f32 %v894, %v894
      %v973 = vmul.f32 %v899, %v899
      %v974 = vmul.f32 %v902, %v902
      %v975 = vsel %vm724, %v967, 0.0
      %v976 = vsel %vm724, %v968, 0.0
      %v977 = vadd.f32 %v975, %v976
      %v978 = vsel %vm724, %v969, 0.0
      %v979 = vadd.f32 %v977, %v978
      %v980 = vsel %vm724, %v970, 0.0
      %v981 = vadd.f32 %v979, %v980
      %v982 = vsel %vm724, %v971, 0.0
      %v983 = vadd.f32 %v981, %v982
      %v984 = vsel %vm724, %v972, 0.0
      %v985 = vadd.f32 %v983, %v984
      %v986 = vsel %vm724, %v973, 0.0
      %v987 = vadd.f32 %v985, %v986
      %v988 = vsel %vm724, %v974, 0.0
      %v989 = vadd.f32 %v987, %v988
      %v990 = vrot.slane %v989, 4
      %v991 = vadd.f32 %v989, %v990
      %v992 = vrot.slane %v991, 2
      %v993 = vadd.f32 %v991, %v992
      %v994 = vrot.slane %v993, 1
      %v995 = vadd.f32 %v993, %v994
      %vm996 = vcmask 1040384
      %v997 = vsel %vm996, %v966, %v995
      %vm998 = vcmask 58368
      %999 = vst.msk [vmem:[%s238] sm:$0x3] %vm998, %v997
      %p1000 = scmp.lt.s32.totalorder %s20, 1
      %s1001 = scalar_select %p1000, %s20, 1
      %p1002 = scmp.lt.s32.totalorder %s21, 0
      %s1003 = scalar_select %p1002, %s21, 0
      %s1004 = smul.addr %s1003, 8
      %s1005 = smul.addr %s1001, 8
      %s1006 = sadd.s32 %s1004, %s1005
      %s1007 = smul.addr %s1006, 4
      %s1008 = scalar_lea.vmem %s3, %s1007
      %p1009 = scmp.lt.s32.totalorder %s20, 1
      %s1010 = scalar_select %p1009, %s20, 1
      %p1011 = scmp.lt.s32.totalorder %s21, 0
      %s1012 = scalar_select %p1011, %s21, 0
      %s1013 = sadd.s32 %s1012, %s1010
      %s1014 = smul.addr %s1013, 2
      %s1015 = scalar_lea.vmem %s4, %s1014
      // Predicated region
      $region33: #{down_forward.9} parent=31 // pred_check
        %p1016 = pneg %p116
      $region34: #{down_forward.9} parent=31 // pred_check_branch
        %1018 = sbr.rel (%p1016) target = $region36
      $region35: #{down_forward.9} parent=31 // pred_region
        _
      $region36: #{down_forward.9} parent=31 // pred_fallthru
        _
      // Predicated region
      $region37: #{down_forward.9} parent=31 // pred_check
        %p1019 = pneg %p144
      $region38: #{down_forward.9} parent=31 // pred_check_branch
        %1021 = sbr.rel (%p1019) target = $region40
      $region39: #{down_forward.9} parent=31 // pred_region
        _
      $region40: #{down_forward.9} parent=31 // pred_fallthru
        _
    $region32: #{down_forward.9} parent=5 // pred_fallthru
      _
    %p1022 = scmp.le.s32.totalorder 2, %s11
    // Predicated region
    $region41: #{down_forward.9} parent=5 // pred_check
      %p1023 = pneg %p1022
    $region42: #{down_forward.9} parent=5 // pred_check_branch
      %1025 = sbr.rel (%p1023) target = $region44
    $region43: #{down_forward.9} parent=5 // pred_region
      %s1026 = ssub.s32 %s11, 2
      // Predicated region
      $region45: #{down_forward.9} parent=43 // pred_check
        %p1027 = pneg %p122
      $region46: #{down_forward.9} parent=43 // pred_check_branch
        %1029 = sbr.rel (%p1027) target = $region48
      $region47: #{down_forward.9} parent=43 // pred_region
        %p1030 = scmp.lt.s32.totalorder %s22, 1
        %s1031 = scalar_select %p1030, %s22, 1
        %p1032 = scmp.lt.s32.totalorder %s23, 0
        %s1033 = scalar_select %p1032, %s23, 0
        %s1034 = smul.addr %s1033, 8
        %s1035 = smul.addr %s1031, 8
        %s1036 = sadd.s32 %s1034, %s1035
        %s1037 = smul.addr %s1036, 4
        %s1038 = scalar_lea.vmem %s3, %s1037
      $region48: #{down_forward.9} parent=43 // pred_fallthru
        _
      // Predicated region
      $region49: #{down_forward.9} parent=43 // pred_check
        %p1039 = pneg %p150
      $region50: #{down_forward.9} parent=43 // pred_check_branch
        %1041 = sbr.rel (%p1039) target = $region52
      $region51: #{down_forward.9} parent=43 // pred_region
        %p1042 = scmp.lt.s32.totalorder %s22, 1
        %s1043 = scalar_select %p1042, %s22, 1
        %p1044 = scmp.lt.s32.totalorder %s23, 0
        %s1045 = scalar_select %p1044, %s23, 0
        %s1046 = sadd.s32 %s1045, %s1043
        %s1047 = smul.addr %s1046, 2
        %s1048 = scalar_lea.vmem %s4, %s1047
      $region52: #{down_forward.9} parent=43 // pred_fallthru
        _
    $region44: #{down_forward.9} parent=5 // pred_fallthru
      _
  $region6: #{down_forward.9} parent=0 // loop_footer
    %s15 = sadd.s32 1, %s11
  $region7: #{down_forward.9} parent=0 // loop_footer_branch
    %10 = sbr.rel target = $region3
  $region8: #{down_forward.9} parent=0 // loop_exit
    _

// kernel: down_forward.11
$region0: #{down_forward.11}
  #allocation0 [shape = 'u32[]', space=smem, size = 0x4, offset = 0x4, fixed_abs, tag = 'smem constant byte address 0x4 - core index']
  #allocation1 [shape = 'u32[144,128]{1,0:T(1,128)}', space=vmem, size = 0x12000, scoped, tag = 'internal scratch']
  %s0 = inlined_call_operand.vmem [shape: bf16[16,64], index: 0, kind: input, shape index: {}]
  %s1 = inlined_call_operand.vmem [shape: f32[2,64], index: 1, kind: input, shape index: {}]
  %s2 = inlined_call_operand.vmem [shape: f32[16,64], index: 2, kind: output, shape index: {}]
  %s3 = sld [smem:[#allocation0]]
  $region18: #{down_forward.11} parent=0
    _
  %s5 = ssub.s32 1, %s3
  %s6 = scalar_select 0, %s5, %s3
  // Predicated region
  $region2: #{down_forward.11} parent=0 // pred_check
    _
  $region3: #{down_forward.11} parent=0 // pred_check_branch
    %8 = sbr.rel (0) target = $region5
  $region4: #{down_forward.11} parent=0 // pred_region
    _
  $region5: #{down_forward.11} parent=0 // pred_fallthru
    _
  // Predicated region
  $region6: #{down_forward.11} parent=0 // pred_check
    _
  $region7: #{down_forward.11} parent=0 // pred_check_branch
    %10 = sbr.rel (0) target = $region9
  $region8: #{down_forward.11} parent=0 // pred_region
    _
  $region9: #{down_forward.11} parent=0 // pred_fallthru
    _
  %v11 = vld [vmem:[%s0] sm:$0xf]
  %v12 = vld [vmem:[%s0 + $0x4] sm:$0xf]
  %v13 = vunpack.c.l.bf16 %v11
  %v14 = vunpack.c.l.bf16 %v12
  %v15 = vld [vmem:[%s1] sm:$0x3]
  %v16 = vlaneseq
  %v17 = vshrl.u32 %v16, 7
  %v18 = vsub.s32 0, %v17
  %v19 = vrot.slane %v15, %v18
  %v20 = vmul.f32 %v13, %v19
  %v21 = vmul.f32 %v14, %v19
  %v22 = vlaneseq
  %v23 = vshrl.u32 %v22, 7
  %v24 = vsub.s32 1, %v23
  %v25 = vrot.slane %v15, %v24
  %v26 = vadd.f32 %v20, %v25
  %v27 = vadd.f32 %v21, %v25
  %v28 = vmax.f32 %v26, 0.0
  %v29 = vmax.f32 %v27, 0.0
  %vm30 = vcmask 523264
  %31 = vst.msk [vmem:[%s2] sm:$0xff] %vm30, %v28
  %32 = vst.msk [vmem:[%s2 + $0x8] sm:$0xff] %vm30, %v29
  // Predicated region
  $region10: #{down_forward.11} parent=0 // pred_check
    _
  $region11: #{down_forward.11} parent=0 // pred_check_branch
    %34 = sbr.rel (0) target = $region13
  $region12: #{down_forward.11} parent=0 // pred_region
    _
  $region13: #{down_forward.11} parent=0 // pred_fallthru
    _
  // Predicated region
  $region14: #{down_forward.11} parent=0 // pred_check
    _
  $region15: #{down_forward.11} parent=0 // pred_check_branch
    %36 = sbr.rel (0) target = $region17
  $region16: #{down_forward.11} parent=0 // pred_region
    _
  $region17: #{down_forward.11} parent=0 // pred_fallthru
    _

// kernel: down_forward.6
$region0: #{down_forward.6}
  #allocation0 [shape = 'u32[]', space=smem, size = 0x4, offset = 0x4, fixed_abs, tag = 'smem constant byte address 0x4 - core index']
  #allocation1 [shape = 'u32[144,128]{1,0:T(1,128)}', space=vmem, size = 0x12000, scoped, tag = 'internal scratch']
  %s0 = inlined_call_operand.vmem [shape: f32[16,2,8,2,4], index: 0, kind: input, shape index: {}]
  %s1 = inlined_call_operand.vmem [shape: bf16[16,8,4], index: 1, kind: output, shape index: {}]
  %s2 = sld [smem:[#allocation0]]
  $region14: #{down_forward.6} parent=0
    _
  %s4 = ssub.s32 1, %s2
  %s5 = scalar_select 0, %s4, %s2
  // Predicated region
  $region2: #{down_forward.6} parent=0 // pred_check
    _
  $region3: #{down_forward.6} parent=0 // pred_check_branch
    %7 = sbr.rel (0) target = $region5
  $region4: #{down_forward.6} parent=0 // pred_region
    _
  $region5: #{down_forward.6} parent=0 // pred_fallthru
    _
  %v8 = vld [vmem:[%s0] sm:$0x3]
  %v9 = vld [vmem:[%s0 + $0x2] sm:$0x3]
  %v10 = vld [vmem:[%s0 + $0x4] sm:$0x3]
  %v11 = vld [vmem:[%s0 + $0x6] sm:$0x3]
  %v12 = vld [vmem:[%s0 + $0x8] sm:$0x3]
  %v13 = vld [vmem:[%s0 + $0xa] sm:$0x3]
  %v14 = vld [vmem:[%s0 + $0xc] sm:$0x3]
  %v15 = vld [vmem:[%s0 + $0xe] sm:$0x3]
  %v16 = vld [vmem:[%s0 + $0x10] sm:$0x3]
  %v17 = vld [vmem:[%s0 + $0x12] sm:$0x3]
  %v18 = vld [vmem:[%s0 + $0x14] sm:$0x3]
  %v19 = vld [vmem:[%s0 + $0x16] sm:$0x3]
  %v20 = vld [vmem:[%s0 + $0x18] sm:$0x3]
  %v21 = vld [vmem:[%s0 + $0x1a] sm:$0x3]
  %v22 = vld [vmem:[%s0 + $0x1c] sm:$0x3]
  %v23 = vld [vmem:[%s0 + $0x1e] sm:$0x3]
  %v24 = vld [vmem:[%s0 + $0x20] sm:$0x3]
  %v25 = vld [vmem:[%s0 + $0x22] sm:$0x3]
  %v26 = vld [vmem:[%s0 + $0x24] sm:$0x3]
  %v27 = vld [vmem:[%s0 + $0x26] sm:$0x3]
  %v28 = vld [vmem:[%s0 + $0x28] sm:$0x3]
  %v29 = vld [vmem:[%s0 + $0x2a] sm:$0x3]
  %v30 = vld [vmem:[%s0 + $0x2c] sm:$0x3]
  %v31 = vld [vmem:[%s0 + $0x2e] sm:$0x3]
  %v32 = vld [vmem:[%s0 + $0x30] sm:$0x3]
  %v33 = vld [vmem:[%s0 + $0x32] sm:$0x3]
  %v34 = vld [vmem:[%s0 + $0x34] sm:$0x3]
  %v35 = vld [vmem:[%s0 + $0x36] sm:$0x3]
  %v36 = vld [vmem:[%s0 + $0x38] sm:$0x3]
  %v37 = vld [vmem:[%s0 + $0x3a] sm:$0x3]
  %v38 = vld [vmem:[%s0 + $0x3c] sm:$0x3]
  %v39 = vld [vmem:[%s0 + $0x3e] sm:$0x3]
  %v40 = vld [vmem:[%s0 + $0x40] sm:$0x3]
  %v41 = vld [vmem:[%s0 + $0x42] sm:$0x3]
  %v42 = vld [vmem:[%s0 + $0x44] sm:$0x3]
  %v43 = vld [vmem:[%s0 + $0x46] sm:$0x3]
  %v44 = vld [vmem:[%s0 + $0x48] sm:$0x3]
  %v45 = vld [vmem:[%s0 + $0x4a] sm:$0x3]
  %v46 = vld [vmem:[%s0 + $0x4c] sm:$0x3]
  %v47 = vld [vmem:[%s0 + $0x4e] sm:$0x3]
  %v48 = vld [vmem:[%s0 + $0x50] sm:$0x3]
  %v49 = vld [vmem:[%s0 + $0x52] sm:$0x3]
  %v50 = vld [vmem:[%s0 + $0x54] sm:$0x3]
  %v51 = vld [vmem:[%s0 + $0x56] sm:$0x3]
  %v52 = vld [vmem:[%s0 + $0x58] sm:$0x3]
  %v53 = vld [vmem:[%s0 + $0x5a] sm:$0x3]
  %v54 = vld [vmem:[%s0 + $0x5c] sm:$0x3]
  %v55 = vld [vmem:[%s0 + $0x5e] sm:$0x3]
  %v56 = vld [vmem:[%s0 + $0x60] sm:$0x3]
  %v57 = vld [vmem:[%s0 + $0x62] sm:$0x3]
  %v58 = vld [vmem:[%s0 + $0x64] sm:$0x3]
  %v59 = vld [vmem:[%s0 + $0x66] sm:$0x3]
  %v60 = vld [vmem:[%s0 + $0x68] sm:$0x3]
  %v61 = vld [vmem:[%s0 + $0x6a] sm:$0x3]
  %v62 = vld [vmem:[%s0 + $0x6c] sm:$0x3]
  %v63 = vld [vmem:[%s0 + $0x6e] sm:$0x3]
  %v64 = vld [vmem:[%s0 + $0x70] sm:$0x3]
  %v65 = vld [vmem:[%s0 + $0x72] sm:$0x3]
  %v66 = vld [vmem:[%s0 + $0x74] sm:$0x3]
  %v67 = vld [vmem:[%s0 + $0x76] sm:$0x3]
  %v68 = vld [vmem:[%s0 + $0x78] sm:$0x3]
  %v69 = vld [vmem:[%s0 + $0x7a] sm:$0x3]
  %v70 = vld [vmem:[%s0 + $0x7c] sm:$0x3]
  %v71 = vld [vmem:[%s0 + $0x7e] sm:$0x3]
  %v72 = vld [vmem:[%s0 + $0x80] sm:$0x3]
  %v73 = vld [vmem:[%s0 + $0x82] sm:$0x3]
  %v74 = vld [vmem:[%s0 + $0x84] sm:$0x3]
  %v75 = vld [vmem:[%s0 + $0x86] sm:$0x3]
  %v76 = vld [vmem:[%s0 + $0x88] sm:$0x3]
  %v77 = vld [vmem:[%s0 + $0x8a] sm:$0x3]
  %v78 = vld [vmem:[%s0 + $0x8c] sm:$0x3]
  %v79 = vld [vmem:[%s0 + $0x8e] sm:$0x3]
  %v80 = vld [vmem:[%s0 + $0x90] sm:$0x3]
  %v81 = vld [vmem:[%s0 + $0x92] sm:$0x3]
  %v82 = vld [vmem:[%s0 + $0x94] sm:$0x3]
  %v83 = vld [vmem:[%s0 + $0x96] sm:$0x3]
  %v84 = vld [vmem:[%s0 + $0x98] sm:$0x3]
  %v85 = vld [vmem:[%s0 + $0x9a] sm:$0x3]
  %v86 = vld [vmem:[%s0 + $0x9c] sm:$0x3]
  %v87 = vld [vmem:[%s0 + $0x9e] sm:$0x3]
  %v88 = vld [vmem:[%s0 + $0xa0] sm:$0x3]
  %v89 = vld [vmem:[%s0 + $0xa2] sm:$0x3]
  %v90 = vld [vmem:[%s0 + $0xa4] sm:$0x3]
  %v91 = vld [vmem:[%s0 + $0xa6] sm:$0x3]
  %v92 = vld [vmem:[%s0 + $0xa8] sm:$0x3]
  %v93 = vld [vmem:[%s0 + $0xaa] sm:$0x3]
  %v94 = vld [vmem:[%s0 + $0xac] sm:$0x3]
  %v95 = vld [vmem:[%s0 + $0xae] sm:$0x3]
  %v96 = vld [vmem:[%s0 + $0xb0] sm:$0x3]
  %v97 = vld [vmem:[%s0 + $0xb2] sm:$0x3]
  %v98 = vld [vmem:[%s0 + $0xb4] sm:$0x3]
  %v99 = vld [vmem:[%s0 + $0xb6] sm:$0x3]
  %v100 = vld [vmem:[%s0 + $0xb8] sm:$0x3]
  %v101 = vld [vmem:[%s0 + $0xba] sm:$0x3]
  %v102 = vld [vmem:[%s0 + $0xbc] sm:$0x3]
  %v103 = vld [vmem:[%s0 + $0xbe] sm:$0x3]
  %v104 = vld [vmem:[%s0 + $0xc0] sm:$0x3]
  %v105 = vld [vmem:[%s0 + $0xc2] sm:$0x3]
  %v106 = vld [vmem:[%s0 + $0xc4] sm:$0x3]
  %v107 = vld [vmem:[%s0 + $0xc6] sm:$0x3]
  %v108 = vld [vmem:[%s0 + $0xc8] sm:$0x3]
  %v109 = vld [vmem:[%s0 + $0xca] sm:$0x3]
  %v110 = vld [vmem:[%s0 + $0xcc] sm:$0x3]
  %v111 = vld [vmem:[%s0 + $0xce] sm:$0x3]
  %v112 = vld [vmem:[%s0 + $0xd0] sm:$0x3]
  %v113 = vld [vmem:[%s0 + $0xd2] sm:$0x3]
  %v114 = vld [vmem:[%s0 + $0xd4] sm:$0x3]
  %v115 = vld [vmem:[%s0 + $0xd6] sm:$0x3]
  %v116 = vld [vmem:[%s0 + $0xd8] sm:$0x3]
  %v117 = vld [vmem:[%s0 + $0xda] sm:$0x3]
  %v118 = vld [vmem:[%s0 + $0xdc] sm:$0x3]
  %v119 = vld [vmem:[%s0 + $0xde] sm:$0x3]
  %v120 = vld [vmem:[%s0 + $0xe0] sm:$0x3]
  %v121 = vld [vmem:[%s0 + $0xe2] sm:$0x3]
  %v122 = vld [vmem:[%s0 + $0xe4] sm:$0x3]
  %v123 = vld [vmem:[%s0 + $0xe6] sm:$0x3]
  %v124 = vld [vmem:[%s0 + $0xe8] sm:$0x3]
  %v125 = vld [vmem:[%s0 + $0xea] sm:$0x3]
  %v126 = vld [vmem:[%s0 + $0xec] sm:$0x3]
  %v127 = vld [vmem:[%s0 + $0xee] sm:$0x3]
  %v128 = vld [vmem:[%s0 + $0xf0] sm:$0x3]
  %v129 = vld [vmem:[%s0 + $0xf2] sm:$0x3]
  %v130 = vld [vmem:[%s0 + $0xf4] sm:$0x3]
  %v131 = vld [vmem:[%s0 + $0xf6] sm:$0x3]
  %v132 = vld [vmem:[%s0 + $0xf8] sm:$0x3]
  %v133 = vld [vmem:[%s0 + $0xfa] sm:$0x3]
  %v134 = vld [vmem:[%s0 + $0xfc] sm:$0x3]
  %v135 = vld [vmem:[%s0 + $0xfe] sm:$0x3]
  %v136 = vld [vmem:[%s0 + $0x100] sm:$0x3]
  %v137 = vld [vmem:[%s0 + $0x102] sm:$0x3]
  %v138 = vld [vmem:[%s0 + $0x104] sm:$0x3]
  %v139 = vld [vmem:[%s0 + $0x106] sm:$0x3]
  %v140 = vld [vmem:[%s0 + $0x108] sm:$0x3]
  %v141 = vld [vmem:[%s0 + $0x10a] sm:$0x3]
  %v142 = vld [vmem:[%s0 + $0x10c] sm:$0x3]
  %v143 = vld [vmem:[%s0 + $0x10e] sm:$0x3]
  %v144 = vld [vmem:[%s0 + $0x110] sm:$0x3]
  %v145 = vld [vmem:[%s0 + $0x112] sm:$0x3]
  %v146 = vld [vmem:[%s0 + $0x114] sm:$0x3]
  %v147 = vld [vmem:[%s0 + $0x116] sm:$0x3]
  %v148 = vld [vmem:[%s0 + $0x118] sm:$0x3]
  %v149 = vld [vmem:[%s0 + $0x11a] sm:$0x3]
  %v150 = vld [vmem:[%s0 + $0x11c] sm:$0x3]
  %v151 = vld [vmem:[%s0 + $0x11e] sm:$0x3]
  %v152 = vld [vmem:[%s0 + $0x120] sm:$0x3]
  %v153 = vld [vmem:[%s0 + $0x122] sm:$0x3]
  %v154 = vld [vmem:[%s0 + $0x124] sm:$0x3]
  %v155 = vld [vmem:[%s0 + $0x126] sm:$0x3]
  %v156 = vld [vmem:[%s0 + $0x128] sm:$0x3]
  %v157 = vld [vmem:[%s0 + $0x12a] sm:$0x3]
  %v158 = vld [vmem:[%s0 + $0x12c] sm:$0x3]
  %v159 = vld [vmem:[%s0 + $0x12e] sm:$0x3]
  %v160 = vld [vmem:[%s0 + $0x130] sm:$0x3]
  %v161 = vld [vmem:[%s0 + $0x132] sm:$0x3]
  %v162 = vld [vmem:[%s0 + $0x134] sm:$0x3]
  %v163 = vld [vmem:[%s0 + $0x136] sm:$0x3]
  %v164 = vld [vmem:[%s0 + $0x138] sm:$0x3]
  %v165 = vld [vmem:[%s0 + $0x13a] sm:$0x3]
  %v166 = vld [vmem:[%s0 + $0x13c] sm:$0x3]
  %v167 = vld [vmem:[%s0 + $0x13e] sm:$0x3]
  %v168 = vld [vmem:[%s0 + $0x140] sm:$0x3]
  %v169 = vld [vmem:[%s0 + $0x142] sm:$0x3]
  %v170 = vld [vmem:[%s0 + $0x144] sm:$0x3]
  %v171 = vld [vmem:[%s0 + $0x146] sm:$0x3]
  %v172 = vld [vmem:[%s0 + $0x148] sm:$0x3]
  %v173 = vld [vmem:[%s0 + $0x14a] sm:$0x3]
  %v174 = vld [vmem:[%s0 + $0x14c] sm:$0x3]
  %v175 = vld [vmem:[%s0 + $0x14e] sm:$0x3]
  %v176 = vld [vmem:[%s0 + $0x150] sm:$0x3]
  %v177 = vld [vmem:[%s0 + $0x152] sm:$0x3]
  %v178 = vld [vmem:[%s0 + $0x154] sm:$0x3]
  %v179 = vld [vmem:[%s0 + $0x156] sm:$0x3]
  %v180 = vld [vmem:[%s0 + $0x158] sm:$0x3]
  %v181 = vld [vmem:[%s0 + $0x15a] sm:$0x3]
  %v182 = vld [vmem:[%s0 + $0x15c] sm:$0x3]
  %v183 = vld [vmem:[%s0 + $0x15e] sm:$0x3]
  %v184 = vld [vmem:[%s0 + $0x160] sm:$0x3]
  %v185 = vld [vmem:[%s0 + $0x162] sm:$0x3]
  %v186 = vld [vmem:[%s0 + $0x164] sm:$0x3]
  %v187 = vld [vmem:[%s0 + $0x166] sm:$0x3]
  %v188 = vld [vmem:[%s0 + $0x168] sm:$0x3]
  %v189 = vld [vmem:[%s0 + $0x16a] sm:$0x3]
  %v190 = vld [vmem:[%s0 + $0x16c] sm:$0x3]
  %v191 = vld [vmem:[%s0 + $0x16e] sm:$0x3]
  %v192 = vld [vmem:[%s0 + $0x170] sm:$0x3]
  %v193 = vld [vmem:[%s0 + $0x172] sm:$0x3]
  %v194 = vld [vmem:[%s0 + $0x174] sm:$0x3]
  %v195 = vld [vmem:[%s0 + $0x176] sm:$0x3]
  %v196 = vld [vmem:[%s0 + $0x178] sm:$0x3]
  %v197 = vld [vmem:[%s0 + $0x17a] sm:$0x3]
  %v198 = vld [vmem:[%s0 + $0x17c] sm:$0x3]
  %v199 = vld [vmem:[%s0 + $0x17e] sm:$0x3]
  %v200 = vld [vmem:[%s0 + $0x180] sm:$0x3]
  %v201 = vld [vmem:[%s0 + $0x182] sm:$0x3]
  %v202 = vld [vmem:[%s0 + $0x184] sm:$0x3]
  %v203 = vld [vmem:[%s0 + $0x186] sm:$0x3]
  %v204 = vld [vmem:[%s0 + $0x188] sm:$0x3]
  %v205 = vld [vmem:[%s0 + $0x18a] sm:$0x3]
  %v206 = vld [vmem:[%s0 + $0x18c] sm:$0x3]
  %v207 = vld [vmem:[%s0 + $0x18e] sm:$0x3]
  %v208 = vld [vmem:[%s0 + $0x190] sm:$0x3]
  %v209 = vld [vmem:[%s0 + $0x192] sm:$0x3]
  %v210 = vld [vmem:[%s0 + $0x194] sm:$0x3]
  %v211 = vld [vmem:[%s0 + $0x196] sm:$0x3]
  %v212 = vld [vmem:[%s0 + $0x198] sm:$0x3]
  %v213 = vld [vmem:[%s0 + $0x19a] sm:$0x3]
  %v214 = vld [vmem:[%s0 + $0x19c] sm:$0x3]
  %v215 = vld [vmem:[%s0 + $0x19e] sm:$0x3]
  %v216 = vld [vmem:[%s0 + $0x1a0] sm:$0x3]
  %v217 = vld [vmem:[%s0 + $0x1a2] sm:$0x3]
  %v218 = vld [vmem:[%s0 + $0x1a4] sm:$0x3]
  %v219 = vld [vmem:[%s0 + $0x1a6] sm:$0x3]
  %v220 = vld [vmem:[%s0 + $0x1a8] sm:$0x3]
  %v221 = vld [vmem:[%s0 + $0x1aa] sm:$0x3]
  %v222 = vld [vmem:[%s0 + $0x1ac] sm:$0x3]
  %v223 = vld [vmem:[%s0 + $0x1ae] sm:$0x3]
  %v224 = vld [vmem:[%s0 + $0x1b0] sm:$0x3]
  %v225 = vld [vmem:[%s0 + $0x1b2] sm:$0x3]
  %v226 = vld [vmem:[%s0 + $0x1b4] sm:$0x3]
  %v227 = vld [vmem:[%s0 + $0x1b6] sm:$0x3]
  %v228 = vld [vmem:[%s0 + $0x1b8] sm:$0x3]
  %v229 = vld [vmem:[%s0 + $0x1ba] sm:$0x3]
  %v230 = vld [vmem:[%s0 + $0x1bc] sm:$0x3]
  %v231 = vld [vmem:[%s0 + $0x1be] sm:$0x3]
  %v232 = vld [vmem:[%s0 + $0x1c0] sm:$0x3]
  %v233 = vld [vmem:[%s0 + $0x1c2] sm:$0x3]
  %v234 = vld [vmem:[%s0 + $0x1c4] sm:$0x3]
  %v235 = vld [vmem:[%s0 + $0x1c6] sm:$0x3]
  %v236 = vld [vmem:[%s0 + $0x1c8] sm:$0x3]
  %v237 = vld [vmem:[%s0 + $0x1ca] sm:$0x3]
  %v238 = vld [vmem:[%s0 + $0x1cc] sm:$0x3]
  %v239 = vld [vmem:[%s0 + $0x1ce] sm:$0x3]
  %v240 = vld [vmem:[%s0 + $0x1d0] sm:$0x3]
  %v241 = vld [vmem:[%s0 + $0x1d2] sm:$0x3]
  %v242 = vld [vmem:[%s0 + $0x1d4] sm:$0x3]
  %v243 = vld [vmem:[%s0 + $0x1d6] sm:$0x3]
  %v244 = vld [vmem:[%s0 + $0x1d8] sm:$0x3]
  %v245 = vld [vmem:[%s0 + $0x1da] sm:$0x3]
  %v246 = vld [vmem:[%s0 + $0x1dc] sm:$0x3]
  %v247 = vld [vmem:[%s0 + $0x1de] sm:$0x3]
  %v248 = vld [vmem:[%s0 + $0x1e0] sm:$0x3]
  %v249 = vld [vmem:[%s0 + $0x1e2] sm:$0x3]
  %v250 = vld [vmem:[%s0 + $0x1e4] sm:$0x3]
  %v251 = vld [vmem:[%s0 + $0x1e6] sm:$0x3]
  %v252 = vld [vmem:[%s0 + $0x1e8] sm:$0x3]
  %v253 = vld [vmem:[%s0 + $0x1ea] sm:$0x3]
  %v254 = vld [vmem:[%s0 + $0x1ec] sm:$0x3]
  %v255 = vld [vmem:[%s0 + $0x1ee] sm:$0x3]
  %v256 = vld [vmem:[%s0 + $0x1f0] sm:$0x3]
  %v257 = vld [vmem:[%s0 + $0x1f2] sm:$0x3]
  %v258 = vld [vmem:[%s0 + $0x1f4] sm:$0x3]
  %v259 = vld [vmem:[%s0 + $0x1f6] sm:$0x3]
  %v260 = vld [vmem:[%s0 + $0x1f8] sm:$0x3]
  %v261 = vld [vmem:[%s0 + $0x1fa] sm:$0x3]
  %v262 = vld [vmem:[%s0 + $0x1fc] sm:$0x3]
  %v263 = vld [vmem:[%s0 + $0x1fe] sm:$0x3]
  %v392 = vrot.slane %v8, 1
  %v393 = vrot.slane %v9, 1
  %v394 = vrot.slane %v10, 1
  %v395 = vrot.slane %v11, 1
  %v396 = vrot.slane %v12, 1
  %v397 = vrot.slane %v13, 1
  %v398 = vrot.slane %v14, 1
  %v399 = vrot.slane %v15, 1
  %v400 = vrot.slane %v24, 1
  %v401 = vrot.slane %v25, 1
  %v402 = vrot.slane %v26, 1
  %v403 = vrot.slane %v27, 1
  %v404 = vrot.slane %v28, 1
  %v405 = vrot.slane %v29, 1
  %v406 = vrot.slane %v30, 1
  %v407 = vrot.slane %v31, 1
  %v408 = vrot.slane %v40, 1
  %v409 = vrot.slane %v41, 1
  %v410 = vrot.slane %v42, 1
  %v411 = vrot.slane %v43, 1
  %v412 = vrot.slane %v44, 1
  %v413 = vrot.slane %v45, 1
  %v414 = vrot.slane %v46, 1
  %v415 = vrot.slane %v47, 1
  %v416 = vrot.slane %v56, 1
  %v417 = vrot.slane %v57, 1
  %v418 = vrot.slane %v58, 1
  %v419 = vrot.slane %v59, 1
  %v420 = vrot.slane %v60, 1
  %v421 = vrot.slane %v61, 1
  %v422 = vrot.slane %v62, 1
  %v423 = vrot.slane %v63, 1
  %v424 = vrot.slane %v72, 1
  %v425 = vrot.slane %v73, 1
  %v426 = vrot.slane %v74, 1
  %v427 = vrot.slane %v75, 1
  %v428 = vrot.slane %v76, 1
  %v429 = vrot.slane %v77, 1
  %v430 = vrot.slane %v78, 1
  %v431 = vrot.slane %v79, 1
  %v432 = vrot.slane %v88, 1
  %v433 = vrot.slane %v89, 1
  %v434 = vrot.slane %v90, 1
  %v435 = vrot.slane %v91, 1
  %v436 = vrot.slane %v92, 1
  %v437 = vrot.slane %v93, 1
  %v438 = vrot.slane %v94, 1
  %v439 = vrot.slane %v95, 1
  %v440 = vrot.slane %v104, 1
  %v441 = vrot.slane %v105, 1
  %v442 = vrot.slane %v106, 1
  %v443 = vrot.slane %v107, 1
  %v444 = vrot.slane %v108, 1
  %v445 = vrot.slane %v109, 1
  %v446 = vrot.slane %v110, 1
  %v447 = vrot.slane %v111, 1
  %v448 = vrot.slane %v120, 1
  %v449 = vrot.slane %v121, 1
  %v450 = vrot.slane %v122, 1
  %v451 = vrot.slane %v123, 1
  %v452 = vrot.slane %v124, 1
  %v453 = vrot.slane %v125, 1
  %v454 = vrot.slane %v126, 1
  %v455 = vrot.slane %v127, 1
  %v456 = vrot.slane %v136, 1
  %v457 = vrot.slane %v137, 1
  %v458 = vrot.slane %v138, 1
  %v459 = vrot.slane %v139, 1
  %v460 = vrot.slane %v140, 1
  %v461 = vrot.slane %v141, 1
  %v462 = vrot.slane %v142, 1
  %v463 = vrot.slane %v143, 1
  %v464 = vrot.slane %v152, 1
  %v465 = vrot.slane %v153, 1
  %v466 = vrot.slane %v154, 1
  %v467 = vrot.slane %v155, 1
  %v468 = vrot.slane %v156, 1
  %v469 = vrot.slane %v157, 1
  %v470 = vrot.slane %v158, 1
  %v471 = vrot.slane %v159, 1
  %v472 = vrot.slane %v168, 1
  %v473 = vrot.slane %v169, 1
  %v474 = vrot.slane %v170, 1
  %v475 = vrot.slane %v171, 1
  %v476 = vrot.slane %v172, 1
  %v477 = vrot.slane %v173, 1
  %v478 = vrot.slane %v174, 1
  %v479 = vrot.slane %v175, 1
  %v480 = vrot.slane %v184, 1
  %v481 = vrot.slane %v185, 1
  %v482 = vrot.slane %v186, 1
  %v483 = vrot.slane %v187, 1
  %v484 = vrot.slane %v188, 1
  %v485 = vrot.slane %v189, 1
  %v486 = vrot.slane %v190, 1
  %v487 = vrot.slane %v191, 1
  %v488 = vrot.slane %v200, 1
  %v489 = vrot.slane %v201, 1
  %v490 = vrot.slane %v202, 1
  %v491 = vrot.slane %v203, 1
  %v492 = vrot.slane %v204, 1
  %v493 = vrot.slane %v205, 1
  %v494 = vrot.slane %v206, 1
  %v495 = vrot.slane %v207, 1
  %v496 = vrot.slane %v216, 1
  %v497 = vrot.slane %v217, 1
  %v498 = vrot.slane %v218, 1
  %v499 = vrot.slane %v219, 1
  %v500 = vrot.slane %v220, 1
  %v501 = vrot.slane %v221, 1
  %v502 = vrot.slane %v222, 1
  %v503 = vrot.slane %v223, 1
  %v504 = vrot.slane %v232, 1
  %v505 = vrot.slane %v233, 1
  %v506 = vrot.slane %v234, 1
  %v507 = vrot.slane %v235, 1
  %v508 = vrot.slane %v236, 1
  %v509 = vrot.slane %v237, 1
  %v510 = vrot.slane %v238, 1
  %v511 = vrot.slane %v239, 1
  %v512 = vrot.slane %v248, 1
  %v513 = vrot.slane %v249, 1
  %v514 = vrot.slane %v250, 1
  %v515 = vrot.slane %v251, 1
  %v516 = vrot.slane %v252, 1
  %v517 = vrot.slane %v253, 1
  %v518 = vrot.slane %v254, 1
  %v519 = vrot.slane %v255, 1
  %v648 = vmax.f32 %v8, %v392
  %v649 = vmax.f32 %v9, %v393
  %v650 = vmax.f32 %v10, %v394
  %v651 = vmax.f32 %v11, %v395
  %v652 = vmax.f32 %v12, %v396
  %v653 = vmax.f32 %v13, %v397
  %v654 = vmax.f32 %v14, %v398
  %v655 = vmax.f32 %v15, %v399
  %v656 = vmax.f32 %v24, %v400
  %v657 = vmax.f32 %v25, %v401
  %v658 = vmax.f32 %v26, %v402
  %v659 = vmax.f32 %v27, %v403
  %v660 = vmax.f32 %v28, %v404
  %v661 = vmax.f32 %v29, %v405
  %v662 = vmax.f32 %v30, %v406
  %v663 = vmax.f32 %v31, %v407
  %v664 = vmax.f32 %v40, %v408
  %v665 = vmax.f32 %v41, %v409
  %v666 = vmax.f32 %v42, %v410
  %v667 = vmax.f32 %v43, %v411
  %v668 = vmax.f32 %v44, %v412
  %v669 = vmax.f32 %v45, %v413
  %v670 = vmax.f32 %v46, %v414
  %v671 = vmax.f32 %v47, %v415
  %v672 = vmax.f32 %v56, %v416
  %v673 = vmax.f32 %v57, %v417
  %v674 = vmax.f32 %v58, %v418
  %v675 = vmax.f32 %v59, %v419
  %v676 = vmax.f32 %v60, %v420
  %v677 = vmax.f32 %v61, %v421
  %v678 = vmax.f32 %v62, %v422
  %v679 = vmax.f32 %v63, %v423
  %v680 = vmax.f32 %v72, %v424
  %v681 = vmax.f32 %v73, %v425
  %v682 = vmax.f32 %v74, %v426
  %v683 = vmax.f32 %v75, %v427
  %v684 = vmax.f32 %v76, %v428
  %v685 = vmax.f32 %v77, %v429
  %v686 = vmax.f32 %v78, %v430
  %v687 = vmax.f32 %v79, %v431
  %v688 = vmax.f32 %v88, %v432
  %v689 = vmax.f32 %v89, %v433
  %v690 = vmax.f32 %v90, %v434
  %v691 = vmax.f32 %v91, %v435
  %v692 = vmax.f32 %v92, %v436
  %v693 = vmax.f32 %v93, %v437
  %v694 = vmax.f32 %v94, %v438
  %v695 = vmax.f32 %v95, %v439
  %v696 = vmax.f32 %v104, %v440
  %v697 = vmax.f32 %v105, %v441
  %v698 = vmax.f32 %v106, %v442
  %v699 = vmax.f32 %v107, %v443
  %v700 = vmax.f32 %v108, %v444
  %v701 = vmax.f32 %v109, %v445
  %v702 = vmax.f32 %v110, %v446
  %v703 = vmax.f32 %v111, %v447
  %v704 = vmax.f32 %v120, %v448
  %v705 = vmax.f32 %v121, %v449
  %v706 = vmax.f32 %v122, %v450
  %v707 = vmax.f32 %v123, %v451
  %v708 = vmax.f32 %v124, %v452
  %v709 = vmax.f32 %v125, %v453
  %v710 = vmax.f32 %v126, %v454
  %v711 = vmax.f32 %v127, %v455
  %v712 = vmax.f32 %v136, %v456
  %v713 = vmax.f32 %v137, %v457
  %v714 = vmax.f32 %v138, %v458
  %v715 = vmax.f32 %v139, %v459
  %v716 = vmax.f32 %v140, %v460
  %v717 = vmax.f32 %v141, %v461
  %v718 = vmax.f32 %v142, %v462
  %v719 = vmax.f32 %v143, %v463
  %v720 = vmax.f32 %v152, %v464
  %v721 = vmax.f32 %v153, %v465
  %v722 = vmax.f32 %v154, %v466
  %v723 = vmax.f32 %v155, %v467
  %v724 = vmax.f32 %v156, %v468
  %v725 = vmax.f32 %v157, %v469
  %v726 = vmax.f32 %v158, %v470
  %v727 = vmax.f32 %v159, %v471
  %v728 = vmax.f32 %v168, %v472
  %v729 = vmax.f32 %v169, %v473
  %v730 = vmax.f32 %v170, %v474
  %v731 = vmax.f32 %v171, %v475
  %v732 = vmax.f32 %v172, %v476
  %v733 = vmax.f32 %v173, %v477
  %v734 = vmax.f32 %v174, %v478
  %v735 = vmax.f32 %v175, %v479
  %v736 = vmax.f32 %v184, %v480
  %v737 = vmax.f32 %v185, %v481
  %v738 = vmax.f32 %v186, %v482
  %v739 = vmax.f32 %v187, %v483
  %v740 = vmax.f32 %v188, %v484
  %v741 = vmax.f32 %v189, %v485
  %v742 = vmax.f32 %v190, %v486
  %v743 = vmax.f32 %v191, %v487
  %v744 = vmax.f32 %v200, %v488
  %v745 = vmax.f32 %v201, %v489
  %v746 = vmax.f32 %v202, %v490
  %v747 = vmax.f32 %v203, %v491
  %v748 = vmax.f32 %v204, %v492
  %v749 = vmax.f32 %v205, %v493
  %v750 = vmax.f32 %v206, %v494
  %v751 = vmax.f32 %v207, %v495
  %v752 = vmax.f32 %v216, %v496
  %v753 = vmax.f32 %v217, %v497
  %v754 = vmax.f32 %v218, %v498
  %v755 = vmax.f32 %v219, %v499
  %v756 = vmax.f32 %v220, %v500
  %v757 = vmax.f32 %v221, %v501
  %v758 = vmax.f32 %v222, %v502
  %v759 = vmax.f32 %v223, %v503
  %v760 = vmax.f32 %v232, %v504
  %v761 = vmax.f32 %v233, %v505
  %v762 = vmax.f32 %v234, %v506
  %v763 = vmax.f32 %v235, %v507
  %v764 = vmax.f32 %v236, %v508
  %v765 = vmax.f32 %v237, %v509
  %v766 = vmax.f32 %v238, %v510
  %v767 = vmax.f32 %v239, %v511
  %v768 = vmax.f32 %v248, %v512
  %v769 = vmax.f32 %v249, %v513
  %v770 = vmax.f32 %v250, %v514
  %v771 = vmax.f32 %v251, %v515
  %v772 = vmax.f32 %v252, %v516
  %v773 = vmax.f32 %v253, %v517
  %v774 = vmax.f32 %v254, %v518
  %v775 = vmax.f32 %v255, %v519
  %v904 = vrot.slane %v16, 1
  %v905 = vrot.slane %v17, 1
  %v906 = vrot.slane %v18, 1
  %v907 = vrot.slane %v19, 1
  %v908 = vrot.slane %v20, 1
  %v909 = vrot.slane %v21, 1
  %v910 = vrot.slane %v22, 1
  %v911 = vrot.slane %v23, 1
  %v912 = vrot.slane %v32, 1
  %v913 = vrot.slane %v33, 1
  %v914 = vrot.slane %v34, 1
  %v915 = vrot.slane %v35, 1
  %v916 = vrot.slane %v36, 1
  %v917 = vrot.slane %v37, 1
  %v918 = vrot.slane %v38, 1
  %v919 = vrot.slane %v39, 1
  %v920 = vrot.slane %v48, 1
  %v921 = vrot.slane %v49, 1
  %v922 = vrot.slane %v50, 1
  %v923 = vrot.slane %v51, 1
  %v924 = vrot.slane %v52, 1
  %v925 = vrot.slane %v53, 1
  %v926 = vrot.slane %v54, 1
  %v927 = vrot.slane %v55, 1
  %v928 = vrot.slane %v64, 1
  %v929 = vrot.slane %v65, 1
  %v930 = vrot.slane %v66, 1
  %v931 = vrot.slane %v67, 1
  %v932 = vrot.slane %v68, 1
  %v933 = vrot.slane %v69, 1
  %v934 = vrot.slane %v70, 1
  %v935 = vrot.slane %v71, 1
  %v936 = vrot.slane %v80, 1
  %v937 = vrot.slane %v81, 1
  %v938 = vrot.slane %v82, 1
  %v939 = vrot.slane %v83, 1
  %v940 = vrot.slane %v84, 1
  %v941 = vrot.slane %v85, 1
  %v942 = vrot.slane %v86, 1
  %v943 = vrot.slane %v87, 1
  %v944 = vrot.slane %v96, 1
  %v945 = vrot.slane %v97, 1
  %v946 = vrot.slane %v98, 1
  %v947 = vrot.slane %v99, 1
  %v948 = vrot.slane %v100, 1
  %v949 = vrot.slane %v101, 1
  %v950 = vrot.slane %v102, 1
  %v951 = vrot.slane %v103, 1
  %v952 = vrot.slane %v112, 1
  %v953 = vrot.slane %v113, 1
  %v954 = vrot.slane %v114, 1
  %v955 = vrot.slane %v115, 1
  %v956 = vrot.slane %v116, 1
  %v957 = vrot.slane %v117, 1
  %v958 = vrot.slane %v118, 1
  %v959 = vrot.slane %v119, 1
  %v960 = vrot.slane %v128, 1
  %v961 = vrot.slane %v129, 1
  %v962 = vrot.slane %v130, 1
  %v963 = vrot.slane %v131, 1
  %v964 = vrot.slane %v132, 1
  %v965 = vrot.slane %v133, 1
  %v966 = vrot.slane %v134, 1
  %v967 = vrot.slane %v135, 1
  %v968 = vrot.slane %v144, 1
  %v969 = vrot.slane %v145, 1
  %v970 = vrot.slane %v146, 1
  %v971 = vrot.slane %v147, 1
  %v972 = vrot.slane %v148, 1
  %v973 = vrot.slane %v149, 1
  %v974 = vrot.slane %v150, 1
  %v975 = vrot.slane %v151, 1
  %v976 = vrot.slane %v160, 1
  %v977 = vrot.slane %v161, 1
  %v978 = vrot.slane %v162, 1
  %v979 = vrot.slane %v163, 1
  %v980 = vrot.slane %v164, 1
  %v981 = vrot.slane %v165, 1
  %v982 = vrot.slane %v166, 1
  %v983 = vrot.slane %v167, 1
  %v984 = vrot.slane %v176, 1
  %v985 = vrot.slane %v177, 1
  %v986 = vrot.slane %v178, 1
  %v987 = vrot.slane %v179, 1
  %v988 = vrot.slane %v180, 1
  %v989 = vrot.slane %v181, 1
  %v990 = vrot.slane %v182, 1
  %v991 = vrot.slane %v183, 1
  %v992 = vrot.slane %v192, 1
  %v993 = vrot.slane %v193, 1
  %v994 = vrot.slane %v194, 1
  %v995 = vrot.slane %v195, 1
  %v996 = vrot.slane %v196, 1
  %v997 = vrot.slane %v197, 1
  %v998 = vrot.slane %v198, 1
  %v999 = vrot.slane %v199, 1
  %v1000 = vrot.slane %v208, 1
  %v1001 = vrot.slane %v209, 1
  %v1002 = vrot.slane %v210, 1
  %v1003 = vrot.slane %v211, 1
  %v1004 = vrot.slane %v212, 1
  %v1005 = vrot.slane %v213, 1
  %v1006 = vrot.slane %v214, 1
  %v1007 = vrot.slane %v215, 1
  %v1008 = vrot.slane %v224, 1
  %v1009 = vrot.slane %v225, 1
  %v1010 = vrot.slane %v226, 1
  %v1011 = vrot.slane %v227, 1
  %v1012 = vrot.slane %v228, 1
  %v1013 = vrot.slane %v229, 1
  %v1014 = vrot.slane %v230, 1
  %v1015 = vrot.slane %v231, 1
  %v1016 = vrot.slane %v240, 1
  %v1017 = vrot.slane %v241, 1
  %v1018 = vrot.slane %v242, 1
  %v1019 = vrot.slane %v243, 1
  %v1020 = vrot.slane %v244, 1
  %v1021 = vrot.slane %v245, 1
  %v1022 = vrot.slane %v246, 1
  %v1023 = vrot.slane %v247, 1
  %v1024 = vrot.slane %v256, 1
  %v1025 = vrot.slane %v257, 1
  %v1026 = vrot.slane %v258, 1
  %v1027 = vrot.slane %v259, 1
  %v1028 = vrot.slane %v260, 1
  %v1029 = vrot.slane %v261, 1
  %v1030 = vrot.slane %v262, 1
  %v1031 = vrot.slane %v263, 1
  %v1160 = vmax.f32 %v16, %v904
  %v1161 = vmax.f32 %v17, %v905
  %v1162 = vmax.f32 %v18, %v906
  %v1163 = vmax.f32 %v19, %v907
  %v1164 = vmax.f32 %v20, %v908
  %v1165 = vmax.f32 %v21, %v909
  %v1166 = vmax.f32 %v22, %v910
  %v1167 = vmax.f32 %v23, %v911
  %v1168 = vmax.f32 %v32, %v912
  %v1169 = vmax.f32 %v33, %v913
  %v1170 = vmax.f32 %v34, %v914
  %v1171 = vmax.f32 %v35, %v915
  %v1172 = vmax.f32 %v36, %v916
  %v1173 = vmax.f32 %v37, %v917
  %v1174 = vmax.f32 %v38, %v918
  %v1175 = vmax.f32 %v39, %v919
  %v1176 = vmax.f32 %v48, %v920
  %v1177 = vmax.f32 %v49, %v921
  %v1178 = vmax.f32 %v50, %v922
  %v1179 = vmax.f32 %v51, %v923
  %v1180 = vmax.f32 %v52, %v924
  %v1181 = vmax.f32 %v53, %v925
  %v1182 = vmax.f32 %v54, %v926
  %v1183 = vmax.f32 %v55, %v927
  %v1184 = vmax.f32 %v64, %v928
  %v1185 = vmax.f32 %v65, %v929
  %v1186 = vmax.f32 %v66, %v930
  %v1187 = vmax.f32 %v67, %v931
  %v1188 = vmax.f32 %v68, %v932
  %v1189 = vmax.f32 %v69, %v933
  %v1190 = vmax.f32 %v70, %v934
  %v1191 = vmax.f32 %v71, %v935
  %v1192 = vmax.f32 %v80, %v936
  %v1193 = vmax.f32 %v81, %v937
  %v1194 = vmax.f32 %v82, %v938
  %v1195 = vmax.f32 %v83, %v939
  %v1196 = vmax.f32 %v84, %v940
  %v1197 = vmax.f32 %v85, %v941
  %v1198 = vmax.f32 %v86, %v942
  %v1199 = vmax.f32 %v87, %v943
  %v1200 = vmax.f32 %v96, %v944
  %v1201 = vmax.f32 %v97, %v945
  %v1202 = vmax.f32 %v98, %v946
  %v1203 = vmax.f32 %v99, %v947
  %v1204 = vmax.f32 %v100, %v948
  %v1205 = vmax.f32 %v101, %v949
  %v1206 = vmax.f32 %v102, %v950
  %v1207 = vmax.f32 %v103, %v951
  %v1208 = vmax.f32 %v112, %v952
  %v1209 = vmax.f32 %v113, %v953
  %v1210 = vmax.f32 %v114, %v954
  %v1211 = vmax.f32 %v115, %v955
  %v1212 = vmax.f32 %v116, %v956
  %v1213 = vmax.f32 %v117, %v957
  %v1214 = vmax.f32 %v118, %v958
  %v1215 = vmax.f32 %v119, %v959
  %v1216 = vmax.f32 %v128, %v960
  %v1217 = vmax.f32 %v129, %v961
  %v1218 = vmax.f32 %v130, %v962
  %v1219 = vmax.f32 %v131, %v963
  %v1220 = vmax.f32 %v132, %v964
  %v1221 = vmax.f32 %v133, %v965
  %v1222 = vmax.f32 %v134, %v966
  %v1223 = vmax.f32 %v135, %v967
  %v1224 = vmax.f32 %v144, %v968
  %v1225 = vmax.f32 %v145, %v969
  %v1226 = vmax.f32 %v146, %v970
  %v1227 = vmax.f32 %v147, %v971
  %v1228 = vmax.f32 %v148, %v972
  %v1229 = vmax.f32 %v149, %v973
  %v1230 = vmax.f32 %v150, %v974
  %v1231 = vmax.f32 %v151, %v975
  %v1232 = vmax.f32 %v160, %v976
  %v1233 = vmax.f32 %v161, %v977
  %v1234 = vmax.f32 %v162, %v978
  %v1235 = vmax.f32 %v163, %v979
  %v1236 = vmax.f32 %v164, %v980
  %v1237 = vmax.f32 %v165, %v981
  %v1238 = vmax.f32 %v166, %v982
  %v1239 = vmax.f32 %v167, %v983
  %v1240 = vmax.f32 %v176, %v984
  %v1241 = vmax.f32 %v177, %v985
  %v1242 = vmax.f32 %v178, %v986
  %v1243 = vmax.f32 %v179, %v987
  %v1244 = vmax.f32 %v180, %v988
  %v1245 = vmax.f32 %v181, %v989
  %v1246 = vmax.f32 %v182, %v990
  %v1247 = vmax.f32 %v183, %v991
  %v1248 = vmax.f32 %v192, %v992
  %v1249 = vmax.f32 %v193, %v993
  %v1250 = vmax.f32 %v194, %v994
  %v1251 = vmax.f32 %v195, %v995
  %v1252 = vmax.f32 %v196, %v996
  %v1253 = vmax.f32 %v197, %v997
  %v1254 = vmax.f32 %v198, %v998
  %v1255 = vmax.f32 %v199, %v999
  %v1256 = vmax.f32 %v208, %v1000
  %v1257 = vmax.f32 %v209, %v1001
  %v1258 = vmax.f32 %v210, %v1002
  %v1259 = vmax.f32 %v211, %v1003
  %v1260 = vmax.f32 %v212, %v1004
  %v1261 = vmax.f32 %v213, %v1005
  %v1262 = vmax.f32 %v214, %v1006
  %v1263 = vmax.f32 %v215, %v1007
  %v1264 = vmax.f32 %v224, %v1008
  %v1265 = vmax.f32 %v225, %v1009
  %v1266 = vmax.f32 %v226, %v1010
  %v1267 = vmax.f32 %v227, %v1011
  %v1268 = vmax.f32 %v228, %v1012
  %v1269 = vmax.f32 %v229, %v1013
  %v1270 = vmax.f32 %v230, %v1014
  %v1271 = vmax.f32 %v231, %v1015
  %v1272 = vmax.f32 %v240, %v1016
  %v1273 = vmax.f32 %v241, %v1017
  %v1274 = vmax.f32 %v242, %v1018
  %v1275 = vmax.f32 %v243, %v1019
  %v1276 = vmax.f32 %v244, %v1020
  %v1277 = vmax.f32 %v245, %v1021
  %v1278 = vmax.f32 %v246, %v1022
  %v1279 = vmax.f32 %v247, %v1023
  %v1280 = vmax.f32 %v256, %v1024
  %v1281 = vmax.f32 %v257, %v1025
  %v1282 = vmax.f32 %v258, %v1026
  %v1283 = vmax.f32 %v259, %v1027
  %v1284 = vmax.f32 %v260, %v1028
  %v1285 = vmax.f32 %v261, %v1029
  %v1286 = vmax.f32 %v262, %v1030
  %v1287 = vmax.f32 %v263, %v1031
  %v1288 = vmax.f32 %v648, %v1160
  %v1289 = vmax.f32 %v649, %v1161
  %v1290 = vmax.f32 %v650, %v1162
  %v1291 = vmax.f32 %v651, %v1163
  %v1292 = vmax.f32 %v652, %v1164
  %v1293 = vmax.f32 %v653, %v1165
  %v1294 = vmax.f32 %v654, %v1166
  %v1295 = vmax.f32 %v655, %v1167
  %v1296 = vmax.f32 %v656, %v1168
  %v1297 = vmax.f32 %v657, %v1169
  %v1298 = vmax.f32 %v658, %v1170
  %v1299 = vmax.f32 %v659, %v1171
  %v1300 = vmax.f32 %v660, %v1172
  %v1301 = vmax.f32 %v661, %v1173
  %v1302 = vmax.f32 %v662, %v1174
  %v1303 = vmax.f32 %v663, %v1175
  %v1304 = vmax.f32 %v664, %v1176
  %v1305 = vmax.f32 %v665, %v1177
  %v1306 = vmax.f32 %v666, %v1178
  %v1307 = vmax.f32 %v667, %v1179
  %v1308 = vmax.f32 %v668, %v1180
  %v1309 = vmax.f32 %v669, %v1181
  %v1310 = vmax.f32 %v670, %v1182
  %v1311 = vmax.f32 %v671, %v1183
  %v1312 = vmax.f32 %v672, %v1184
  %v1313 = vmax.f32 %v673, %v1185
  %v1314 = vmax.f32 %v674, %v1186
  %v1315 = vmax.f32 %v675, %v1187
  %v1316 = vmax.f32 %v676, %v1188
  %v1317 = vmax.f32 %v677, %v1189
  %v1318 = vmax.f32 %v678, %v1190
  %v1319 = vmax.f32 %v679, %v1191
  %v1320 = vmax.f32 %v680, %v1192
  %v1321 = vmax.f32 %v681, %v1193
  %v1322 = vmax.f32 %v682, %v1194
  %v1323 = vmax.f32 %v683, %v1195
  %v1324 = vmax.f32 %v684, %v1196
  %v1325 = vmax.f32 %v685, %v1197
  %v1326 = vmax.f32 %v686, %v1198
  %v1327 = vmax.f32 %v687, %v1199
  %v1328 = vmax.f32 %v688, %v1200
  %v1329 = vmax.f32 %v689, %v1201
  %v1330 = vmax.f32 %v690, %v1202
  %v1331 = vmax.f32 %v691, %v1203
  %v1332 = vmax.f32 %v692, %v1204
  %v1333 = vmax.f32 %v693, %v1205
  %v1334 = vmax.f32 %v694, %v1206
  %v1335 = vmax.f32 %v695, %v1207
  %v1336 = vmax.f32 %v696, %v1208
  %v1337 = vmax.f32 %v697, %v1209
  %v1338 = vmax.f32 %v698, %v1210
  %v1339 = vmax.f32 %v699, %v1211
  %v1340 = vmax.f32 %v700, %v1212
  %v1341 = vmax.f32 %v701, %v1213
  %v1342 = vmax.f32 %v702, %v1214
  %v1343 = vmax.f32 %v703, %v1215
  %v1344 = vmax.f32 %v704, %v1216
  %v1345 = vmax.f32 %v705, %v1217
  %v1346 = vmax.f32 %v706, %v1218
  %v1347 = vmax.f32 %v707, %v1219
  %v1348 = vmax.f32 %v708, %v1220
  %v1349 = vmax.f32 %v709, %v1221
  %v1350 = vmax.f32 %v710, %v1222
  %v1351 = vmax.f32 %v711, %v1223
  %v1352 = vmax.f32 %v712, %v1224
  %v1353 = vmax.f32 %v713, %v1225
  %v1354 = vmax.f32 %v714, %v1226
  %v1355 = vmax.f32 %v715, %v1227
  %v1356 = vmax.f32 %v716, %v1228
  %v1357 = vmax.f32 %v717, %v1229
  %v1358 = vmax.f32 %v718, %v1230
  %v1359 = vmax.f32 %v719, %v1231
  %v1360 = vmax.f32 %v720, %v1232
  %v1361 = vmax.f32 %v721, %v1233
  %v1362 = vmax.f32 %v722, %v1234
  %v1363 = vmax.f32 %v723, %v1235
  %v1364 = vmax.f32 %v724, %v1236
  %v1365 = vmax.f32 %v725, %v1237
  %v1366 = vmax.f32 %v726, %v1238
  %v1367 = vmax.f32 %v727, %v1239
  %v1368 = vmax.f32 %v728, %v1240
  %v1369 = vmax.f32 %v729, %v1241
  %v1370 = vmax.f32 %v730, %v1242
  %v1371 = vmax.f32 %v731, %v1243
  %v1372 = vmax.f32 %v732, %v1244
  %v1373 = vmax.f32 %v733, %v1245
  %v1374 = vmax.f32 %v734, %v1246
  %v1375 = vmax.f32 %v735, %v1247
  %v1376 = vmax.f32 %v736, %v1248
  %v1377 = vmax.f32 %v737, %v1249
  %v1378 = vmax.f32 %v738, %v1250
  %v1379 = vmax.f32 %v739, %v1251
  %v1380 = vmax.f32 %v740, %v1252
  %v1381 = vmax.f32 %v741, %v1253
  %v1382 = vmax.f32 %v742, %v1254
  %v1383 = vmax.f32 %v743, %v1255
  %v1384 = vmax.f32 %v744, %v1256
  %v1385 = vmax.f32 %v745, %v1257
  %v1386 = vmax.f32 %v746, %v1258
  %v1387 = vmax.f32 %v747, %v1259
  %v1388 = vmax.f32 %v748, %v1260
  %v1389 = vmax.f32 %v749, %v1261
  %v1390 = vmax.f32 %v750, %v1262
  %v1391 = vmax.f32 %v751, %v1263
  %v1392 = vmax.f32 %v752, %v1264
  %v1393 = vmax.f32 %v753, %v1265
  %v1394 = vmax.f32 %v754, %v1266
  %v1395 = vmax.f32 %v755, %v1267
  %v1396 = vmax.f32 %v756, %v1268
  %v1397 = vmax.f32 %v757, %v1269
  %v1398 = vmax.f32 %v758, %v1270
  %v1399 = vmax.f32 %v759, %v1271
  %v1400 = vmax.f32 %v760, %v1272
  %v1401 = vmax.f32 %v761, %v1273
  %v1402 = vmax.f32 %v762, %v1274
  %v1403 = vmax.f32 %v763, %v1275
  %v1404 = vmax.f32 %v764, %v1276
  %v1405 = vmax.f32 %v765, %v1277
  %v1406 = vmax.f32 %v766, %v1278
  %v1407 = vmax.f32 %v767, %v1279
  %v1408 = vmax.f32 %v768, %v1280
  %v1409 = vmax.f32 %v769, %v1281
  %v1410 = vmax.f32 %v770, %v1282
  %v1411 = vmax.f32 %v771, %v1283
  %v1412 = vmax.f32 %v772, %v1284
  %v1413 = vmax.f32 %v773, %v1285
  %v1414 = vmax.f32 %v774, %v1286
  %v1415 = vmax.f32 %v775, %v1287
  %v1416 = vpack.c.bf16 %v1288, %v1288
  %v1417 = vpack.c.bf16 %v1289, %v1289
  %v1418 = vpack.c.bf16 %v1290, %v1290
  %v1419 = vpack.c.bf16 %v1291, %v1291
  %v1420 = vpack.c.bf16 %v1292, %v1292
  %v1421 = vpack.c.bf16 %v1293, %v1293
  %v1422 = vpack.c.bf16 %v1294, %v1294
  %v1423 = vpack.c.bf16 %v1295, %v1295
  %v1424 = vpack.c.bf16 %v1296, %v1296
  %v1425 = vpack.c.bf16 %v1297, %v1297
  %v1426 = vpack.c.bf16 %v1298, %v1298
  %v1427 = vpack.c.bf16 %v1299, %v1299
  %v1428 = vpack.c.bf16 %v1300, %v1300
  %v1429 = vpack.c.bf16 %v1301, %v1301
  %v1430 = vpack.c.bf16 %v1302, %v1302
  %v1431 = vpack.c.bf16 %v1303, %v1303
  %v1432 = vpack.c.bf16 %v1304, %v1304
  %v1433 = vpack.c.bf16 %v1305, %v1305
  %v1434 = vpack.c.bf16 %v1306, %v1306
  %v1435 = vpack.c.bf16 %v1307, %v1307
  %v1436 = vpack.c.bf16 %v1308, %v1308
  %v1437 = vpack.c.bf16 %v1309, %v1309
  %v1438 = vpack.c.bf16 %v1310, %v1310
  %v1439 = vpack.c.bf16 %v1311, %v1311
  %v1440 = vpack.c.bf16 %v1312, %v1312
  %v1441 = vpack.c.bf16 %v1313, %v1313
  %v1442 = vpack.c.bf16 %v1314, %v1314
  %v1443 = vpack.c.bf16 %v1315, %v1315
  %v1444 = vpack.c.bf16 %v1316, %v1316
  %v1445 = vpack.c.bf16 %v1317, %v1317
  %v1446 = vpack.c.bf16 %v1318, %v1318
  %v1447 = vpack.c.bf16 %v1319, %v1319
  %v1448 = vpack.c.bf16 %v1320, %v1320
  %v1449 = vpack.c.bf16 %v1321, %v1321
  %v1450 = vpack.c.bf16 %v1322, %v1322
  %v1451 = vpack.c.bf16 %v1323, %v1323
  %v1452 = vpack.c.bf16 %v1324, %v1324
  %v1453 = vpack.c.bf16 %v1325, %v1325
  %v1454 = vpack.c.bf16 %v1326, %v1326
  %v1455 = vpack.c.bf16 %v1327, %v1327
  %v1456 = vpack.c.bf16 %v1328, %v1328
  %v1457 = vpack.c.bf16 %v1329, %v1329
  %v1458 = vpack.c.bf16 %v1330, %v1330
  %v1459 = vpack.c.bf16 %v1331, %v1331
  %v1460 = vpack.c.bf16 %v1332, %v1332
  %v1461 = vpack.c.bf16 %v1333, %v1333
  %v1462 = vpack.c.bf16 %v1334, %v1334
  %v1463 = vpack.c.bf16 %v1335, %v1335
  %v1464 = vpack.c.bf16 %v1336, %v1336
  %v1465 = vpack.c.bf16 %v1337, %v1337
  %v1466 = vpack.c.bf16 %v1338, %v1338
  %v1467 = vpack.c.bf16 %v1339, %v1339
  %v1468 = vpack.c.bf16 %v1340, %v1340
  %v1469 = vpack.c.bf16 %v1341, %v1341
  %v1470 = vpack.c.bf16 %v1342, %v1342
  %v1471 = vpack.c.bf16 %v1343, %v1343
  %v1472 = vpack.c.bf16 %v1344, %v1344
  %v1473 = vpack.c.bf16 %v1345, %v1345
  %v1474 = vpack.c.bf16 %v1346, %v1346
  %v1475 = vpack.c.bf16 %v1347, %v1347
  %v1476 = vpack.c.bf16 %v1348, %v1348
  %v1477 = vpack.c.bf16 %v1349, %v1349
  %v1478 = vpack.c.bf16 %v1350, %v1350
  %v1479 = vpack.c.bf16 %v1351, %v1351
  %v1480 = vpack.c.bf16 %v1352, %v1352
  %v1481 = vpack.c.bf16 %v1353, %v1353
  %v1482 = vpack.c.bf16 %v1354, %v1354
  %v1483 = vpack.c.bf16 %v1355, %v1355
  %v1484 = vpack.c.bf16 %v1356, %v1356
  %v1485 = vpack.c.bf16 %v1357, %v1357
  %v1486 = vpack.c.bf16 %v1358, %v1358
  %v1487 = vpack.c.bf16 %v1359, %v1359
  %v1488 = vpack.c.bf16 %v1360, %v1360
  %v1489 = vpack.c.bf16 %v1361, %v1361
  %v1490 = vpack.c.bf16 %v1362, %v1362
  %v1491 = vpack.c.bf16 %v1363, %v1363
  %v1492 = vpack.c.bf16 %v1364, %v1364
  %v1493 = vpack.c.bf16 %v1365, %v1365
  %v1494 = vpack.c.bf16 %v1366, %v1366
  %v1495 = vpack.c.bf16 %v1367, %v1367
  %v1496 = vpack.c.bf16 %v1368, %v1368
  %v1497 = vpack.c.bf16 %v1369, %v1369
  %v1498 = vpack.c.bf16 %v1370, %v1370
  %v1499 = vpack.c.bf16 %v1371, %v1371
  %v1500 = vpack.c.bf16 %v1372, %v1372
  %v1501 = vpack.c.bf16 %v1373, %v1373
  %v1502 = vpack.c.bf16 %v1374, %v1374
  %v1503 = vpack.c.bf16 %v1375, %v1375
  %v1504 = vpack.c.bf16 %v1376, %v1376
  %v1505 = vpack.c.bf16 %v1377, %v1377
  %v1506 = vpack.c.bf16 %v1378, %v1378
  %v1507 = vpack.c.bf16 %v1379, %v1379
  %v1508 = vpack.c.bf16 %v1380, %v1380
  %v1509 = vpack.c.bf16 %v1381, %v1381
  %v1510 = vpack.c.bf16 %v1382, %v1382
  %v1511 = vpack.c.bf16 %v1383, %v1383
  %v1512 = vpack.c.bf16 %v1384, %v1384
  %v1513 = vpack.c.bf16 %v1385, %v1385
  %v1514 = vpack.c.bf16 %v1386, %v1386
  %v1515 = vpack.c.bf16 %v1387, %v1387
  %v1516 = vpack.c.bf16 %v1388, %v1388
  %v1517 = vpack.c.bf16 %v1389, %v1389
  %v1518 = vpack.c.bf16 %v1390, %v1390
  %v1519 = vpack.c.bf16 %v1391, %v1391
  %v1520 = vpack.c.bf16 %v1392, %v1392
  %v1521 = vpack.c.bf16 %v1393, %v1393
  %v1522 = vpack.c.bf16 %v1394, %v1394
  %v1523 = vpack.c.bf16 %v1395, %v1395
  %v1524 = vpack.c.bf16 %v1396, %v1396
  %v1525 = vpack.c.bf16 %v1397, %v1397
  %v1526 = vpack.c.bf16 %v1398, %v1398
  %v1527 = vpack.c.bf16 %v1399, %v1399
  %v1528 = vpack.c.bf16 %v1400, %v1400
  %v1529 = vpack.c.bf16 %v1401, %v1401
  %v1530 = vpack.c.bf16 %v1402, %v1402
  %v1531 = vpack.c.bf16 %v1403, %v1403
  %v1532 = vpack.c.bf16 %v1404, %v1404
  %v1533 = vpack.c.bf16 %v1405, %v1405
  %v1534 = vpack.c.bf16 %v1406, %v1406
  %v1535 = vpack.c.bf16 %v1407, %v1407
  %v1536 = vpack.c.bf16 %v1408, %v1408
  %v1537 = vpack.c.bf16 %v1409, %v1409
  %v1538 = vpack.c.bf16 %v1410, %v1410
  %v1539 = vpack.c.bf16 %v1411, %v1411
  %v1540 = vpack.c.bf16 %v1412, %v1412
  %v1541 = vpack.c.bf16 %v1413, %v1413
  %v1542 = vpack.c.bf16 %v1414, %v1414
  %v1543 = vpack.c.bf16 %v1415, %v1415
  %v1672 = vunpack.c.l.b16 %v1416
  %v1673 = vunpack.c.l.b16 %v1417
  %v1674 = vunpack.c.l.b16 %v1418
  %v1675 = vunpack.c.l.b16 %v1419
  %v1676 = vunpack.c.l.b16 %v1420
  %v1677 = vunpack.c.l.b16 %v1421
  %v1678 = vunpack.c.l.b16 %v1422
  %v1679 = vunpack.c.l.b16 %v1423
  %v1680 = vunpack.c.l.b16 %v1424
  %v1681 = vunpack.c.l.b16 %v1425
  %v1682 = vunpack.c.l.b16 %v1426
  %v1683 = vunpack.c.l.b16 %v1427
  %v1684 = vunpack.c.l.b16 %v1428
  %v1685 = vunpack.c.l.b16 %v1429
  %v1686 = vunpack.c.l.b16 %v1430
  %v1687 = vunpack.c.l.b16 %v1431
  %v1688 = vunpack.c.l.b16 %v1432
  %v1689 = vunpack.c.l.b16 %v1433
  %v1690 = vunpack.c.l.b16 %v1434
  %v1691 = vunpack.c.l.b16 %v1435
  %v1692 = vunpack.c.l.b16 %v1436
  %v1693 = vunpack.c.l.b16 %v1437
  %v1694 = vunpack.c.l.b16 %v1438
  %v1695 = vunpack.c.l.b16 %v1439
  %v1696 = vunpack.c.l.b16 %v1440
  %v1697 = vunpack.c.l.b16 %v1441
  %v1698 = vunpack.c.l.b16 %v1442
  %v1699 = vunpack.c.l.b16 %v1443
  %v1700 = vunpack.c.l.b16 %v1444
  %v1701 = vunpack.c.l.b16 %v1445
  %v1702 = vunpack.c.l.b16 %v1446
  %v1703 = vunpack.c.l.b16 %v1447
  %v1704 = vunpack.c.l.b16 %v1448
  %v1705 = vunpack.c.l.b16 %v1449
  %v1706 = vunpack.c.l.b16 %v1450
  %v1707 = vunpack.c.l.b16 %v1451
  %v1708 = vunpack.c.l.b16 %v1452
  %v1709 = vunpack.c.l.b16 %v1453
  %v1710 = vunpack.c.l.b16 %v1454
  %v1711 = vunpack.c.l.b16 %v1455
  %v1712 = vunpack.c.l.b16 %v1456
  %v1713 = vunpack.c.l.b16 %v1457
  %v1714 = vunpack.c.l.b16 %v1458
  %v1715 = vunpack.c.l.b16 %v1459
  %v1716 = vunpack.c.l.b16 %v1460
  %v1717 = vunpack.c.l.b16 %v1461
  %v1718 = vunpack.c.l.b16 %v1462
  %v1719 = vunpack.c.l.b16 %v1463
  %v1720 = vunpack.c.l.b16 %v1464
  %v1721 = vunpack.c.l.b16 %v1465
  %v1722 = vunpack.c.l.b16 %v1466
  %v1723 = vunpack.c.l.b16 %v1467
  %v1724 = vunpack.c.l.b16 %v1468
  %v1725 = vunpack.c.l.b16 %v1469
  %v1726 = vunpack.c.l.b16 %v1470
  %v1727 = vunpack.c.l.b16 %v1471
  %v1728 = vunpack.c.l.b16 %v1472
  %v1729 = vunpack.c.l.b16 %v1473
  %v1730 = vunpack.c.l.b16 %v1474
  %v1731 = vunpack.c.l.b16 %v1475
  %v1732 = vunpack.c.l.b16 %v1476
  %v1733 = vunpack.c.l.b16 %v1477
  %v1734 = vunpack.c.l.b16 %v1478
  %v1735 = vunpack.c.l.b16 %v1479
  %v1736 = vunpack.c.l.b16 %v1480
  %v1737 = vunpack.c.l.b16 %v1481
  %v1738 = vunpack.c.l.b16 %v1482
  %v1739 = vunpack.c.l.b16 %v1483
  %v1740 = vunpack.c.l.b16 %v1484
  %v1741 = vunpack.c.l.b16 %v1485
  %v1742 = vunpack.c.l.b16 %v1486
  %v1743 = vunpack.c.l.b16 %v1487
  %v1744 = vunpack.c.l.b16 %v1488
  %v1745 = vunpack.c.l.b16 %v1489
  %v1746 = vunpack.c.l.b16 %v1490
  %v1747 = vunpack.c.l.b16 %v1491
  %v1748 = vunpack.c.l.b16 %v1492
  %v1749 = vunpack.c.l.b16 %v1493
  %v1750 = vunpack.c.l.b16 %v1494
  %v1751 = vunpack.c.l.b16 %v1495
  %v1752 = vunpack.c.l.b16 %v1496
  %v1753 = vunpack.c.l.b16 %v1497
  %v1754 = vunpack.c.l.b16 %v1498
  %v1755 = vunpack.c.l.b16 %v1499
  %v1756 = vunpack.c.l.b16 %v1500
  %v1757 = vunpack.c.l.b16 %v1501
  %v1758 = vunpack.c.l.b16 %v1502
  %v1759 = vunpack.c.l.b16 %v1503
  %v1760 = vunpack.c.l.b16 %v1504
  %v1761 = vunpack.c.l.b16 %v1505
  %v1762 = vunpack.c.l.b16 %v1506
  %v1763 = vunpack.c.l.b16 %v1507
  %v1764 = vunpack.c.l.b16 %v1508
  %v1765 = vunpack.c.l.b16 %v1509
  %v1766 = vunpack.c.l.b16 %v1510
  %v1767 = vunpack.c.l.b16 %v1511
  %v1768 = vunpack.c.l.b16 %v1512
  %v1769 = vunpack.c.l.b16 %v1513
  %v1770 = vunpack.c.l.b16 %v1514
  %v1771 = vunpack.c.l.b16 %v1515
  %v1772 = vunpack.c.l.b16 %v1516
  %v1773 = vunpack.c.l.b16 %v1517
  %v1774 = vunpack.c.l.b16 %v1518
  %v1775 = vunpack.c.l.b16 %v1519
  %v1776 = vunpack.c.l.b16 %v1520
  %v1777 = vunpack.c.l.b16 %v1521
  %v1778 = vunpack.c.l.b16 %v1522
  %v1779 = vunpack.c.l.b16 %v1523
  %v1780 = vunpack.c.l.b16 %v1524
  %v1781 = vunpack.c.l.b16 %v1525
  %v1782 = vunpack.c.l.b16 %v1526
  %v1783 = vunpack.c.l.b16 %v1527
  %v1784 = vunpack.c.l.b16 %v1528
  %v1785 = vunpack.c.l.b16 %v1529
  %v1786 = vunpack.c.l.b16 %v1530
  %v1787 = vunpack.c.l.b16 %v1531
  %v1788 = vunpack.c.l.b16 %v1532
  %v1789 = vunpack.c.l.b16 %v1533
  %v1790 = vunpack.c.l.b16 %v1534
  %v1791 = vunpack.c.l.b16 %v1535
  %v1792 = vunpack.c.l.b16 %v1536
  %v1793 = vunpack.c.l.b16 %v1537
  %v1794 = vunpack.c.l.b16 %v1538
  %v1795 = vunpack.c.l.b16 %v1539
  %v1796 = vunpack.c.l.b16 %v1540
  %v1797 = vunpack.c.l.b16 %v1541
  %v1798 = vunpack.c.l.b16 %v1542
  %v1799 = vunpack.c.l.b16 %v1543
  %v1800 = vpack.c.b16 %v1672, %v1672
  %v1801 = vpack.c.b16 %v1673, %v1673
  %v1802 = vpack.c.b16 %v1674, %v1674
  %v1803 = vpack.c.b16 %v1675, %v1675
  %v1804 = vpack.c.b16 %v1676, %v1676
  %v1805 = vpack.c.b16 %v1677, %v1677
  %v1806 = vpack.c.b16 %v1678, %v1678
  %v1807 = vpack.c.b16 %v1679, %v1679
  %v1808 = vpack.c.b16 %v1680, %v1680
  %v1809 = vpack.c.b16 %v1681, %v1681
  %v1810 = vpack.c.b16 %v1682, %v1682
  %v1811 = vpack.c.b16 %v1683, %v1683
  %v1812 = vpack.c.b16 %v1684, %v1684
  %v1813 = vpack.c.b16 %v1685, %v1685
  %v1814 = vpack.c.b16 %v1686, %v1686
  %v1815 = vpack.c.b16 %v1687, %v1687
  %v1816 = vpack.c.b16 %v1688, %v1688
  %v1817 = vpack.c.b16 %v1689, %v1689
  %v1818 = vpack.c.b16 %v1690, %v1690
  %v1819 = vpack.c.b16 %v1691, %v1691
  %v1820 = vpack.c.b16 %v1692, %v1692
  %v1821 = vpack.c.b16 %v1693, %v1693
  %v1822 = vpack.c.b16 %v1694, %v1694
  %v1823 = vpack.c.b16 %v1695, %v1695
  %v1824 = vpack.c.b16 %v1696, %v1696
  %v1825 = vpack.c.b16 %v1697, %v1697
  %v1826 = vpack.c.b16 %v1698, %v1698
  %v1827 = vpack.c.b16 %v1699, %v1699
  %v1828 = vpack.c.b16 %v1700, %v1700
  %v1829 = vpack.c.b16 %v1701, %v1701
  %v1830 = vpack.c.b16 %v1702, %v1702
  %v1831 = vpack.c.b16 %v1703, %v1703
  %v1832 = vpack.c.b16 %v1704, %v1704
  %v1833 = vpack.c.b16 %v1705, %v1705
  %v1834 = vpack.c.b16 %v1706, %v1706
  %v1835 = vpack.c.b16 %v1707, %v1707
  %v1836 = vpack.c.b16 %v1708, %v1708
  %v1837 = vpack.c.b16 %v1709, %v1709
  %v1838 = vpack.c.b16 %v1710, %v1710
  %v1839 = vpack.c.b16 %v1711, %v1711
  %v1840 = vpack.c.b16 %v1712, %v1712
  %v1841 = vpack.c.b16 %v1713, %v1713
  %v1842 = vpack.c.b16 %v1714, %v1714
  %v1843 = vpack.c.b16 %v1715, %v1715
  %v1844 = vpack.c.b16 %v1716, %v1716
  %v1845 = vpack.c.b16 %v1717, %v1717
  %v1846 = vpack.c.b16 %v1718, %v1718
  %v1847 = vpack.c.b16 %v1719, %v1719
  %v1848 = vpack.c.b16 %v1720, %v1720
  %v1849 = vpack.c.b16 %v1721, %v1721
  %v1850 = vpack.c.b16 %v1722, %v1722
  %v1851 = vpack.c.b16 %v1723, %v1723
  %v1852 = vpack.c.b16 %v1724, %v1724
  %v1853 = vpack.c.b16 %v1725, %v1725
  %v1854 = vpack.c.b16 %v1726, %v1726
  %v1855 = vpack.c.b16 %v1727, %v1727
  %v1856 = vpack.c.b16 %v1728, %v1728
  %v1857 = vpack.c.b16 %v1729, %v1729
  %v1858 = vpack.c.b16 %v1730, %v1730
  %v1859 = vpack.c.b16 %v1731, %v1731
  %v1860 = vpack.c.b16 %v1732, %v1732
  %v1861 = vpack.c.b16 %v1733, %v1733
  %v1862 = vpack.c.b16 %v1734, %v1734
  %v1863 = vpack.c.b16 %v1735, %v1735
  %v1864 = vpack.c.b16 %v1736, %v1736
  %v1865 = vpack.c.b16 %v1737, %v1737
  %v1866 = vpack.c.b16 %v1738, %v1738
  %v1867 = vpack.c.b16 %v1739, %v1739
  %v1868 = vpack.c.b16 %v1740, %v1740
  %v1869 = vpack.c.b16 %v1741, %v1741
  %v1870 = vpack.c.b16 %v1742, %v1742
  %v1871 = vpack.c.b16 %v1743, %v1743
  %v1872 = vpack.c.b16 %v1744, %v1744
  %v1873 = vpack.c.b16 %v1745, %v1745
  %v1874 = vpack.c.b16 %v1746, %v1746
  %v1875 = vpack.c.b16 %v1747, %v1747
  %v1876 = vpack.c.b16 %v1748, %v1748
  %v1877 = vpack.c.b16 %v1749, %v1749
  %v1878 = vpack.c.b16 %v1750, %v1750
  %v1879 = vpack.c.b16 %v1751, %v1751
  %v1880 = vpack.c.b16 %v1752, %v1752
  %v1881 = vpack.c.b16 %v1753, %v1753
  %v1882 = vpack.c.b16 %v1754, %v1754
  %v1883 = vpack.c.b16 %v1755, %v1755
  %v1884 = vpack.c.b16 %v1756, %v1756
  %v1885 = vpack.c.b16 %v1757, %v1757
  %v1886 = vpack.c.b16 %v1758, %v1758
  %v1887 = vpack.c.b16 %v1759, %v1759
  %v1888 = vpack.c.b16 %v1760, %v1760
  %v1889 = vpack.c.b16 %v1761, %v1761
  %v1890 = vpack.c.b16 %v1762, %v1762
  %v1891 = vpack.c.b16 %v1763, %v1763
  %v1892 = vpack.c.b16 %v1764, %v1764
  %v1893 = vpack.c.b16 %v1765, %v1765
  %v1894 = vpack.c.b16 %v1766, %v1766
  %v1895 = vpack.c.b16 %v1767, %v1767
  %v1896 = vpack.c.b16 %v1768, %v1768
  %v1897 = vpack.c.b16 %v1769, %v1769
  %v1898 = vpack.c.b16 %v1770, %v1770
  %v1899 = vpack.c.b16 %v1771, %v1771
  %v1900 = vpack.c.b16 %v1772, %v1772
  %v1901 = vpack.c.b16 %v1773, %v1773
  %v1902 = vpack.c.b16 %v1774, %v1774
  %v1903 = vpack.c.b16 %v1775, %v1775
  %v1904 = vpack.c.b16 %v1776, %v1776
  %v1905 = vpack.c.b16 %v1777, %v1777
  %v1906 = vpack.c.b16 %v1778, %v1778
  %v1907 = vpack.c.b16 %v1779, %v1779
  %v1908 = vpack.c.b16 %v1780, %v1780
  %v1909 = vpack.c.b16 %v1781, %v1781
  %v1910 = vpack.c.b16 %v1782, %v1782
  %v1911 = vpack.c.b16 %v1783, %v1783
  %v1912 = vpack.c.b16 %v1784, %v1784
  %v1913 = vpack.c.b16 %v1785, %v1785
  %v1914 = vpack.c.b16 %v1786, %v1786
  %v1915 = vpack.c.b16 %v1787, %v1787
  %v1916 = vpack.c.b16 %v1788, %v1788
  %v1917 = vpack.c.b16 %v1789, %v1789
  %v1918 = vpack.c.b16 %v1790, %v1790
  %v1919 = vpack.c.b16 %v1791, %v1791
  %v1920 = vpack.c.b16 %v1792, %v1792
  %v1921 = vpack.c.b16 %v1793, %v1793
  %v1922 = vpack.c.b16 %v1794, %v1794
  %v1923 = vpack.c.b16 %v1795, %v1795
  %v1924 = vpack.c.b16 %v1796, %v1796
  %v1925 = vpack.c.b16 %v1797, %v1797
  %v1926 = vpack.c.b16 %v1798, %v1798
  %v1927 = vpack.c.b16 %v1799, %v1799
  %v1928 = vunpack.c.l.b16 %v1800
  %v1929 = vunpack.c.l.b16 %v1801
  %v1930 = vunpack.c.l.b16 %v1802
  %v1931 = vunpack.c.l.b16 %v1803
  %v1932 = vunpack.c.l.b16 %v1804
  %v1933 = vunpack.c.l.b16 %v1805
  %v1934 = vunpack.c.l.b16 %v1806
  %v1935 = vunpack.c.l.b16 %v1807
  %v1936 = vunpack.c.l.b16 %v1808
  %v1937 = vunpack.c.l.b16 %v1809
  %v1938 = vunpack.c.l.b16 %v1810
  %v1939 = vunpack.c.l.b16 %v1811
  %v1940 = vunpack.c.l.b16 %v1812
  %v1941 = vunpack.c.l.b16 %v1813
  %v1942 = vunpack.c.l.b16 %v1814
  %v1943 = vunpack.c.l.b16 %v1815
  %v1944 = vunpack.c.l.b16 %v1816
  %v1945 = vunpack.c.l.b16 %v1817
  %v1946 = vunpack.c.l.b16 %v1818
  %v1947 = vunpack.c.l.b16 %v1819
  %v1948 = vunpack.c.l.b16 %v1820
  %v1949 = vunpack.c.l.b16 %v1821
  %v1950 = vunpack.c.l.b16 %v1822
  %v1951 = vunpack.c.l.b16 %v1823
  %v1952 = vunpack.c.l.b16 %v1824
  %v1953 = vunpack.c.l.b16 %v1825
  %v1954 = vunpack.c.l.b16 %v1826
  %v1955 = vunpack.c.l.b16 %v1827
  %v1956 = vunpack.c.l.b16 %v1828
  %v1957 = vunpack.c.l.b16 %v1829
  %v1958 = vunpack.c.l.b16 %v1830
  %v1959 = vunpack.c.l.b16 %v1831
  %v1960 = vunpack.c.l.b16 %v1832
  %v1961 = vunpack.c.l.b16 %v1833
  %v1962 = vunpack.c.l.b16 %v1834
  %v1963 = vunpack.c.l.b16 %v1835
  %v1964 = vunpack.c.l.b16 %v1836
  %v1965 = vunpack.c.l.b16 %v1837
  %v1966 = vunpack.c.l.b16 %v1838
  %v1967 = vunpack.c.l.b16 %v1839
  %v1968 = vunpack.c.l.b16 %v1840
  %v1969 = vunpack.c.l.b16 %v1841
  %v1970 = vunpack.c.l.b16 %v1842
  %v1971 = vunpack.c.l.b16 %v1843
  %v1972 = vunpack.c.l.b16 %v1844
  %v1973 = vunpack.c.l.b16 %v1845
  %v1974 = vunpack.c.l.b16 %v1846
  %v1975 = vunpack.c.l.b16 %v1847
  %v1976 = vunpack.c.l.b16 %v1848
  %v1977 = vunpack.c.l.b16 %v1849
  %v1978 = vunpack.c.l.b16 %v1850
  %v1979 = vunpack.c.l.b16 %v1851
  %v1980 = vunpack.c.l.b16 %v1852
  %v1981 = vunpack.c.l.b16 %v1853
  %v1982 = vunpack.c.l.b16 %v1854
  %v1983 = vunpack.c.l.b16 %v1855
  %v1984 = vunpack.c.l.b16 %v1856
  %v1985 = vunpack.c.l.b16 %v1857
  %v1986 = vunpack.c.l.b16 %v1858
  %v1987 = vunpack.c.l.b16 %v1859
  %v1988 = vunpack.c.l.b16 %v1860
  %v1989 = vunpack.c.l.b16 %v1861
  %v1990 = vunpack.c.l.b16 %v1862
  %v1991 = vunpack.c.l.b16 %v1863
  %v1992 = vunpack.c.l.b16 %v1864
  %v1993 = vunpack.c.l.b16 %v1865
  %v1994 = vunpack.c.l.b16 %v1866
  %v1995 = vunpack.c.l.b16 %v1867
  %v1996 = vunpack.c.l.b16 %v1868
  %v1997 = vunpack.c.l.b16 %v1869
  %v1998 = vunpack.c.l.b16 %v1870
  %v1999 = vunpack.c.l.b16 %v1871
  %v2000 = vunpack.c.l.b16 %v1872
  %v2001 = vunpack.c.l.b16 %v1873
  %v2002 = vunpack.c.l.b16 %v1874
  %v2003 = vunpack.c.l.b16 %v1875
  %v2004 = vunpack.c.l.b16 %v1876
  %v2005 = vunpack.c.l.b16 %v1877
  %v2006 = vunpack.c.l.b16 %v1878
  %v2007 = vunpack.c.l.b16 %v1879
  %v2008 = vunpack.c.l.b16 %v1880
  %v2009 = vunpack.c.l.b16 %v1881
  %v2010 = vunpack.c.l.b16 %v1882
  %v2011 = vunpack.c.l.b16 %v1883
  %v2012 = vunpack.c.l.b16 %v1884
  %v2013 = vunpack.c.l.b16 %v1885
  %v2014 = vunpack.c.l.b16 %v1886
  %v2015 = vunpack.c.l.b16 %v1887
  %v2016 = vunpack.c.l.b16 %v1888
  %v2017 = vunpack.c.l.b16 %v1889
  %v2018 = vunpack.c.l.b16 %v1890
  %v2019 = vunpack.c.l.b16 %v1891
  %v2020 = vunpack.c.l.b16 %v1892
  %v2021 = vunpack.c.l.b16 %v1893
  %v2022 = vunpack.c.l.b16 %v1894
  %v2023 = vunpack.c.l.b16 %v1895
  %v2024 = vunpack.c.l.b16 %v1896
  %v2025 = vunpack.c.l.b16 %v1897
  %v2026 = vunpack.c.l.b16 %v1898
  %v2027 = vunpack.c.l.b16 %v1899
  %v2028 = vunpack.c.l.b16 %v1900
  %v2029 = vunpack.c.l.b16 %v1901
  %v2030 = vunpack.c.l.b16 %v1902
  %v2031 = vunpack.c.l.b16 %v1903
  %v2032 = vunpack.c.l.b16 %v1904
  %v2033 = vunpack.c.l.b16 %v1905
  %v2034 = vunpack.c.l.b16 %v1906
  %v2035 = vunpack.c.l.b16 %v1907
  %v2036 = vunpack.c.l.b16 %v1908
  %v2037 = vunpack.c.l.b16 %v1909
  %v2038 = vunpack.c.l.b16 %v1910
  %v2039 = vunpack.c.l.b16 %v1911
  %v2040 = vunpack.c.l.b16 %v1912
  %v2041 = vunpack.c.l.b16 %v1913
  %v2042 = vunpack.c.l.b16 %v1914
  %v2043 = vunpack.c.l.b16 %v1915
  %v2044 = vunpack.c.l.b16 %v1916
  %v2045 = vunpack.c.l.b16 %v1917
  %v2046 = vunpack.c.l.b16 %v1918
  %v2047 = vunpack.c.l.b16 %v1919
  %v2048 = vunpack.c.l.b16 %v1920
  %v2049 = vunpack.c.l.b16 %v1921
  %v2050 = vunpack.c.l.b16 %v1922
  %v2051 = vunpack.c.l.b16 %v1923
  %v2052 = vunpack.c.l.b16 %v1924
  %v2053 = vunpack.c.l.b16 %v1925
  %v2054 = vunpack.c.l.b16 %v1926
  %v2055 = vunpack.c.l.b16 %v1927
  %v2056 = vrot.slane %v1929, 7
  %vm2057 = vcmask 1041409
  %v2058 = vsel %vm2057, %v2056, %v1928
  %v2059 = vrot.slane %v1930, 6
  %vm2060 = vcmask 1042434
  %v2061 = vsel %vm2060, %v2059, %v2058
  %v2062 = vrot.slane %v1931, 5
  %vm2063 = vcmask 1043459
  %v2064 = vsel %vm2063, %v2062, %v2061
  %v2065 = vrot.slane %v1932, 4
  %vm2066 = vcmask 1044484
  %v2067 = vsel %vm2066, %v2065, %v2064
  %v2068 = vrot.slane %v1933, 3
  %vm2069 = vcmask 1045509
  %v2070 = vsel %vm2069, %v2068, %v2067
  %v2071 = vrot.slane %v1934, 2
  %vm2072 = vcmask 1046534
  %v2073 = vsel %vm2072, %v2071, %v2070
  %v2074 = vrot.slane %v1935, 1
  %vm2075 = vcmask 1047559
  %v2076 = vsel %vm2075, %v2074, %v2073
  %v2077 = vrot.slane %v1937, 7
  %v2078 = vsel %vm2057, %v2077, %v1936
  %v2079 = vrot.slane %v1938, 6
  %v2080 = vsel %vm2060, %v2079, %v2078
  %v2081 = vrot.slane %v1939, 5
  %v2082 = vsel %vm2063, %v2081, %v2080
  %v2083 = vrot.slane %v1940, 4
  %v2084 = vsel %vm2066, %v2083, %v2082
  %v2085 = vrot.slane %v1941, 3
  %v2086 = vsel %vm2069, %v2085, %v2084
  %v2087 = vrot.slane %v1942, 2
  %v2088 = vsel %vm2072, %v2087, %v2086
  %v2089 = vrot.slane %v1943, 1
  %v2090 = vsel %vm2075, %v2089, %v2088
  %v2091 = vrot.slane %v1945, 7
  %v2092 = vsel %vm2057, %v2091, %v1944
  %v2093 = vrot.slane %v1946, 6
  %v2094 = vsel %vm2060, %v2093, %v2092
  %v2095 = vrot.slane %v1947, 5
  %v2096 = vsel %vm2063, %v2095, %v2094
  %v2097 = vrot.slane %v1948, 4
  %v2098 = vsel %vm2066, %v2097, %v2096
  %v2099 = vrot.slane %v1949, 3
  %v2100 = vsel %vm2069, %v2099, %v2098
  %v2101 = vrot.slane %v1950, 2
  %v2102 = vsel %vm2072, %v2101, %v2100
  %v2103 = vrot.slane %v1951, 1
  %v2104 = vsel %vm2075, %v2103, %v2102
  %v2105 = vrot.slane %v1953, 7
  %v2106 = vsel %vm2057, %v2105, %v1952
  %v2107 = vrot.slane %v1954, 6
  %v2108 = vsel %vm2060, %v2107, %v2106
  %v2109 = vrot.slane %v1955, 5
  %v2110 = vsel %vm2063, %v2109, %v2108
  %v2111 = vrot.slane %v1956, 4
  %v2112 = vsel %vm2066, %v2111, %v2110
  %v2113 = vrot.slane %v1957, 3
  %v2114 = vsel %vm2069, %v2113, %v2112
  %v2115 = vrot.slane %v1958, 2
  %v2116 = vsel %vm2072, %v2115, %v2114
  %v2117 = vrot.slane %v1959, 1
  %v2118 = vsel %vm2075, %v2117, %v2116
  %v2119 = vrot.slane %v1961, 7
  %v2120 = vsel %vm2057, %v2119, %v1960
  %v2121 = vrot.slane %v1962, 6
  %v2122 = vsel %vm2060, %v2121, %v2120
  %v2123 = vrot.slane %v1963, 5
  %v2124 = vsel %vm2063, %v2123, %v2122
  %v2125 = vrot.slane %v1964, 4
  %v2126 = vsel %vm2066, %v2125, %v2124
  %v2127 = vrot.slane %v1965, 3
  %v2128 = vsel %vm2069, %v2127, %v2126
  %v2129 = vrot.slane %v1966, 2
  %v2130 = vsel %vm2072, %v2129, %v2128
  %v2131 = vrot.slane %v1967, 1
  %v2132 = vsel %vm2075, %v2131, %v2130
  %v2133 = vrot.slane %v1969, 7
  %v2134 = vsel %vm2057, %v2133, %v1968
  %v2135 = vrot.slane %v1970, 6
  %v2136 = vsel %vm2060, %v2135, %v2134
  %v2137 = vrot.slane %v1971, 5
  %v2138 = vsel %vm2063, %v2137, %v2136
  %v2139 = vrot.slane %v1972, 4
  %v2140 = vsel %vm2066, %v2139, %v2138
  %v2141 = vrot.slane %v1973, 3
  %v2142 = vsel %vm2069, %v2141, %v2140
  %v2143 = vrot.slane %v1974, 2
  %v2144 = vsel %vm2072, %v2143, %v2142
  %v2145 = vrot.slane %v1975, 1
  %v2146 = vsel %vm2075, %v2145, %v2144
  %v2147 = vrot.slane %v1977, 7
  %v2148 = vsel %vm2057, %v2147, %v1976
  %v2149 = vrot.slane %v1978, 6
  %v2150 = vsel %vm2060, %v2149, %v2148
  %v2151 = vrot.slane %v1979, 5
  %v2152 = vsel %vm2063, %v2151, %v2150
  %v2153 = vrot.slane %v1980, 4
  %v2154 = vsel %vm2066, %v2153, %v2152
  %v2155 = vrot.slane %v1981, 3
  %v2156 = vsel %vm2069, %v2155, %v2154
  %v2157 = vrot.slane %v1982, 2
  %v2158 = vsel %vm2072, %v2157, %v2156
  %v2159 = vrot.slane %v1983, 1
  %v2160 = vsel %vm2075, %v2159, %v2158
  %v2161 = vrot.slane %v1985, 7
  %v2162 = vsel %vm2057, %v2161, %v1984
  %v2163 = vrot.slane %v1986, 6
  %v2164 = vsel %vm2060, %v2163, %v2162
  %v2165 = vrot.slane %v1987, 5
  %v2166 = vsel %vm2063, %v2165, %v2164
  %v2167 = vrot.slane %v1988, 4
  %v2168 = vsel %vm2066, %v2167, %v2166
  %v2169 = vrot.slane %v1989, 3
  %v2170 = vsel %vm2069, %v2169, %v2168
  %v2171 = vrot.slane %v1990, 2
  %v2172 = vsel %vm2072, %v2171, %v2170
  %v2173 = vrot.slane %v1991, 1
  %v2174 = vsel %vm2075, %v2173, %v2172
  %v2175 = vrot.slane %v1993, 7
  %v2176 = vsel %vm2057, %v2175, %v1992
  %v2177 = vrot.slane %v1994, 6
  %v2178 = vsel %vm2060, %v2177, %v2176
  %v2179 = vrot.slane %v1995, 5
  %v2180 = vsel %vm2063, %v2179, %v2178
  %v2181 = vrot.slane %v1996, 4
  %v2182 = vsel %vm2066, %v2181, %v2180
  %v2183 = vrot.slane %v1997, 3
  %v2184 = vsel %vm2069, %v2183, %v2182
  %v2185 = vrot.slane %v1998, 2
  %v2186 = vsel %vm2072, %v2185, %v2184
  %v2187 = vrot.slane %v1999, 1
  %v2188 = vsel %vm2075, %v2187, %v2186
  %v2189 = vrot.slane %v2001, 7
  %v2190 = vsel %vm2057, %v2189, %v2000
  %v2191 = vrot.slane %v2002, 6
  %v2192 = vsel %vm2060, %v2191, %v2190
  %v2193 = vrot.slane %v2003, 5
  %v2194 = vsel %vm2063, %v2193, %v2192
  %v2195 = vrot.slane %v2004, 4
  %v2196 = vsel %vm2066, %v2195, %v2194
  %v2197 = vrot.slane %v2005, 3
  %v2198 = vsel %vm2069, %v2197, %v2196
  %v2199 = vrot.slane %v2006, 2
  %v2200 = vsel %vm2072, %v2199, %v2198
  %v2201 = vrot.slane %v2007, 1
  %v2202 = vsel %vm2075, %v2201, %v2200
  %v2203 = vrot.slane %v2009, 7
  %v2204 = vsel %vm2057, %v2203, %v2008
  %v2205 = vrot.slane %v2010, 6
  %v2206 = vsel %vm2060, %v2205, %v2204
  %v2207 = vrot.slane %v2011, 5
  %v2208 = vsel %vm2063, %v2207, %v2206
  %v2209 = vrot.slane %v2012, 4
  %v2210 = vsel %vm2066, %v2209, %v2208
  %v2211 = vrot.slane %v2013, 3
  %v2212 = vsel %vm2069, %v2211, %v2210
  %v2213 = vrot.slane %v2014, 2
  %v2214 = vsel %vm2072, %v2213, %v2212
  %v2215 = vrot.slane %v2015, 1
  %v2216 = vsel %vm2075, %v2215, %v2214
  %v2217 = vrot.slane %v2017, 7
  %v2218 = vsel %vm2057, %v2217, %v2016
  %v2219 = vrot.slane %v2018, 6
  %v2220 = vsel %vm2060, %v2219, %v2218
  %v2221 = vrot.slane %v2019, 5
  %v2222 = vsel %vm2063, %v2221, %v2220
  %v2223 = vrot.slane %v2020, 4
  %v2224 = vsel %vm2066, %v2223, %v2222
  %v2225 = vrot.slane %v2021, 3
  %v2226 = vsel %vm2069, %v2225, %v2224
  %v2227 = vrot.slane %v2022, 2
  %v2228 = vsel %vm2072, %v2227, %v2226
  %v2229 = vrot.slane %v2023, 1
  %v2230 = vsel %vm2075, %v2229, %v2228
  %v2231 = vrot.slane %v2025, 7
  %v2232 = vsel %vm2057, %v2231, %v2024
  %v2233 = vrot.slane %v2026, 6
  %v2234 = vsel %vm2060, %v2233, %v2232
  %v2235 = vrot.slane %v2027, 5
  %v2236 = vsel %vm2063, %v2235, %v2234
  %v2237 = vrot.slane %v2028, 4
  %v2238 = vsel %vm2066, %v2237, %v2236
  %v2239 = vrot.slane %v2029, 3
  %v2240 = vsel %vm2069, %v2239, %v2238
  %v2241 = vrot.slane %v2030, 2
  %v2242 = vsel %vm2072, %v2241, %v2240
  %v2243 = vrot.slane %v2031, 1
  %v2244 = vsel %vm2075, %v2243, %v2242
  %v2245 = vrot.slane %v2033, 7
  %v2246 = vsel %vm2057, %v2245, %v2032
  %v2247 = vrot.slane %v2034, 6
  %v2248 = vsel %vm2060, %v2247, %v2246
  %v2249 = vrot.slane %v2035, 5
  %v2250 = vsel %vm2063, %v2249, %v2248
  %v2251 = vrot.slane %v2036, 4
  %v2252 = vsel %vm2066, %v2251, %v2250
  %v2253 = vrot.slane %v2037, 3
  %v2254 = vsel %vm2069, %v2253, %v2252
  %v2255 = vrot.slane %v2038, 2
  %v2256 = vsel %vm2072, %v2255, %v2254
  %v2257 = vrot.slane %v2039, 1
  %v2258 = vsel %vm2075, %v2257, %v2256
  %v2259 = vrot.slane %v2041, 7
  %v2260 = vsel %vm2057, %v2259, %v2040
  %v2261 = vrot.slane %v2042, 6
  %v2262 = vsel %vm2060, %v2261, %v2260
  %v2263 = vrot.slane %v2043, 5
  %v2264 = vsel %vm2063, %v2263, %v2262
  %v2265 = vrot.slane %v2044, 4
  %v2266 = vsel %vm2066, %v2265, %v2264
  %v2267 = vrot.slane %v2045, 3
  %v2268 = vsel %vm2069, %v2267, %v2266
  %v2269 = vrot.slane %v2046, 2
  %v2270 = vsel %vm2072, %v2269, %v2268
  %v2271 = vrot.slane %v2047, 1
  %v2272 = vsel %vm2075, %v2271, %v2270
  %v2273 = vrot.slane %v2049, 7
  %v2274 = vsel %vm2057, %v2273, %v2048
  %v2275 = vrot.slane %v2050, 6
  %v2276 = vsel %vm2060, %v2275, %v2274
  %v2277 = vrot.slane %v2051, 5
  %v2278 = vsel %vm2063, %v2277, %v2276
  %v2279 = vrot.slane %v2052, 4
  %v2280 = vsel %vm2066, %v2279, %v2278
  %v2281 = vrot.slane %v2053, 3
  %v2282 = vsel %vm2069, %v2281, %v2280
  %v2283 = vrot.slane %v2054, 2
  %v2284 = vsel %vm2072, %v2283, %v2282
  %v2285 = vrot.slane %v2055, 1
  %v2286 = vsel %vm2075, %v2285, %v2284
  %v2287 = vpack.c.b16 %v2076, %v2076
  %v2288 = vpack.c.b16 %v2090, %v2090
  %v2289 = vpack.c.b16 %v2104, %v2104
  %v2290 = vpack.c.b16 %v2118, %v2118
  %v2291 = vpack.c.b16 %v2132, %v2132
  %v2292 = vpack.c.b16 %v2146, %v2146
  %v2293 = vpack.c.b16 %v2160, %v2160
  %v2294 = vpack.c.b16 %v2174, %v2174
  %v2295 = vpack.c.b16 %v2188, %v2188
  %v2296 = vpack.c.b16 %v2202, %v2202
  %v2297 = vpack.c.b16 %v2216, %v2216
  %v2298 = vpack.c.b16 %v2230, %v2230
  %v2299 = vpack.c.b16 %v2244, %v2244
  %v2300 = vpack.c.b16 %v2258, %v2258
  %v2301 = vpack.c.b16 %v2272, %v2272
  %v2302 = vpack.c.b16 %v2286, %v2286
  %vm2319 = vcmask 27648
  %2320 = vst.msk [vmem:[%s1] sm:$0xf] %vm2319, %v2287
  %2321 = vst.msk [vmem:[%s1 + $0x4] sm:$0xf] %vm2319, %v2288
  %2322 = vst.msk [vmem:[%s1 + $0x8] sm:$0xf] %vm2319, %v2289
  %2323 = vst.msk [vmem:[%s1 + $0xc] sm:$0xf] %vm2319, %v2290
  %2324 = vst.msk [vmem:[%s1 + $0x10] sm:$0xf] %vm2319, %v2291
  %2325 = vst.msk [vmem:[%s1 + $0x14] sm:$0xf] %vm2319, %v2292
  %2326 = vst.msk [vmem:[%s1 + $0x18] sm:$0xf] %vm2319, %v2293
  %2327 = vst.msk [vmem:[%s1 + $0x1c] sm:$0xf] %vm2319, %v2294
  %2328 = vst.msk [vmem:[%s1 + $0x20] sm:$0xf] %vm2319, %v2295
  %2329 = vst.msk [vmem:[%s1 + $0x24] sm:$0xf] %vm2319, %v2296
  %2330 = vst.msk [vmem:[%s1 + $0x28] sm:$0xf] %vm2319, %v2297
  %2331 = vst.msk [vmem:[%s1 + $0x2c] sm:$0xf] %vm2319, %v2298
  %2332 = vst.msk [vmem:[%s1 + $0x30] sm:$0xf] %vm2319, %v2299
  %2333 = vst.msk [vmem:[%s1 + $0x34] sm:$0xf] %vm2319, %v2300
  %2334 = vst.msk [vmem:[%s1 + $0x38] sm:$0xf] %vm2319, %v2301
  %2335 = vst.msk [vmem:[%s1 + $0x3c] sm:$0xf] %vm2319, %v2302
  // Predicated region
  $region6: #{down_forward.6} parent=0 // pred_check
    _
  $region7: #{down_forward.6} parent=0 // pred_check_branch
    %2337 = sbr.rel (0) target = $region9
  $region8: #{down_forward.6} parent=0 // pred_region
    _
  $region9: #{down_forward.6} parent=0 // pred_fallthru
    _
  // Predicated region
  $region10: #{down_forward.6} parent=0 // pred_check
    _
  $region11: #{down_forward.6} parent=0 // pred_check_branch
    %2339 = sbr.rel (0) target = $region13
  $region12: #{down_forward.6} parent=0 // pred_region
    _
  $region13: #{down_forward.6} parent=0 // pred_fallthru
    _

</llo_original>
